<compile_context>
chip_gen: v7x
topology: tpu7x:2x2x1
jax: 0.10.0
libtpu: 0.0.40
codegen_flags: <defaults>
</compile_context>

<pallas_src>
import functools

import jax
import jax.numpy as jnp
from jax.experimental import pallas as pl
from jax.experimental.pallas import tpu as pltpu

NUM_FEATURES = 652
BN_EPS = 1e-5

# conv order matching torch.cat([x_1, x_3, x_2, x_4]) = [1_l, 1_g, 2_l, 2_g]
# given params/edge lists stored as [1_l, 2_l, 1_g, 2_g].
_CONV_ORDER = (0, 2, 1, 3)


def _vmem_specs(n):
    return [pl.BlockSpec(memory_space=pltpu.MemorySpace.VMEM) for _ in range(n)]


# -----------------------------------------------------------------------------
# The single fused kernel: 4x (4 GINConvs + concat + mixing MLP + BatchNorm),
# followed by global_mean_pool and the fc1..fc4 readout.
#
# Per layer l (xw = features already projected through the 4 stacked W1s):
#   agg_k = A_k @ xw_k            (lane-dense via per-conv column masks)
#   h1    = relu((1+eps)*xw + agg + b1)
#   xc    = relu(h1 @ blockdiag(W2) + b2)      == concat of relu(conv_k(...))
#   y     = relu(xc @ Wm1 + bm1) @ Wm2 + bm2   (mixing MLP)
#   h     = BatchNorm1d(y)                      (training-mode batch stats)
#   fc1_acc += (pool @ h) @ fc1_w[l*D:(l+1)*D]  (pooling + fc1 folded in)
#   xw    = h @ W1cat_{l+1}                     (only for l < 3)
# -----------------------------------------------------------------------------
def netgin_fused_kernel(adj_ref, xw0_ref, mask_ref, opep_ref, b1_ref,
                        w2_ref, b2_ref, wm1_ref, bm1_ref, wm2_ref, bm2_ref,
                        gam_ref, bet_ref, w1n_ref, pool_ref,
                        fw1_ref, fb1_ref, fw2_ref, fb2_ref,
                        fw3_ref, fb3_ref, fw4_ref, fb4_ref, out_ref):
    n, d4 = xw0_ref.shape
    d = bm1_ref.shape[2]
    inv_n = 1.0 / n

    ones_row = jnp.full((1, n), 1.0, dtype=jnp.float32)      # MXU BN sums
    mrows = [mask_ref[k] for k in range(4)]                  # (1, 4D) bf16
    pool = pool_ref[...]                                     # (G, N) f32
    g = pool.shape[0]

    xw = xw0_ref[...]                                        # (N, 4D) bf16
    fc1_acc = jnp.zeros((g, d), jnp.float32)

    for l in range(4):
        # ---- 4 GINConvs: project-then-aggregate, lane-dense masked dots ----
        agg = jnp.dot(adj_ref[0], xw * mrows[0],
                      preferred_element_type=jnp.float32)
        for k in range(1, 4):
            agg = agg + jnp.dot(adj_ref[k], xw * mrows[k],
                                preferred_element_type=jnp.float32)
        h1 = jnp.maximum(opep_ref[l] * xw + agg + b1_ref[l], 0.0)

        # second conv Linear: block-diagonal W2 -> one lane-dense 4Dx4D matmul,
        # result already in torch.cat([x_1, x_3, x_2, x_4]) column order.
        xc = jnp.maximum(
            jnp.dot(h1.astype(jnp.bfloat16), w2_ref[l],
                    preferred_element_type=jnp.float32) + b2_ref[l], 0.0)

        # ---- mixing MLP ----
        m1 = jnp.maximum(
            jnp.dot(xc.astype(jnp.bfloat16), wm1_ref[l],
                    preferred_element_type=jnp.float32) + bm1_ref[l], 0.0)
        y = jnp.dot(m1.astype(jnp.bfloat16), wm2_ref[l],
                    preferred_element_type=jnp.float32) + bm2_ref[l]

        # ---- BatchNorm1d (training-mode batch stats), sums on the MXU ----
        s = jnp.dot(ones_row, y, preferred_element_type=jnp.float32)
        ss = jnp.dot(ones_row, y * y, preferred_element_type=jnp.float32)
        mean = s * inv_n
        var = ss * inv_n - mean * mean
        h = gam_ref[l] * (y - mean) * jax.lax.rsqrt(var + BN_EPS) + bet_ref[l]

        # ---- global_mean_pool + this layer's fc1 column block, folded in ----
        pooled_l = jnp.dot(pool, h, preferred_element_type=jnp.float32)   # (G,D)
        fc1_acc = fc1_acc + jnp.dot(pooled_l, fw1_ref[l * d:(l + 1) * d, :],
                                    preferred_element_type=jnp.float32)

        # ---- pre-project features for the next layer (skip on last layer) ----
        if l < 3:
            xw = jnp.dot(h.astype(jnp.bfloat16), w1n_ref[l],
                         preferred_element_type=jnp.float32).astype(jnp.bfloat16)

    # ---- readout MLP ----
    r = jnp.maximum(fc1_acc + fb1_ref[...], 0.0)
    r = jnp.maximum(jnp.dot(r, fw2_ref[...],
                            preferred_element_type=jnp.float32) + fb2_ref[...], 0.0)
    r = jnp.maximum(jnp.dot(r, fw3_ref[...],
                            preferred_element_type=jnp.float32) + fb3_ref[...], 0.0)
    out_ref[...] = (jnp.dot(r, fw4_ref[...],
                            preferred_element_type=jnp.float32) + fb4_ref[...])


def _vmem_limit_bytes(need_bytes):
    cap = 64 * 1024 * 1024          # conservative fallback (v7x per-TC VMEM)
    try:
        cap = int(pltpu.get_tpu_info().vmem_capacity_bytes)
    except Exception:
        pass
    want = max(int(need_bytes) * 3 // 2, 32 * 1024 * 1024)
    return int(min(want, cap * 9 // 10))


def pallas_netgin_forward(adjs, xw0, masks, opep, b1, w2bd, b2, wm1, bm1,
                          wm2, bm2, gamma, beta, w1n, pool, fc):
    n, d4 = xw0.shape
    d = bm1.shape[2]
    g = pool.shape[0]

    args = (adjs, xw0, masks, opep, b1, w2bd, b2, wm1, bm1, wm2, bm2,
            gamma, beta, w1n, pool,
            fc["w1"], fc["b1"], fc["w2"], fc["b2"],
            fc["w3"], fc["b3"], fc["w4"], fc["b4"])

    in_bytes = sum(int(a.size) * a.dtype.itemsize for a in args)
    need = in_bytes + g * 4 + 10 * n * d4 * 4   # inputs + output + f32 slabs

    flops = 0
    for l in range(4):
        flops += 2 * n * n * d4 * 4                 # 4 adjacency aggregations
        flops += 2 * n * d4 * d4                    # block-diag conv-2 Linear
        flops += 2 * n * d4 * d + 2 * n * d * d     # mixing MLP
        flops += 2 * 2 * n * d                      # BN sums
        flops += 2 * g * n * d + 2 * g * d * d      # pooling + fc1 block
        if l < 3:
            flops += 2 * n * d * d4                 # next-layer projection
    flops += 2 * g * (2 * d * d + d)                # fc2..fc4

    return pl.pallas_call(
        netgin_fused_kernel,
        out_shape=jax.ShapeDtypeStruct((g, 1), jnp.float32),
        in_specs=_vmem_specs(len(args)),
        out_specs=pl.BlockSpec(memory_space=pltpu.MemorySpace.VMEM),
        compiler_params=pltpu.CompilerParams(
            vmem_limit_bytes=_vmem_limit_bytes(need)),
        cost_estimate=pl.CostEstimate(flops=int(flops), transcendentals=0,
                                      bytes_accessed=int(in_bytes + g * 4)),
    )(*args)


# -----------------------------------------------------------------------------
# Glue: graph structure -> dense matrices, parameter stacking/init, forward
# -----------------------------------------------------------------------------
def edge_index_to_adj(edge_index, n):
    # edge_index: (2, E) int32, row 0 = src, row 1 = dst (PyG convention).
    src, dst = edge_index[0], edge_index[1]
    return jnp.zeros((n, n), jnp.float32).at[dst, src].add(1.0)


def pooling_matrix(batch, num_graphs):
    onehot = jax.nn.one_hot(batch, num_graphs, dtype=jnp.float32).T  # (G, N)
    counts = jnp.maximum(onehot.sum(axis=1, keepdims=True), 1.0)
    return onehot / counts


def block_diag4(ws):
    d = ws[0].shape[0]
    out = jnp.zeros((4 * d, 4 * d), ws[0].dtype)
    for k, w in enumerate(ws):
        out = out.at[k * d:(k + 1) * d, k * d:(k + 1) * d].set(w)
    return out


def init_params(key, dim):
    def linear(key, fi, fo, scale=0.1):
        kw, kb = jax.random.split(key)
        return (scale * jax.random.normal(kw, (fi, fo), jnp.float32),
                scale * jax.random.normal(kb, (1, fo), jnp.float32))

    params = {"conv": [], "mlp": [], "bn": [], "fc": {}}
    keys = jax.random.split(key, 64)
    ki = 0
    for layer in range(4):
        fin = NUM_FEATURES if layer == 0 else dim
        convs = []
        for _ in range(4):  # order: 1_l, 2_l, 1_g, 2_g
            w1, b1 = linear(keys[ki], fin, dim); ki += 1
            w2, b2 = linear(keys[ki], dim, dim); ki += 1
            convs.append({"eps": jnp.zeros((1, 1), jnp.float32),  # train_eps init = 0
                          "w1": w1, "b1": b1, "w2": w2, "b2": b2})
        params["conv"].append(convs)
        mw1, mb1 = linear(keys[ki], 4 * dim, dim); ki += 1
        mw2, mb2 = linear(keys[ki], dim, dim); ki += 1
        params["mlp"].append({"w1": mw1, "b1": mb1, "w2": mw2, "b2": mb2})
        params["bn"].append({"gamma": jnp.ones((1, dim), jnp.float32),
                             "beta": jnp.zeros((1, dim), jnp.float32)})
    fw1, fb1 = linear(keys[ki], 4 * dim, dim); ki += 1
    fw2, fb2 = linear(keys[ki], dim, dim); ki += 1
    fw3, fb3 = linear(keys[ki], dim, dim); ki += 1
    fw4, fb4 = linear(keys[ki], dim, 1); ki += 1
    params["fc"] = {"w1": fw1, "b1": fb1, "w2": fw2, "b2": fb2,
                    "w3": fw3, "b3": fb3, "w4": fw4, "b4": fb4}
    return params


def _stack_layer(params, layer, dim):
    convs = [params["conv"][layer][k] for k in _CONV_ORDER]
    w1cat = jnp.concatenate([c["w1"] for c in convs], axis=1)          # (fin, 4D)
    b1cat = jnp.concatenate([c["b1"] for c in convs], axis=1)          # (1, 4D)
    opep = jnp.concatenate(
        [jnp.broadcast_to(1.0 + c["eps"].reshape(1, 1), (1, dim)) for c in convs],
        axis=1)                                                        # (1, 4D)
    w2bd = block_diag4([c["w2"] for c in convs])                       # (4D, 4D)
    b2cat = jnp.concatenate([c["b2"] for c in convs], axis=1)          # (1, 4D)
    return w1cat, b1cat, opep, w2bd, b2cat


def net_gin_forward(params, x_labels, edge_indices, batch, num_graphs):
    n = x_labels.shape[0]
    dim = params["fc"]["w2"].shape[0]
    d4 = 4 * dim
    bf16 = jnp.bfloat16

    # dense adjacencies stacked in the conv concat order [1_l, 1_g, 2_l, 2_g]
    adjs = jnp.stack([edge_index_to_adj(edge_indices[k], n)
                      for k in _CONV_ORDER]).astype(bf16)              # (4, N, N)

    stacked = [_stack_layer(params, l, dim) for l in range(4)]

    # Layer-0 projection: x is a one-hot of the 652-way label, so
    # x @ [W1_a|W1_b|W1_c|W1_d] == row gather of the stacked weights.
    xw0 = jnp.take(stacked[0][0], x_labels, axis=0).astype(bf16)       # (N, 4D)

    # per-conv lane masks: columns k*dim..(k+1)*dim-1 belong to conv k
    grp = jnp.arange(d4) // dim
    masks = jnp.stack([(grp == k).astype(bf16).reshape(1, d4)
                       for k in range(4)])                             # (4,1,4D)

    opep = jnp.stack([s[2] for s in stacked])                          # (4,1,4D)
    b1 = jnp.stack([s[1] for s in stacked])                            # (4,1,4D)
    w2bd = jnp.stack([s[3] for s in stacked]).astype(bf16)             # (4,4D,4D)
    b2 = jnp.stack([s[4] for s in stacked])                            # (4,1,4D)
    wm1 = jnp.stack([params["mlp"][l]["w1"] for l in range(4)]).astype(bf16)
    bm1 = jnp.stack([params["mlp"][l]["b1"] for l in range(4)])
    wm2 = jnp.stack([params["mlp"][l]["w2"] for l in range(4)]).astype(bf16)
    bm2 = jnp.stack([params["mlp"][l]["b2"] for l in range(4)])
    gamma = jnp.stack([params["bn"][l]["gamma"] for l in range(4)])
    beta = jnp.stack([params["bn"][l]["beta"] for l in range(4)])
    # next-layer conv1 weights for layers 1..3 only (no dead last-layer matmul)
    w1n = jnp.stack([stacked[l][0] for l in range(1, 4)]).astype(bf16)  # (3,D,4D)

    pool = pooling_matrix(batch, num_graphs)                            # (G, N)

    out = pallas_netgin_forward(adjs, xw0, masks, opep, b1, w2bd, b2, wm1, bm1,
                                wm2, bm2, gamma, beta, w1n, pool, params["fc"])
    return out.reshape(-1)  # x.view(-1): one scalar per graph


if __name__ == "__main__":
    dim = 32
    n_nodes = 64
    n_edges = 256
    num_graphs = 4

    key = jax.random.PRNGKey(0)
    k_par, k_lab, k_e1, k_e2, k_e3, k_e4 = jax.random.split(key, 6)

    params = init_params(k_par, dim)

    # Node labels in [0, 652) and four edge-index sets (2, E): 1_l, 2_l, 1_g, 2_g.
    x_labels = jax.random.randint(k_lab, (n_nodes,), 0, NUM_FEATURES, dtype=jnp.int32)
    edge_indices = [
        jax.random.randint(k, (2, n_edges), 0, n_nodes, dtype=jnp.int32)
        for k in (k_e1, k_e2, k_e3, k_e4)
    ]
    # data.batch: nodes assigned evenly to graphs 0..num_graphs-1.
    batch = jnp.repeat(jnp.arange(num_graphs, dtype=jnp.int32),
                       n_nodes // num_graphs)

    fwd = jax.jit(functools.partial(net_gin_forward, num_graphs=num_graphs))
    out = fwd(params, x_labels, edge_indices, batch)
    out = jax.block_until_ready(out)

    assert out.shape == (num_graphs,)
    assert jnp.all(jnp.isfinite(out))
    print("KERNEL_OK")
</pallas_src>

<mosaic_0001>
module attributes {stable_mosaic.version = 11 : i64} {
  func.func private @main(%arg0: i32) attributes {dimension_semantics = [#tpu.dimension_semantics<core_parallel>], iteration_bounds = array<i64: 2>, tpu.core_type = #tpu.core_type<sc_scalar_subcore>, window_params = []} {
    return
  }
}

module attributes {stable_mosaic.version = 11 : i64} {
  func.func private @main(%arg0: i32) attributes {dimension_semantics = [#tpu.dimension_semantics<core_parallel>], iteration_bounds = array<i64: 2>, tpu.core_type = #tpu.core_type<sc_scalar_subcore>, window_params = []} {
    return
  }
}

module attributes {stable_mosaic.version = 11 : i64} {
  func.func @netgin_fused_kernel(%arg0: memref<4x64x64xbf16, #tpu.memory_space<vmem>>, %arg1: memref<64x128xbf16, #tpu.memory_space<vmem>>, %arg2: memref<4x1x128xbf16, #tpu.memory_space<vmem>>, %arg3: memref<4x1x128xf32, #tpu.memory_space<vmem>>, %arg4: memref<4x1x128xf32, #tpu.memory_space<vmem>>, %arg5: memref<4x128x128xbf16, #tpu.memory_space<vmem>>, %arg6: memref<4x1x128xf32, #tpu.memory_space<vmem>>, %arg7: memref<4x128x32xbf16, #tpu.memory_space<vmem>>, %arg8: memref<4x1x32xf32, #tpu.memory_space<vmem>>, %arg9: memref<4x32x32xbf16, #tpu.memory_space<vmem>>, %arg10: memref<4x1x32xf32, #tpu.memory_space<vmem>>, %arg11: memref<4x1x32xf32, #tpu.memory_space<vmem>>, %arg12: memref<4x1x32xf32, #tpu.memory_space<vmem>>, %arg13: memref<3x32x128xbf16, #tpu.memory_space<vmem>>, %arg14: memref<4x64xf32, #tpu.memory_space<vmem>>, %arg15: memref<128x32xf32, #tpu.memory_space<vmem>>, %arg16: memref<1x32xf32, #tpu.memory_space<vmem>>, %arg17: memref<32x32xf32, #tpu.memory_space<vmem>>, %arg18: memref<1x32xf32, #tpu.memory_space<vmem>>, %arg19: memref<32x32xf32, #tpu.memory_space<vmem>>, %arg20: memref<1x32xf32, #tpu.memory_space<vmem>>, %arg21: memref<32x1xf32, #tpu.memory_space<vmem>>, %arg22: memref<1x1xf32, #tpu.memory_space<vmem>>, %arg23: memref<4x1xf32, #tpu.memory_space<vmem>>) attributes {dimension_semantics = [], scalar_prefetch = 0 : i64, scratch_operands = 0 : i64, tpu.core_type = #tpu.core_type<tc>} {
    %cst = arith.constant 1.000000e+00 : f32
    %0 = vector.broadcast %cst : f32 to vector<1x64xf32>
    %c0 = arith.constant 0 : index
    %c0_0 = arith.constant 0 : index
    %c0_1 = arith.constant 0 : index
    %1 = vector.load %arg2[%c0, %c0_0, %c0_1] : memref<4x1x128xbf16, #tpu.memory_space<vmem>>, vector<1x1x128xbf16>
    %2 = vector.shape_cast %1 : vector<1x1x128xbf16> to vector<1x128xbf16>
    %c1 = arith.constant 1 : index
    %c0_2 = arith.constant 0 : index
    %c0_3 = arith.constant 0 : index
    %3 = vector.load %arg2[%c1, %c0_2, %c0_3] : memref<4x1x128xbf16, #tpu.memory_space<vmem>>, vector<1x1x128xbf16>
    %4 = vector.shape_cast %3 : vector<1x1x128xbf16> to vector<1x128xbf16>
    %c2 = arith.constant 2 : index
    %c0_4 = arith.constant 0 : index
    %c0_5 = arith.constant 0 : index
    %5 = vector.load %arg2[%c2, %c0_4, %c0_5] : memref<4x1x128xbf16, #tpu.memory_space<vmem>>, vector<1x1x128xbf16>
    %6 = vector.shape_cast %5 : vector<1x1x128xbf16> to vector<1x128xbf16>
    %c3 = arith.constant 3 : index
    %c0_6 = arith.constant 0 : index
    %c0_7 = arith.constant 0 : index
    %7 = vector.load %arg2[%c3, %c0_6, %c0_7] : memref<4x1x128xbf16, #tpu.memory_space<vmem>>, vector<1x1x128xbf16>
    %8 = vector.shape_cast %7 : vector<1x1x128xbf16> to vector<1x128xbf16>
    %c0_8 = arith.constant 0 : index
    %c0_9 = arith.constant 0 : index
    %9 = vector.load %arg14[%c0_8, %c0_9] : memref<4x64xf32, #tpu.memory_space<vmem>>, vector<4x64xf32>
    %c0_10 = arith.constant 0 : index
    %c0_11 = arith.constant 0 : index
    %10 = vector.load %arg1[%c0_10, %c0_11] : memref<64x128xbf16, #tpu.memory_space<vmem>>, vector<64x128xbf16>
    %cst_12 = arith.constant 0.000000e+00 : f32
    %11 = vector.broadcast %cst_12 : f32 to vector<4x32xf32>
    %c0_13 = arith.constant 0 : index
    %c0_14 = arith.constant 0 : index
    %c0_15 = arith.constant 0 : index
    %12 = vector.load %arg0[%c0_13, %c0_14, %c0_15] : memref<4x64x64xbf16, #tpu.memory_space<vmem>>, vector<1x64x64xbf16>
    %13 = vector.shape_cast %12 : vector<1x64x64xbf16> to vector<64x64xbf16>
    %14 = vector.broadcast %2 : vector<1x128xbf16> to vector<64x128xbf16>
    %15 = arith.mulf %10, %14 : vector<64x128xbf16>
    %cst_16 = arith.constant dense<0.000000e+00> : vector<64x128xf32>
    %16 = tpu.matmul %13, %15, %cst_16 {dimension_numbers = #tpu.dot_dimension_numbers<[1], [0], [0], [1], [0, 0, 1, 1], [], []>} : vector<64x64xbf16>, vector<64x128xbf16>, vector<64x128xf32> -> vector<64x128xf32>
    %c1_17 = arith.constant 1 : index
    %c0_18 = arith.constant 0 : index
    %c0_19 = arith.constant 0 : index
    %17 = vector.load %arg0[%c1_17, %c0_18, %c0_19] : memref<4x64x64xbf16, #tpu.memory_space<vmem>>, vector<1x64x64xbf16>
    %18 = vector.shape_cast %17 : vector<1x64x64xbf16> to vector<64x64xbf16>
    %19 = vector.broadcast %4 : vector<1x128xbf16> to vector<64x128xbf16>
    %20 = arith.mulf %10, %19 : vector<64x128xbf16>
    %cst_20 = arith.constant dense<0.000000e+00> : vector<64x128xf32>
    %21 = tpu.matmul %18, %20, %cst_20 {dimension_numbers = #tpu.dot_dimension_numbers<[1], [0], [0], [1], [0, 0, 1, 1], [], []>} : vector<64x64xbf16>, vector<64x128xbf16>, vector<64x128xf32> -> vector<64x128xf32>
    %22 = arith.addf %16, %21 : vector<64x128xf32>
    %c2_21 = arith.constant 2 : index
    %c0_22 = arith.constant 0 : index
    %c0_23 = arith.constant 0 : index
    %23 = vector.load %arg0[%c2_21, %c0_22, %c0_23] : memref<4x64x64xbf16, #tpu.memory_space<vmem>>, vector<1x64x64xbf16>
    %24 = vector.shape_cast %23 : vector<1x64x64xbf16> to vector<64x64xbf16>
    %25 = vector.broadcast %6 : vector<1x128xbf16> to vector<64x128xbf16>
    %26 = arith.mulf %10, %25 : vector<64x128xbf16>
    %cst_24 = arith.constant dense<0.000000e+00> : vector<64x128xf32>
    %27 = tpu.matmul %24, %26, %cst_24 {dimension_numbers = #tpu.dot_dimension_numbers<[1], [0], [0], [1], [0, 0, 1, 1], [], []>} : vector<64x64xbf16>, vector<64x128xbf16>, vector<64x128xf32> -> vector<64x128xf32>
    %28 = arith.addf %22, %27 : vector<64x128xf32>
    %c3_25 = arith.constant 3 : index
    %c0_26 = arith.constant 0 : index
    %c0_27 = arith.constant 0 : index
    %29 = vector.load %arg0[%c3_25, %c0_26, %c0_27] : memref<4x64x64xbf16, #tpu.memory_space<vmem>>, vector<1x64x64xbf16>
    %30 = vector.shape_cast %29 : vector<1x64x64xbf16> to vector<64x64xbf16>
    %31 = vector.broadcast %8 : vector<1x128xbf16> to vector<64x128xbf16>
    %32 = arith.mulf %10, %31 : vector<64x128xbf16>
    %cst_28 = arith.constant dense<0.000000e+00> : vector<64x128xf32>
    %33 = tpu.matmul %30, %32, %cst_28 {dimension_numbers = #tpu.dot_dimension_numbers<[1], [0], [0], [1], [0, 0, 1, 1], [], []>} : vector<64x64xbf16>, vector<64x128xbf16>, vector<64x128xf32> -> vector<64x128xf32>
    %34 = arith.addf %28, %33 : vector<64x128xf32>
    %c0_29 = arith.constant 0 : index
    %c0_30 = arith.constant 0 : index
    %c0_31 = arith.constant 0 : index
    %35 = vector.load %arg3[%c0_29, %c0_30, %c0_31] : memref<4x1x128xf32, #tpu.memory_space<vmem>>, vector<1x1x128xf32>
    %36 = vector.shape_cast %35 : vector<1x1x128xf32> to vector<1x128xf32>
    %37 = arith.extf %10 : vector<64x128xbf16> to vector<64x128xf32>
    %38 = vector.broadcast %36 : vector<1x128xf32> to vector<64x128xf32>
    %39 = arith.mulf %38, %37 : vector<64x128xf32>
    %40 = arith.addf %39, %34 : vector<64x128xf32>
    %c0_32 = arith.constant 0 : index
    %c0_33 = arith.constant 0 : index
    %c0_34 = arith.constant 0 : index
    %41 = vector.load %arg4[%c0_32, %c0_33, %c0_34] : memref<4x1x128xf32, #tpu.memory_space<vmem>>, vector<1x1x128xf32>
    %42 = vector.shape_cast %41 : vector<1x1x128xf32> to vector<1x128xf32>
    %43 = vector.broadcast %42 : vector<1x128xf32> to vector<64x128xf32>
    %44 = arith.addf %40, %43 : vector<64x128xf32>
    %cst_35 = arith.constant 0.000000e+00 : f32
    %45 = vector.broadcast %cst_35 : f32 to vector<64x128xf32>
    %46 = arith.maximumf %44, %45 : vector<64x128xf32>
    %47 = arith.truncf %46 : vector<64x128xf32> to vector<64x128xbf16>
    %c0_36 = arith.constant 0 : index
    %c0_37 = arith.constant 0 : index
    %c0_38 = arith.constant 0 : index
    %48 = vector.load %arg5[%c0_36, %c0_37, %c0_38] : memref<4x128x128xbf16, #tpu.memory_space<vmem>>, vector<1x128x128xbf16>
    %49 = vector.shape_cast %48 : vector<1x128x128xbf16> to vector<128x128xbf16>
    %cst_39 = arith.constant dense<0.000000e+00> : vector<64x128xf32>
    %50 = tpu.matmul %47, %49, %cst_39 {dimension_numbers = #tpu.dot_dimension_numbers<[1], [0], [0], [1], [0, 0, 1, 1], [], []>} : vector<64x128xbf16>, vector<128x128xbf16>, vector<64x128xf32> -> vector<64x128xf32>
    %c0_40 = arith.constant 0 : index
    %c0_41 = arith.constant 0 : index
    %c0_42 = arith.constant 0 : index
    %51 = vector.load %arg6[%c0_40, %c0_41, %c0_42] : memref<4x1x128xf32, #tpu.memory_space<vmem>>, vector<1x1x128xf32>
    %52 = vector.shape_cast %51 : vector<1x1x128xf32> to vector<1x128xf32>
    %53 = vector.broadcast %52 : vector<1x128xf32> to vector<64x128xf32>
    %54 = arith.addf %50, %53 : vector<64x128xf32>
    %cst_43 = arith.constant 0.000000e+00 : f32
    %55 = vector.broadcast %cst_43 : f32 to vector<64x128xf32>
    %56 = arith.maximumf %54, %55 : vector<64x128xf32>
    %57 = arith.truncf %56 : vector<64x128xf32> to vector<64x128xbf16>
    %c0_44 = arith.constant 0 : index
    %c0_45 = arith.constant 0 : index
    %c0_46 = arith.constant 0 : index
    %58 = vector.load %arg7[%c0_44, %c0_45, %c0_46] : memref<4x128x32xbf16, #tpu.memory_space<vmem>>, vector<1x128x32xbf16>
    %59 = vector.shape_cast %58 : vector<1x128x32xbf16> to vector<128x32xbf16>
    %cst_47 = arith.constant dense<0.000000e+00> : vector<64x32xf32>
    %60 = tpu.matmul %57, %59, %cst_47 {dimension_numbers = #tpu.dot_dimension_numbers<[1], [0], [0], [1], [0, 0, 1, 1], [], []>} : vector<64x128xbf16>, vector<128x32xbf16>, vector<64x32xf32> -> vector<64x32xf32>
    %c0_48 = arith.constant 0 : index
    %c0_49 = arith.constant 0 : index
    %c0_50 = arith.constant 0 : index
    %61 = vector.load %arg8[%c0_48, %c0_49, %c0_50] : memref<4x1x32xf32, #tpu.memory_space<vmem>>, vector<1x1x32xf32>
    %62 = vector.shape_cast %61 : vector<1x1x32xf32> to vector<1x32xf32>
    %63 = vector.broadcast %62 : vector<1x32xf32> to vector<64x32xf32>
    %64 = arith.addf %60, %63 : vector<64x32xf32>
    %cst_51 = arith.constant 0.000000e+00 : f32
    %65 = vector.broadcast %cst_51 : f32 to vector<64x32xf32>
    %66 = arith.maximumf %64, %65 : vector<64x32xf32>
    %67 = arith.truncf %66 : vector<64x32xf32> to vector<64x32xbf16>
    %c0_52 = arith.constant 0 : index
    %c0_53 = arith.constant 0 : index
    %c0_54 = arith.constant 0 : index
    %68 = vector.load %arg9[%c0_52, %c0_53, %c0_54] : memref<4x32x32xbf16, #tpu.memory_space<vmem>>, vector<1x32x32xbf16>
    %69 = vector.shape_cast %68 : vector<1x32x32xbf16> to vector<32x32xbf16>
    %cst_55 = arith.constant dense<0.000000e+00> : vector<64x32xf32>
    %70 = tpu.matmul %67, %69, %cst_55 {dimension_numbers = #tpu.dot_dimension_numbers<[1], [0], [0], [1], [0, 0, 1, 1], [], []>} : vector<64x32xbf16>, vector<32x32xbf16>, vector<64x32xf32> -> vector<64x32xf32>
    %c0_56 = arith.constant 0 : index
    %c0_57 = arith.constant 0 : index
    %c0_58 = arith.constant 0 : index
    %71 = vector.load %arg10[%c0_56, %c0_57, %c0_58] : memref<4x1x32xf32, #tpu.memory_space<vmem>>, vector<1x1x32xf32>
    %72 = vector.shape_cast %71 : vector<1x1x32xf32> to vector<1x32xf32>
    %73 = vector.broadcast %72 : vector<1x32xf32> to vector<64x32xf32>
    %74 = arith.addf %70, %73 : vector<64x32xf32>
    %cst_59 = arith.constant dense<0.000000e+00> : vector<1x32xf32>
    %75 = tpu.matmul %0, %74, %cst_59 {dimension_numbers = #tpu.dot_dimension_numbers<[1], [0], [0], [1], [0, 0, 1, 1], [], []>} : vector<1x64xf32>, vector<64x32xf32>, vector<1x32xf32> -> vector<1x32xf32>
    %76 = arith.mulf %74, %74 : vector<64x32xf32>
    %cst_60 = arith.constant dense<0.000000e+00> : vector<1x32xf32>
    %77 = tpu.matmul %0, %76, %cst_60 {dimension_numbers = #tpu.dot_dimension_numbers<[1], [0], [0], [1], [0, 0, 1, 1], [], []>} : vector<1x64xf32>, vector<64x32xf32>, vector<1x32xf32> -> vector<1x32xf32>
    %cst_61 = arith.constant 1.562500e-02 : f32
    %78 = vector.broadcast %cst_61 : f32 to vector<1x32xf32>
    %79 = arith.mulf %75, %78 : vector<1x32xf32>
    %cst_62 = arith.constant 1.562500e-02 : f32
    %80 = vector.broadcast %cst_62 : f32 to vector<1x32xf32>
    %81 = arith.mulf %77, %80 : vector<1x32xf32>
    %82 = arith.mulf %79, %79 : vector<1x32xf32>
    %83 = arith.subf %81, %82 : vector<1x32xf32>
    %c0_63 = arith.constant 0 : index
    %c0_64 = arith.constant 0 : index
    %c0_65 = arith.constant 0 : index
    %84 = vector.load %arg11[%c0_63, %c0_64, %c0_65] : memref<4x1x32xf32, #tpu.memory_space<vmem>>, vector<1x1x32xf32>
    %85 = vector.shape_cast %84 : vector<1x1x32xf32> to vector<1x32xf32>
    %86 = vector.broadcast %79 : vector<1x32xf32> to vector<64x32xf32>
    %87 = arith.subf %74, %86 : vector<64x32xf32>
    %88 = vector.broadcast %85 : vector<1x32xf32> to vector<64x32xf32>
    %89 = arith.mulf %88, %87 : vector<64x32xf32>
    %cst_66 = arith.constant 9.99999974E-6 : f32
    %90 = vector.broadcast %cst_66 : f32 to vector<1x32xf32>
    %91 = arith.addf %83, %90 : vector<1x32xf32>
    %92 = math.rsqrt %91 : vector<1x32xf32>
    %93 = vector.broadcast %92 : vector<1x32xf32> to vector<64x32xf32>
    %94 = arith.mulf %89, %93 : vector<64x32xf32>
    %c0_67 = arith.constant 0 : index
    %c0_68 = arith.constant 0 : index
    %c0_69 = arith.constant 0 : index
    %95 = vector.load %arg12[%c0_67, %c0_68, %c0_69] : memref<4x1x32xf32, #tpu.memory_space<vmem>>, vector<1x1x32xf32>
    %96 = vector.shape_cast %95 : vector<1x1x32xf32> to vector<1x32xf32>
    %97 = vector.broadcast %96 : vector<1x32xf32> to vector<64x32xf32>
    %98 = arith.addf %94, %97 : vector<64x32xf32>
    %cst_70 = arith.constant dense<0.000000e+00> : vector<4x32xf32>
    %99 = tpu.matmul %9, %98, %cst_70 {dimension_numbers = #tpu.dot_dimension_numbers<[1], [0], [0], [1], [0, 0, 1, 1], [], []>} : vector<4x64xf32>, vector<64x32xf32>, vector<4x32xf32> -> vector<4x32xf32>
    %c0_71 = arith.constant 0 : index
    %c0_72 = arith.constant 0 : index
    %100 = vector.load %arg15[%c0_71, %c0_72] : memref<128x32xf32, #tpu.memory_space<vmem>>, vector<32x32xf32>
    %cst_73 = arith.constant dense<0.000000e+00> : vector<4x32xf32>
    %101 = tpu.matmul %99, %100, %cst_73 {dimension_numbers = #tpu.dot_dimension_numbers<[1], [0], [0], [1], [0, 0, 1, 1], [], []>} : vector<4x32xf32>, vector<32x32xf32>, vector<4x32xf32> -> vector<4x32xf32>
    %102 = arith.addf %11, %101 : vector<4x32xf32>
    %103 = arith.truncf %98 : vector<64x32xf32> to vector<64x32xbf16>
    %c0_74 = arith.constant 0 : index
    %c0_75 = arith.constant 0 : index
    %c0_76 = arith.constant 0 : index
    %104 = vector.load %arg13[%c0_74, %c0_75, %c0_76] : memref<3x32x128xbf16, #tpu.memory_space<vmem>>, vector<1x32x128xbf16>
    %105 = vector.shape_cast %104 : vector<1x32x128xbf16> to vector<32x128xbf16>
    %cst_77 = arith.constant dense<0.000000e+00> : vector<64x128xf32>
    %106 = tpu.matmul %103, %105, %cst_77 {dimension_numbers = #tpu.dot_dimension_numbers<[1], [0], [0], [1], [0, 0, 1, 1], [], []>} : vector<64x32xbf16>, vector<32x128xbf16>, vector<64x128xf32> -> vector<64x128xf32>
    %107 = arith.truncf %106 : vector<64x128xf32> to vector<64x128xbf16>
    %c0_78 = arith.constant 0 : index
    %c0_79 = arith.constant 0 : index
    %c0_80 = arith.constant 0 : index
    %108 = vector.load %arg0[%c0_78, %c0_79, %c0_80] : memref<4x64x64xbf16, #tpu.memory_space<vmem>>, vector<1x64x64xbf16>
    %109 = vector.shape_cast %108 : vector<1x64x64xbf16> to vector<64x64xbf16>
    %110 = vector.broadcast %2 : vector<1x128xbf16> to vector<64x128xbf16>
    %111 = arith.mulf %107, %110 : vector<64x128xbf16>
    %cst_81 = arith.constant dense<0.000000e+00> : vector<64x128xf32>
    %112 = tpu.matmul %109, %111, %cst_81 {dimension_numbers = #tpu.dot_dimension_numbers<[1], [0], [0], [1], [0, 0, 1, 1], [], []>} : vector<64x64xbf16>, vector<64x128xbf16>, vector<64x128xf32> -> vector<64x128xf32>
    %c1_82 = arith.constant 1 : index
    %c0_83 = arith.constant 0 : index
    %c0_84 = arith.constant 0 : index
    %113 = vector.load %arg0[%c1_82, %c0_83, %c0_84] : memref<4x64x64xbf16, #tpu.memory_space<vmem>>, vector<1x64x64xbf16>
    %114 = vector.shape_cast %113 : vector<1x64x64xbf16> to vector<64x64xbf16>
    %115 = vector.broadcast %4 : vector<1x128xbf16> to vector<64x128xbf16>
    %116 = arith.mulf %107, %115 : vector<64x128xbf16>
    %cst_85 = arith.constant dense<0.000000e+00> : vector<64x128xf32>
    %117 = tpu.matmul %114, %116, %cst_85 {dimension_numbers = #tpu.dot_dimension_numbers<[1], [0], [0], [1], [0, 0, 1, 1], [], []>} : vector<64x64xbf16>, vector<64x128xbf16>, vector<64x128xf32> -> vector<64x128xf32>
    %118 = arith.addf %112, %117 : vector<64x128xf32>
    %c2_86 = arith.constant 2 : index
    %c0_87 = arith.constant 0 : index
    %c0_88 = arith.constant 0 : index
    %119 = vector.load %arg0[%c2_86, %c0_87, %c0_88] : memref<4x64x64xbf16, #tpu.memory_space<vmem>>, vector<1x64x64xbf16>
    %120 = vector.shape_cast %119 : vector<1x64x64xbf16> to vector<64x64xbf16>
    %121 = vector.broadcast %6 : vector<1x128xbf16> to vector<64x128xbf16>
    %122 = arith.mulf %107, %121 : vector<64x128xbf16>
    %cst_89 = arith.constant dense<0.000000e+00> : vector<64x128xf32>
    %123 = tpu.matmul %120, %122, %cst_89 {dimension_numbers = #tpu.dot_dimension_numbers<[1], [0], [0], [1], [0, 0, 1, 1], [], []>} : vector<64x64xbf16>, vector<64x128xbf16>, vector<64x128xf32> -> vector<64x128xf32>
    %124 = arith.addf %118, %123 : vector<64x128xf32>
    %c3_90 = arith.constant 3 : index
    %c0_91 = arith.constant 0 : index
    %c0_92 = arith.constant 0 : index
    %125 = vector.load %arg0[%c3_90, %c0_91, %c0_92] : memref<4x64x64xbf16, #tpu.memory_space<vmem>>, vector<1x64x64xbf16>
    %126 = vector.shape_cast %125 : vector<1x64x64xbf16> to vector<64x64xbf16>
    %127 = vector.broadcast %8 : vector<1x128xbf16> to vector<64x128xbf16>
    %128 = arith.mulf %107, %127 : vector<64x128xbf16>
    %cst_93 = arith.constant dense<0.000000e+00> : vector<64x128xf32>
    %129 = tpu.matmul %126, %128, %cst_93 {dimension_numbers = #tpu.dot_dimension_numbers<[1], [0], [0], [1], [0, 0, 1, 1], [], []>} : vector<64x64xbf16>, vector<64x128xbf16>, vector<64x128xf32> -> vector<64x128xf32>
    %130 = arith.addf %124, %129 : vector<64x128xf32>
    %c1_94 = arith.constant 1 : index
    %c0_95 = arith.constant 0 : index
    %c0_96 = arith.constant 0 : index
    %131 = vector.load %arg3[%c1_94, %c0_95, %c0_96] : memref<4x1x128xf32, #tpu.memory_space<vmem>>, vector<1x1x128xf32>
    %132 = vector.shape_cast %131 : vector<1x1x128xf32> to vector<1x128xf32>
    %133 = arith.extf %107 : vector<64x128xbf16> to vector<64x128xf32>
    %134 = vector.broadcast %132 : vector<1x128xf32> to vector<64x128xf32>
    %135 = arith.mulf %134, %133 : vector<64x128xf32>
    %136 = arith.addf %135, %130 : vector<64x128xf32>
    %c1_97 = arith.constant 1 : index
    %c0_98 = arith.constant 0 : index
    %c0_99 = arith.constant 0 : index
    %137 = vector.load %arg4[%c1_97, %c0_98, %c0_99] : memref<4x1x128xf32, #tpu.memory_space<vmem>>, vector<1x1x128xf32>
    %138 = vector.shape_cast %137 : vector<1x1x128xf32> to vector<1x128xf32>
    %139 = vector.broadcast %138 : vector<1x128xf32> to vector<64x128xf32>
    %140 = arith.addf %136, %139 : vector<64x128xf32>
    %cst_100 = arith.constant 0.000000e+00 : f32
    %141 = vector.broadcast %cst_100 : f32 to vector<64x128xf32>
    %142 = arith.maximumf %140, %141 : vector<64x128xf32>
    %143 = arith.truncf %142 : vector<64x128xf32> to vector<64x128xbf16>
    %c1_101 = arith.constant 1 : index
    %c0_102 = arith.constant 0 : index
    %c0_103 = arith.constant 0 : index
    %144 = vector.load %arg5[%c1_101, %c0_102, %c0_103] : memref<4x128x128xbf16, #tpu.memory_space<vmem>>, vector<1x128x128xbf16>
    %145 = vector.shape_cast %144 : vector<1x128x128xbf16> to vector<128x128xbf16>
    %cst_104 = arith.constant dense<0.000000e+00> : vector<64x128xf32>
    %146 = tpu.matmul %143, %145, %cst_104 {dimension_numbers = #tpu.dot_dimension_numbers<[1], [0], [0], [1], [0, 0, 1, 1], [], []>} : vector<64x128xbf16>, vector<128x128xbf16>, vector<64x128xf32> -> vector<64x128xf32>
    %c1_105 = arith.constant 1 : index
    %c0_106 = arith.constant 0 : index
    %c0_107 = arith.constant 0 : index
    %147 = vector.load %arg6[%c1_105, %c0_106, %c0_107] : memref<4x1x128xf32, #tpu.memory_space<vmem>>, vector<1x1x128xf32>
    %148 = vector.shape_cast %147 : vector<1x1x128xf32> to vector<1x128xf32>
    %149 = vector.broadcast %148 : vector<1x128xf32> to vector<64x128xf32>
    %150 = arith.addf %146, %149 : vector<64x128xf32>
    %cst_108 = arith.constant 0.000000e+00 : f32
    %151 = vector.broadcast %cst_108 : f32 to vector<64x128xf32>
    %152 = arith.maximumf %150, %151 : vector<64x128xf32>
    %153 = arith.truncf %152 : vector<64x128xf32> to vector<64x128xbf16>
    %c1_109 = arith.constant 1 : index
    %c0_110 = arith.constant 0 : index
    %c0_111 = arith.constant 0 : index
    %154 = vector.load %arg7[%c1_109, %c0_110, %c0_111] : memref<4x128x32xbf16, #tpu.memory_space<vmem>>, vector<1x128x32xbf16>
    %155 = vector.shape_cast %154 : vector<1x128x32xbf16> to vector<128x32xbf16>
    %cst_112 = arith.constant dense<0.000000e+00> : vector<64x32xf32>
    %156 = tpu.matmul %153, %155, %cst_112 {dimension_numbers = #tpu.dot_dimension_numbers<[1], [0], [0], [1], [0, 0, 1, 1], [], []>} : vector<64x128xbf16>, vector<128x32xbf16>, vector<64x32xf32> -> vector<64x32xf32>
    %c1_113 = arith.constant 1 : index
    %c0_114 = arith.constant 0 : index
    %c0_115 = arith.constant 0 : index
    %157 = vector.load %arg8[%c1_113, %c0_114, %c0_115] : memref<4x1x32xf32, #tpu.memory_space<vmem>>, vector<1x1x32xf32>
    %158 = vector.shape_cast %157 : vector<1x1x32xf32> to vector<1x32xf32>
    %159 = vector.broadcast %158 : vector<1x32xf32> to vector<64x32xf32>
    %160 = arith.addf %156, %159 : vector<64x32xf32>
    %cst_116 = arith.constant 0.000000e+00 : f32
    %161 = vector.broadcast %cst_116 : f32 to vector<64x32xf32>
    %162 = arith.maximumf %160, %161 : vector<64x32xf32>
    %163 = arith.truncf %162 : vector<64x32xf32> to vector<64x32xbf16>
    %c1_117 = arith.constant 1 : index
    %c0_118 = arith.constant 0 : index
    %c0_119 = arith.constant 0 : index
    %164 = vector.load %arg9[%c1_117, %c0_118, %c0_119] : memref<4x32x32xbf16, #tpu.memory_space<vmem>>, vector<1x32x32xbf16>
    %165 = vector.shape_cast %164 : vector<1x32x32xbf16> to vector<32x32xbf16>
    %cst_120 = arith.constant dense<0.000000e+00> : vector<64x32xf32>
    %166 = tpu.matmul %163, %165, %cst_120 {dimension_numbers = #tpu.dot_dimension_numbers<[1], [0], [0], [1], [0, 0, 1, 1], [], []>} : vector<64x32xbf16>, vector<32x32xbf16>, vector<64x32xf32> -> vector<64x32xf32>
    %c1_121 = arith.constant 1 : index
    %c0_122 = arith.constant 0 : index
    %c0_123 = arith.constant 0 : index
    %167 = vector.load %arg10[%c1_121, %c0_122, %c0_123] : memref<4x1x32xf32, #tpu.memory_space<vmem>>, vector<1x1x32xf32>
    %168 = vector.shape_cast %167 : vector<1x1x32xf32> to vector<1x32xf32>
    %169 = vector.broadcast %168 : vector<1x32xf32> to vector<64x32xf32>
    %170 = arith.addf %166, %169 : vector<64x32xf32>
    %cst_124 = arith.constant dense<0.000000e+00> : vector<1x32xf32>
    %171 = tpu.matmul %0, %170, %cst_124 {dimension_numbers = #tpu.dot_dimension_numbers<[1], [0], [0], [1], [0, 0, 1, 1], [], []>} : vector<1x64xf32>, vector<64x32xf32>, vector<1x32xf32> -> vector<1x32xf32>
    %172 = arith.mulf %170, %170 : vector<64x32xf32>
    %cst_125 = arith.constant dense<0.000000e+00> : vector<1x32xf32>
    %173 = tpu.matmul %0, %172, %cst_125 {dimension_numbers = #tpu.dot_dimension_numbers<[1], [0], [0], [1], [0, 0, 1, 1], [], []>} : vector<1x64xf32>, vector<64x32xf32>, vector<1x32xf32> -> vector<1x32xf32>
    %cst_126 = arith.constant 1.562500e-02 : f32
    %174 = vector.broadcast %cst_126 : f32 to vector<1x32xf32>
    %175 = arith.mulf %171, %174 : vector<1x32xf32>
    %cst_127 = arith.constant 1.562500e-02 : f32
    %176 = vector.broadcast %cst_127 : f32 to vector<1x32xf32>
    %177 = arith.mulf %173, %176 : vector<1x32xf32>
    %178 = arith.mulf %175, %175 : vector<1x32xf32>
    %179 = arith.subf %177, %178 : vector<1x32xf32>
    %c1_128 = arith.constant 1 : index
    %c0_129 = arith.constant 0 : index
    %c0_130 = arith.constant 0 : index
    %180 = vector.load %arg11[%c1_128, %c0_129, %c0_130] : memref<4x1x32xf32, #tpu.memory_space<vmem>>, vector<1x1x32xf32>
    %181 = vector.shape_cast %180 : vector<1x1x32xf32> to vector<1x32xf32>
    %182 = vector.broadcast %175 : vector<1x32xf32> to vector<64x32xf32>
    %183 = arith.subf %170, %182 : vector<64x32xf32>
    %184 = vector.broadcast %181 : vector<1x32xf32> to vector<64x32xf32>
    %185 = arith.mulf %184, %183 : vector<64x32xf32>
    %cst_131 = arith.constant 9.99999974E-6 : f32
    %186 = vector.broadcast %cst_131 : f32 to vector<1x32xf32>
    %187 = arith.addf %179, %186 : vector<1x32xf32>
    %188 = math.rsqrt %187 : vector<1x32xf32>
    %189 = vector.broadcast %188 : vector<1x32xf32> to vector<64x32xf32>
    %190 = arith.mulf %185, %189 : vector<64x32xf32>
    %c1_132 = arith.constant 1 : index
    %c0_133 = arith.constant 0 : index
    %c0_134 = arith.constant 0 : index
    %191 = vector.load %arg12[%c1_132, %c0_133, %c0_134] : memref<4x1x32xf32, #tpu.memory_space<vmem>>, vector<1x1x32xf32>
    %192 = vector.shape_cast %191 : vector<1x1x32xf32> to vector<1x32xf32>
    %193 = vector.broadcast %192 : vector<1x32xf32> to vector<64x32xf32>
    %194 = arith.addf %190, %193 : vector<64x32xf32>
    %cst_135 = arith.constant dense<0.000000e+00> : vector<4x32xf32>
    %195 = tpu.matmul %9, %194, %cst_135 {dimension_numbers = #tpu.dot_dimension_numbers<[1], [0], [0], [1], [0, 0, 1, 1], [], []>} : vector<4x64xf32>, vector<64x32xf32>, vector<4x32xf32> -> vector<4x32xf32>
    %c32 = arith.constant 32 : index
    %c0_136 = arith.constant 0 : index
    %196 = vector.load %arg15[%c32, %c0_136] : memref<128x32xf32, #tpu.memory_space<vmem>>, vector<32x32xf32>
    %cst_137 = arith.constant dense<0.000000e+00> : vector<4x32xf32>
    %197 = tpu.matmul %195, %196, %cst_137 {dimension_numbers = #tpu.dot_dimension_numbers<[1], [0], [0], [1], [0, 0, 1, 1], [], []>} : vector<4x32xf32>, vector<32x32xf32>, vector<4x32xf32> -> vector<4x32xf32>
    %198 = arith.addf %102, %197 : vector<4x32xf32>
    %199 = arith.truncf %194 : vector<64x32xf32> to vector<64x32xbf16>
    %c1_138 = arith.constant 1 : index
    %c0_139 = arith.constant 0 : index
    %c0_140 = arith.constant 0 : index
    %200 = vector.load %arg13[%c1_138, %c0_139, %c0_140] : memref<3x32x128xbf16, #tpu.memory_space<vmem>>, vector<1x32x128xbf16>
    %201 = vector.shape_cast %200 : vector<1x32x128xbf16> to vector<32x128xbf16>
    %cst_141 = arith.constant dense<0.000000e+00> : vector<64x128xf32>
    %202 = tpu.matmul %199, %201, %cst_141 {dimension_numbers = #tpu.dot_dimension_numbers<[1], [0], [0], [1], [0, 0, 1, 1], [], []>} : vector<64x32xbf16>, vector<32x128xbf16>, vector<64x128xf32> -> vector<64x128xf32>
    %203 = arith.truncf %202 : vector<64x128xf32> to vector<64x128xbf16>
    %c0_142 = arith.constant 0 : index
    %c0_143 = arith.constant 0 : index
    %c0_144 = arith.constant 0 : index
    %204 = vector.load %arg0[%c0_142, %c0_143, %c0_144] : memref<4x64x64xbf16, #tpu.memory_space<vmem>>, vector<1x64x64xbf16>
    %205 = vector.shape_cast %204 : vector<1x64x64xbf16> to vector<64x64xbf16>
    %206 = vector.broadcast %2 : vector<1x128xbf16> to vector<64x128xbf16>
    %207 = arith.mulf %203, %206 : vector<64x128xbf16>
    %cst_145 = arith.constant dense<0.000000e+00> : vector<64x128xf32>
    %208 = tpu.matmul %205, %207, %cst_145 {dimension_numbers = #tpu.dot_dimension_numbers<[1], [0], [0], [1], [0, 0, 1, 1], [], []>} : vector<64x64xbf16>, vector<64x128xbf16>, vector<64x128xf32> -> vector<64x128xf32>
    %c1_146 = arith.constant 1 : index
    %c0_147 = arith.constant 0 : index
    %c0_148 = arith.constant 0 : index
    %209 = vector.load %arg0[%c1_146, %c0_147, %c0_148] : memref<4x64x64xbf16, #tpu.memory_space<vmem>>, vector<1x64x64xbf16>
    %210 = vector.shape_cast %209 : vector<1x64x64xbf16> to vector<64x64xbf16>
    %211 = vector.broadcast %4 : vector<1x128xbf16> to vector<64x128xbf16>
    %212 = arith.mulf %203, %211 : vector<64x128xbf16>
    %cst_149 = arith.constant dense<0.000000e+00> : vector<64x128xf32>
    %213 = tpu.matmul %210, %212, %cst_149 {dimension_numbers = #tpu.dot_dimension_numbers<[1], [0], [0], [1], [0, 0, 1, 1], [], []>} : vector<64x64xbf16>, vector<64x128xbf16>, vector<64x128xf32> -> vector<64x128xf32>
    %214 = arith.addf %208, %213 : vector<64x128xf32>
    %c2_150 = arith.constant 2 : index
    %c0_151 = arith.constant 0 : index
    %c0_152 = arith.constant 0 : index
    %215 = vector.load %arg0[%c2_150, %c0_151, %c0_152] : memref<4x64x64xbf16, #tpu.memory_space<vmem>>, vector<1x64x64xbf16>
    %216 = vector.shape_cast %215 : vector<1x64x64xbf16> to vector<64x64xbf16>
    %217 = vector.broadcast %6 : vector<1x128xbf16> to vector<64x128xbf16>
    %218 = arith.mulf %203, %217 : vector<64x128xbf16>
    %cst_153 = arith.constant dense<0.000000e+00> : vector<64x128xf32>
    %219 = tpu.matmul %216, %218, %cst_153 {dimension_numbers = #tpu.dot_dimension_numbers<[1], [0], [0], [1], [0, 0, 1, 1], [], []>} : vector<64x64xbf16>, vector<64x128xbf16>, vector<64x128xf32> -> vector<64x128xf32>
    %220 = arith.addf %214, %219 : vector<64x128xf32>
    %c3_154 = arith.constant 3 : index
    %c0_155 = arith.constant 0 : index
    %c0_156 = arith.constant 0 : index
    %221 = vector.load %arg0[%c3_154, %c0_155, %c0_156] : memref<4x64x64xbf16, #tpu.memory_space<vmem>>, vector<1x64x64xbf16>
    %222 = vector.shape_cast %221 : vector<1x64x64xbf16> to vector<64x64xbf16>
    %223 = vector.broadcast %8 : vector<1x128xbf16> to vector<64x128xbf16>
    %224 = arith.mulf %203, %223 : vector<64x128xbf16>
    %cst_157 = arith.constant dense<0.000000e+00> : vector<64x128xf32>
    %225 = tpu.matmul %222, %224, %cst_157 {dimension_numbers = #tpu.dot_dimension_numbers<[1], [0], [0], [1], [0, 0, 1, 1], [], []>} : vector<64x64xbf16>, vector<64x128xbf16>, vector<64x128xf32> -> vector<64x128xf32>
    %226 = arith.addf %220, %225 : vector<64x128xf32>
    %c2_158 = arith.constant 2 : index
    %c0_159 = arith.constant 0 : index
    %c0_160 = arith.constant 0 : index
    %227 = vector.load %arg3[%c2_158, %c0_159, %c0_160] : memref<4x1x128xf32, #tpu.memory_space<vmem>>, vector<1x1x128xf32>
    %228 = vector.shape_cast %227 : vector<1x1x128xf32> to vector<1x128xf32>
    %229 = arith.extf %203 : vector<64x128xbf16> to vector<64x128xf32>
    %230 = vector.broadcast %228 : vector<1x128xf32> to vector<64x128xf32>
    %231 = arith.mulf %230, %229 : vector<64x128xf32>
    %232 = arith.addf %231, %226 : vector<64x128xf32>
    %c2_161 = arith.constant 2 : index
    %c0_162 = arith.constant 0 : index
    %c0_163 = arith.constant 0 : index
    %233 = vector.load %arg4[%c2_161, %c0_162, %c0_163] : memref<4x1x128xf32, #tpu.memory_space<vmem>>, vector<1x1x128xf32>
    %234 = vector.shape_cast %233 : vector<1x1x128xf32> to vector<1x128xf32>
    %235 = vector.broadcast %234 : vector<1x128xf32> to vector<64x128xf32>
    %236 = arith.addf %232, %235 : vector<64x128xf32>
    %cst_164 = arith.constant 0.000000e+00 : f32
    %237 = vector.broadcast %cst_164 : f32 to vector<64x128xf32>
    %238 = arith.maximumf %236, %237 : vector<64x128xf32>
    %239 = arith.truncf %238 : vector<64x128xf32> to vector<64x128xbf16>
    %c2_165 = arith.constant 2 : index
    %c0_166 = arith.constant 0 : index
    %c0_167 = arith.constant 0 : index
    %240 = vector.load %arg5[%c2_165, %c0_166, %c0_167] : memref<4x128x128xbf16, #tpu.memory_space<vmem>>, vector<1x128x128xbf16>
    %241 = vector.shape_cast %240 : vector<1x128x128xbf16> to vector<128x128xbf16>
    %cst_168 = arith.constant dense<0.000000e+00> : vector<64x128xf32>
    %242 = tpu.matmul %239, %241, %cst_168 {dimension_numbers = #tpu.dot_dimension_numbers<[1], [0], [0], [1], [0, 0, 1, 1], [], []>} : vector<64x128xbf16>, vector<128x128xbf16>, vector<64x128xf32> -> vector<64x128xf32>
    %c2_169 = arith.constant 2 : index
    %c0_170 = arith.constant 0 : index
    %c0_171 = arith.constant 0 : index
    %243 = vector.load %arg6[%c2_169, %c0_170, %c0_171] : memref<4x1x128xf32, #tpu.memory_space<vmem>>, vector<1x1x128xf32>
    %244 = vector.shape_cast %243 : vector<1x1x128xf32> to vector<1x128xf32>
    %245 = vector.broadcast %244 : vector<1x128xf32> to vector<64x128xf32>
    %246 = arith.addf %242, %245 : vector<64x128xf32>
    %cst_172 = arith.constant 0.000000e+00 : f32
    %247 = vector.broadcast %cst_172 : f32 to vector<64x128xf32>
    %248 = arith.maximumf %246, %247 : vector<64x128xf32>
    %249 = arith.truncf %248 : vector<64x128xf32> to vector<64x128xbf16>
    %c2_173 = arith.constant 2 : index
    %c0_174 = arith.constant 0 : index
    %c0_175 = arith.constant 0 : index
    %250 = vector.load %arg7[%c2_173, %c0_174, %c0_175] : memref<4x128x32xbf16, #tpu.memory_space<vmem>>, vector<1x128x32xbf16>
    %251 = vector.shape_cast %250 : vector<1x128x32xbf16> to vector<128x32xbf16>
    %cst_176 = arith.constant dense<0.000000e+00> : vector<64x32xf32>
    %252 = tpu.matmul %249, %251, %cst_176 {dimension_numbers = #tpu.dot_dimension_numbers<[1], [0], [0], [1], [0, 0, 1, 1], [], []>} : vector<64x128xbf16>, vector<128x32xbf16>, vector<64x32xf32> -> vector<64x32xf32>
    %c2_177 = arith.constant 2 : index
    %c0_178 = arith.constant 0 : index
    %c0_179 = arith.constant 0 : index
    %253 = vector.load %arg8[%c2_177, %c0_178, %c0_179] : memref<4x1x32xf32, #tpu.memory_space<vmem>>, vector<1x1x32xf32>
    %254 = vector.shape_cast %253 : vector<1x1x32xf32> to vector<1x32xf32>
    %255 = vector.broadcast %254 : vector<1x32xf32> to vector<64x32xf32>
    %256 = arith.addf %252, %255 : vector<64x32xf32>
    %cst_180 = arith.constant 0.000000e+00 : f32
    %257 = vector.broadcast %cst_180 : f32 to vector<64x32xf32>
    %258 = arith.maximumf %256, %257 : vector<64x32xf32>
    %259 = arith.truncf %258 : vector<64x32xf32> to vector<64x32xbf16>
    %c2_181 = arith.constant 2 : index
    %c0_182 = arith.constant 0 : index
    %c0_183 = arith.constant 0 : index
    %260 = vector.load %arg9[%c2_181, %c0_182, %c0_183] : memref<4x32x32xbf16, #tpu.memory_space<vmem>>, vector<1x32x32xbf16>
    %261 = vector.shape_cast %260 : vector<1x32x32xbf16> to vector<32x32xbf16>
    %cst_184 = arith.constant dense<0.000000e+00> : vector<64x32xf32>
    %262 = tpu.matmul %259, %261, %cst_184 {dimension_numbers = #tpu.dot_dimension_numbers<[1], [0], [0], [1], [0, 0, 1, 1], [], []>} : vector<64x32xbf16>, vector<32x32xbf16>, vector<64x32xf32> -> vector<64x32xf32>
    %c2_185 = arith.constant 2 : index
    %c0_186 = arith.constant 0 : index
    %c0_187 = arith.constant 0 : index
    %263 = vector.load %arg10[%c2_185, %c0_186, %c0_187] : memref<4x1x32xf32, #tpu.memory_space<vmem>>, vector<1x1x32xf32>
    %264 = vector.shape_cast %263 : vector<1x1x32xf32> to vector<1x32xf32>
    %265 = vector.broadcast %264 : vector<1x32xf32> to vector<64x32xf32>
    %266 = arith.addf %262, %265 : vector<64x32xf32>
    %cst_188 = arith.constant dense<0.000000e+00> : vector<1x32xf32>
    %267 = tpu.matmul %0, %266, %cst_188 {dimension_numbers = #tpu.dot_dimension_numbers<[1], [0], [0], [1], [0, 0, 1, 1], [], []>} : vector<1x64xf32>, vector<64x32xf32>, vector<1x32xf32> -> vector<1x32xf32>
    %268 = arith.mulf %266, %266 : vector<64x32xf32>
    %cst_189 = arith.constant dense<0.000000e+00> : vector<1x32xf32>
    %269 = tpu.matmul %0, %268, %cst_189 {dimension_numbers = #tpu.dot_dimension_numbers<[1], [0], [0], [1], [0, 0, 1, 1], [], []>} : vector<1x64xf32>, vector<64x32xf32>, vector<1x32xf32> -> vector<1x32xf32>
    %cst_190 = arith.constant 1.562500e-02 : f32
    %270 = vector.broadcast %cst_190 : f32 to vector<1x32xf32>
    %271 = arith.mulf %267, %270 : vector<1x32xf32>
    %cst_191 = arith.constant 1.562500e-02 : f32
    %272 = vector.broadcast %cst_191 : f32 to vector<1x32xf32>
    %273 = arith.mulf %269, %272 : vector<1x32xf32>
    %274 = arith.mulf %271, %271 : vector<1x32xf32>
    %275 = arith.subf %273, %274 : vector<1x32xf32>
    %c2_192 = arith.constant 2 : index
    %c0_193 = arith.constant 0 : index
    %c0_194 = arith.constant 0 : index
    %276 = vector.load %arg11[%c2_192, %c0_193, %c0_194] : memref<4x1x32xf32, #tpu.memory_space<vmem>>, vector<1x1x32xf32>
    %277 = vector.shape_cast %276 : vector<1x1x32xf32> to vector<1x32xf32>
    %278 = vector.broadcast %271 : vector<1x32xf32> to vector<64x32xf32>
    %279 = arith.subf %266, %278 : vector<64x32xf32>
    %280 = vector.broadcast %277 : vector<1x32xf32> to vector<64x32xf32>
    %281 = arith.mulf %280, %279 : vector<64x32xf32>
    %cst_195 = arith.constant 9.99999974E-6 : f32
    %282 = vector.broadcast %cst_195 : f32 to vector<1x32xf32>
    %283 = arith.addf %275, %282 : vector<1x32xf32>
    %284 = math.rsqrt %283 : vector<1x32xf32>
    %285 = vector.broadcast %284 : vector<1x32xf32> to vector<64x32xf32>
    %286 = arith.mulf %281, %285 : vector<64x32xf32>
    %c2_196 = arith.constant 2 : index
    %c0_197 = arith.constant 0 : index
    %c0_198 = arith.constant 0 : index
    %287 = vector.load %arg12[%c2_196, %c0_197, %c0_198] : memref<4x1x32xf32, #tpu.memory_space<vmem>>, vector<1x1x32xf32>
    %288 = vector.shape_cast %287 : vector<1x1x32xf32> to vector<1x32xf32>
    %289 = vector.broadcast %288 : vector<1x32xf32> to vector<64x32xf32>
    %290 = arith.addf %286, %289 : vector<64x32xf32>
    %cst_199 = arith.constant dense<0.000000e+00> : vector<4x32xf32>
    %291 = tpu.matmul %9, %290, %cst_199 {dimension_numbers = #tpu.dot_dimension_numbers<[1], [0], [0], [1], [0, 0, 1, 1], [], []>} : vector<4x64xf32>, vector<64x32xf32>, vector<4x32xf32> -> vector<4x32xf32>
    %c64 = arith.constant 64 : index
    %c0_200 = arith.constant 0 : index
    %292 = vector.load %arg15[%c64, %c0_200] : memref<128x32xf32, #tpu.memory_space<vmem>>, vector<32x32xf32>
    %cst_201 = arith.constant dense<0.000000e+00> : vector<4x32xf32>
    %293 = tpu.matmul %291, %292, %cst_201 {dimension_numbers = #tpu.dot_dimension_numbers<[1], [0], [0], [1], [0, 0, 1, 1], [], []>} : vector<4x32xf32>, vector<32x32xf32>, vector<4x32xf32> -> vector<4x32xf32>
    %294 = arith.addf %198, %293 : vector<4x32xf32>
    %295 = arith.truncf %290 : vector<64x32xf32> to vector<64x32xbf16>
    %c2_202 = arith.constant 2 : index
    %c0_203 = arith.constant 0 : index
    %c0_204 = arith.constant 0 : index
    %296 = vector.load %arg13[%c2_202, %c0_203, %c0_204] : memref<3x32x128xbf16, #tpu.memory_space<vmem>>, vector<1x32x128xbf16>
    %297 = vector.shape_cast %296 : vector<1x32x128xbf16> to vector<32x128xbf16>
    %cst_205 = arith.constant dense<0.000000e+00> : vector<64x128xf32>
    %298 = tpu.matmul %295, %297, %cst_205 {dimension_numbers = #tpu.dot_dimension_numbers<[1], [0], [0], [1], [0, 0, 1, 1], [], []>} : vector<64x32xbf16>, vector<32x128xbf16>, vector<64x128xf32> -> vector<64x128xf32>
    %299 = arith.truncf %298 : vector<64x128xf32> to vector<64x128xbf16>
    %c0_206 = arith.constant 0 : index
    %c0_207 = arith.constant 0 : index
    %c0_208 = arith.constant 0 : index
    %300 = vector.load %arg0[%c0_206, %c0_207, %c0_208] : memref<4x64x64xbf16, #tpu.memory_space<vmem>>, vector<1x64x64xbf16>
    %301 = vector.shape_cast %300 : vector<1x64x64xbf16> to vector<64x64xbf16>
    %302 = vector.broadcast %2 : vector<1x128xbf16> to vector<64x128xbf16>
    %303 = arith.mulf %299, %302 : vector<64x128xbf16>
    %cst_209 = arith.constant dense<0.000000e+00> : vector<64x128xf32>
    %304 = tpu.matmul %301, %303, %cst_209 {dimension_numbers = #tpu.dot_dimension_numbers<[1], [0], [0], [1], [0, 0, 1, 1], [], []>} : vector<64x64xbf16>, vector<64x128xbf16>, vector<64x128xf32> -> vector<64x128xf32>
    %c1_210 = arith.constant 1 : index
    %c0_211 = arith.constant 0 : index
    %c0_212 = arith.constant 0 : index
    %305 = vector.load %arg0[%c1_210, %c0_211, %c0_212] : memref<4x64x64xbf16, #tpu.memory_space<vmem>>, vector<1x64x64xbf16>
    %306 = vector.shape_cast %305 : vector<1x64x64xbf16> to vector<64x64xbf16>
    %307 = vector.broadcast %4 : vector<1x128xbf16> to vector<64x128xbf16>
    %308 = arith.mulf %299, %307 : vector<64x128xbf16>
    %cst_213 = arith.constant dense<0.000000e+00> : vector<64x128xf32>
    %309 = tpu.matmul %306, %308, %cst_213 {dimension_numbers = #tpu.dot_dimension_numbers<[1], [0], [0], [1], [0, 0, 1, 1], [], []>} : vector<64x64xbf16>, vector<64x128xbf16>, vector<64x128xf32> -> vector<64x128xf32>
    %310 = arith.addf %304, %309 : vector<64x128xf32>
    %c2_214 = arith.constant 2 : index
    %c0_215 = arith.constant 0 : index
    %c0_216 = arith.constant 0 : index
    %311 = vector.load %arg0[%c2_214, %c0_215, %c0_216] : memref<4x64x64xbf16, #tpu.memory_space<vmem>>, vector<1x64x64xbf16>
    %312 = vector.shape_cast %311 : vector<1x64x64xbf16> to vector<64x64xbf16>
    %313 = vector.broadcast %6 : vector<1x128xbf16> to vector<64x128xbf16>
    %314 = arith.mulf %299, %313 : vector<64x128xbf16>
    %cst_217 = arith.constant dense<0.000000e+00> : vector<64x128xf32>
    %315 = tpu.matmul %312, %314, %cst_217 {dimension_numbers = #tpu.dot_dimension_numbers<[1], [0], [0], [1], [0, 0, 1, 1], [], []>} : vector<64x64xbf16>, vector<64x128xbf16>, vector<64x128xf32> -> vector<64x128xf32>
    %316 = arith.addf %310, %315 : vector<64x128xf32>
    %c3_218 = arith.constant 3 : index
    %c0_219 = arith.constant 0 : index
    %c0_220 = arith.constant 0 : index
    %317 = vector.load %arg0[%c3_218, %c0_219, %c0_220] : memref<4x64x64xbf16, #tpu.memory_space<vmem>>, vector<1x64x64xbf16>
    %318 = vector.shape_cast %317 : vector<1x64x64xbf16> to vector<64x64xbf16>
    %319 = vector.broadcast %8 : vector<1x128xbf16> to vector<64x128xbf16>
    %320 = arith.mulf %299, %319 : vector<64x128xbf16>
    %cst_221 = arith.constant dense<0.000000e+00> : vector<64x128xf32>
    %321 = tpu.matmul %318, %320, %cst_221 {dimension_numbers = #tpu.dot_dimension_numbers<[1], [0], [0], [1], [0, 0, 1, 1], [], []>} : vector<64x64xbf16>, vector<64x128xbf16>, vector<64x128xf32> -> vector<64x128xf32>
    %322 = arith.addf %316, %321 : vector<64x128xf32>
    %c3_222 = arith.constant 3 : index
    %c0_223 = arith.constant 0 : index
    %c0_224 = arith.constant 0 : index
    %323 = vector.load %arg3[%c3_222, %c0_223, %c0_224] : memref<4x1x128xf32, #tpu.memory_space<vmem>>, vector<1x1x128xf32>
    %324 = vector.shape_cast %323 : vector<1x1x128xf32> to vector<1x128xf32>
    %325 = arith.extf %299 : vector<64x128xbf16> to vector<64x128xf32>
    %326 = vector.broadcast %324 : vector<1x128xf32> to vector<64x128xf32>
    %327 = arith.mulf %326, %325 : vector<64x128xf32>
    %328 = arith.addf %327, %322 : vector<64x128xf32>
    %c3_225 = arith.constant 3 : index
    %c0_226 = arith.constant 0 : index
    %c0_227 = arith.constant 0 : index
    %329 = vector.load %arg4[%c3_225, %c0_226, %c0_227] : memref<4x1x128xf32, #tpu.memory_space<vmem>>, vector<1x1x128xf32>
    %330 = vector.shape_cast %329 : vector<1x1x128xf32> to vector<1x128xf32>
    %331 = vector.broadcast %330 : vector<1x128xf32> to vector<64x128xf32>
    %332 = arith.addf %328, %331 : vector<64x128xf32>
    %cst_228 = arith.constant 0.000000e+00 : f32
    %333 = vector.broadcast %cst_228 : f32 to vector<64x128xf32>
    %334 = arith.maximumf %332, %333 : vector<64x128xf32>
    %335 = arith.truncf %334 : vector<64x128xf32> to vector<64x128xbf16>
    %c3_229 = arith.constant 3 : index
    %c0_230 = arith.constant 0 : index
    %c0_231 = arith.constant 0 : index
    %336 = vector.load %arg5[%c3_229, %c0_230, %c0_231] : memref<4x128x128xbf16, #tpu.memory_space<vmem>>, vector<1x128x128xbf16>
    %337 = vector.shape_cast %336 : vector<1x128x128xbf16> to vector<128x128xbf16>
    %cst_232 = arith.constant dense<0.000000e+00> : vector<64x128xf32>
    %338 = tpu.matmul %335, %337, %cst_232 {dimension_numbers = #tpu.dot_dimension_numbers<[1], [0], [0], [1], [0, 0, 1, 1], [], []>} : vector<64x128xbf16>, vector<128x128xbf16>, vector<64x128xf32> -> vector<64x128xf32>
    %c3_233 = arith.constant 3 : index
    %c0_234 = arith.constant 0 : index
    %c0_235 = arith.constant 0 : index
    %339 = vector.load %arg6[%c3_233, %c0_234, %c0_235] : memref<4x1x128xf32, #tpu.memory_space<vmem>>, vector<1x1x128xf32>
    %340 = vector.shape_cast %339 : vector<1x1x128xf32> to vector<1x128xf32>
    %341 = vector.broadcast %340 : vector<1x128xf32> to vector<64x128xf32>
    %342 = arith.addf %338, %341 : vector<64x128xf32>
    %cst_236 = arith.constant 0.000000e+00 : f32
    %343 = vector.broadcast %cst_236 : f32 to vector<64x128xf32>
    %344 = arith.maximumf %342, %343 : vector<64x128xf32>
    %345 = arith.truncf %344 : vector<64x128xf32> to vector<64x128xbf16>
    %c3_237 = arith.constant 3 : index
    %c0_238 = arith.constant 0 : index
    %c0_239 = arith.constant 0 : index
    %346 = vector.load %arg7[%c3_237, %c0_238, %c0_239] : memref<4x128x32xbf16, #tpu.memory_space<vmem>>, vector<1x128x32xbf16>
    %347 = vector.shape_cast %346 : vector<1x128x32xbf16> to vector<128x32xbf16>
    %cst_240 = arith.constant dense<0.000000e+00> : vector<64x32xf32>
    %348 = tpu.matmul %345, %347, %cst_240 {dimension_numbers = #tpu.dot_dimension_numbers<[1], [0], [0], [1], [0, 0, 1, 1], [], []>} : vector<64x128xbf16>, vector<128x32xbf16>, vector<64x32xf32> -> vector<64x32xf32>
    %c3_241 = arith.constant 3 : index
    %c0_242 = arith.constant 0 : index
    %c0_243 = arith.constant 0 : index
    %349 = vector.load %arg8[%c3_241, %c0_242, %c0_243] : memref<4x1x32xf32, #tpu.memory_space<vmem>>, vector<1x1x32xf32>
    %350 = vector.shape_cast %349 : vector<1x1x32xf32> to vector<1x32xf32>
    %351 = vector.broadcast %350 : vector<1x32xf32> to vector<64x32xf32>
    %352 = arith.addf %348, %351 : vector<64x32xf32>
    %cst_244 = arith.constant 0.000000e+00 : f32
    %353 = vector.broadcast %cst_244 : f32 to vector<64x32xf32>
    %354 = arith.maximumf %352, %353 : vector<64x32xf32>
    %355 = arith.truncf %354 : vector<64x32xf32> to vector<64x32xbf16>
    %c3_245 = arith.constant 3 : index
    %c0_246 = arith.constant 0 : index
    %c0_247 = arith.constant 0 : index
    %356 = vector.load %arg9[%c3_245, %c0_246, %c0_247] : memref<4x32x32xbf16, #tpu.memory_space<vmem>>, vector<1x32x32xbf16>
    %357 = vector.shape_cast %356 : vector<1x32x32xbf16> to vector<32x32xbf16>
    %cst_248 = arith.constant dense<0.000000e+00> : vector<64x32xf32>
    %358 = tpu.matmul %355, %357, %cst_248 {dimension_numbers = #tpu.dot_dimension_numbers<[1], [0], [0], [1], [0, 0, 1, 1], [], []>} : vector<64x32xbf16>, vector<32x32xbf16>, vector<64x32xf32> -> vector<64x32xf32>
    %c3_249 = arith.constant 3 : index
    %c0_250 = arith.constant 0 : index
    %c0_251 = arith.constant 0 : index
    %359 = vector.load %arg10[%c3_249, %c0_250, %c0_251] : memref<4x1x32xf32, #tpu.memory_space<vmem>>, vector<1x1x32xf32>
    %360 = vector.shape_cast %359 : vector<1x1x32xf32> to vector<1x32xf32>
    %361 = vector.broadcast %360 : vector<1x32xf32> to vector<64x32xf32>
    %362 = arith.addf %358, %361 : vector<64x32xf32>
    %cst_252 = arith.constant dense<0.000000e+00> : vector<1x32xf32>
    %363 = tpu.matmul %0, %362, %cst_252 {dimension_numbers = #tpu.dot_dimension_numbers<[1], [0], [0], [1], [0, 0, 1, 1], [], []>} : vector<1x64xf32>, vector<64x32xf32>, vector<1x32xf32> -> vector<1x32xf32>
    %364 = arith.mulf %362, %362 : vector<64x32xf32>
    %cst_253 = arith.constant dense<0.000000e+00> : vector<1x32xf32>
    %365 = tpu.matmul %0, %364, %cst_253 {dimension_numbers = #tpu.dot_dimension_numbers<[1], [0], [0], [1], [0, 0, 1, 1], [], []>} : vector<1x64xf32>, vector<64x32xf32>, vector<1x32xf32> -> vector<1x32xf32>
    %cst_254 = arith.constant 1.562500e-02 : f32
    %366 = vector.broadcast %cst_254 : f32 to vector<1x32xf32>
    %367 = arith.mulf %363, %366 : vector<1x32xf32>
    %cst_255 = arith.constant 1.562500e-02 : f32
    %368 = vector.broadcast %cst_255 : f32 to vector<1x32xf32>
    %369 = arith.mulf %365, %368 : vector<1x32xf32>
    %370 = arith.mulf %367, %367 : vector<1x32xf32>
    %371 = arith.subf %369, %370 : vector<1x32xf32>
    %c3_256 = arith.constant 3 : index
    %c0_257 = arith.constant 0 : index
    %c0_258 = arith.constant 0 : index
    %372 = vector.load %arg11[%c3_256, %c0_257, %c0_258] : memref<4x1x32xf32, #tpu.memory_space<vmem>>, vector<1x1x32xf32>
    %373 = vector.shape_cast %372 : vector<1x1x32xf32> to vector<1x32xf32>
    %374 = vector.broadcast %367 : vector<1x32xf32> to vector<64x32xf32>
    %375 = arith.subf %362, %374 : vector<64x32xf32>
    %376 = vector.broadcast %373 : vector<1x32xf32> to vector<64x32xf32>
    %377 = arith.mulf %376, %375 : vector<64x32xf32>
    %cst_259 = arith.constant 9.99999974E-6 : f32
    %378 = vector.broadcast %cst_259 : f32 to vector<1x32xf32>
    %379 = arith.addf %371, %378 : vector<1x32xf32>
    %380 = math.rsqrt %379 : vector<1x32xf32>
    %381 = vector.broadcast %380 : vector<1x32xf32> to vector<64x32xf32>
    %382 = arith.mulf %377, %381 : vector<64x32xf32>
    %c3_260 = arith.constant 3 : index
    %c0_261 = arith.constant 0 : index
    %c0_262 = arith.constant 0 : index
    %383 = vector.load %arg12[%c3_260, %c0_261, %c0_262] : memref<4x1x32xf32, #tpu.memory_space<vmem>>, vector<1x1x32xf32>
    %384 = vector.shape_cast %383 : vector<1x1x32xf32> to vector<1x32xf32>
    %385 = vector.broadcast %384 : vector<1x32xf32> to vector<64x32xf32>
    %386 = arith.addf %382, %385 : vector<64x32xf32>
    %cst_263 = arith.constant dense<0.000000e+00> : vector<4x32xf32>
    %387 = tpu.matmul %9, %386, %cst_263 {dimension_numbers = #tpu.dot_dimension_numbers<[1], [0], [0], [1], [0, 0, 1, 1], [], []>} : vector<4x64xf32>, vector<64x32xf32>, vector<4x32xf32> -> vector<4x32xf32>
    %c96 = arith.constant 96 : index
    %c0_264 = arith.constant 0 : index
    %388 = vector.load %arg15[%c96, %c0_264] : memref<128x32xf32, #tpu.memory_space<vmem>>, vector<32x32xf32>
    %cst_265 = arith.constant dense<0.000000e+00> : vector<4x32xf32>
    %389 = tpu.matmul %387, %388, %cst_265 {dimension_numbers = #tpu.dot_dimension_numbers<[1], [0], [0], [1], [0, 0, 1, 1], [], []>} : vector<4x32xf32>, vector<32x32xf32>, vector<4x32xf32> -> vector<4x32xf32>
    %390 = arith.addf %294, %389 : vector<4x32xf32>
    %c0_266 = arith.constant 0 : index
    %c0_267 = arith.constant 0 : index
    %391 = vector.load %arg16[%c0_266, %c0_267] : memref<1x32xf32, #tpu.memory_space<vmem>>, vector<1x32xf32>
    %392 = vector.broadcast %391 : vector<1x32xf32> to vector<4x32xf32>
    %393 = arith.addf %390, %392 : vector<4x32xf32>
    %cst_268 = arith.constant 0.000000e+00 : f32
    %394 = vector.broadcast %cst_268 : f32 to vector<4x32xf32>
    %395 = arith.maximumf %393, %394 : vector<4x32xf32>
    %c0_269 = arith.constant 0 : index
    %c0_270 = arith.constant 0 : index
    %396 = vector.load %arg17[%c0_269, %c0_270] : memref<32x32xf32, #tpu.memory_space<vmem>>, vector<32x32xf32>
    %cst_271 = arith.constant dense<0.000000e+00> : vector<4x32xf32>
    %397 = tpu.matmul %395, %396, %cst_271 {dimension_numbers = #tpu.dot_dimension_numbers<[1], [0], [0], [1], [0, 0, 1, 1], [], []>} : vector<4x32xf32>, vector<32x32xf32>, vector<4x32xf32> -> vector<4x32xf32>
    %c0_272 = arith.constant 0 : index
    %c0_273 = arith.constant 0 : index
    %398 = vector.load %arg18[%c0_272, %c0_273] : memref<1x32xf32, #tpu.memory_space<vmem>>, vector<1x32xf32>
    %399 = vector.broadcast %398 : vector<1x32xf32> to vector<4x32xf32>
    %400 = arith.addf %397, %399 : vector<4x32xf32>
    %cst_274 = arith.constant 0.000000e+00 : f32
    %401 = vector.broadcast %cst_274 : f32 to vector<4x32xf32>
    %402 = arith.maximumf %400, %401 : vector<4x32xf32>
    %c0_275 = arith.constant 0 : index
    %c0_276 = arith.constant 0 : index
    %403 = vector.load %arg19[%c0_275, %c0_276] : memref<32x32xf32, #tpu.memory_space<vmem>>, vector<32x32xf32>
    %cst_277 = arith.constant dense<0.000000e+00> : vector<4x32xf32>
    %404 = tpu.matmul %402, %403, %cst_277 {dimension_numbers = #tpu.dot_dimension_numbers<[1], [0], [0], [1], [0, 0, 1, 1], [], []>} : vector<4x32xf32>, vector<32x32xf32>, vector<4x32xf32> -> vector<4x32xf32>
    %c0_278 = arith.constant 0 : index
    %c0_279 = arith.constant 0 : index
    %405 = vector.load %arg20[%c0_278, %c0_279] : memref<1x32xf32, #tpu.memory_space<vmem>>, vector<1x32xf32>
    %406 = vector.broadcast %405 : vector<1x32xf32> to vector<4x32xf32>
    %407 = arith.addf %404, %406 : vector<4x32xf32>
    %cst_280 = arith.constant 0.000000e+00 : f32
    %408 = vector.broadcast %cst_280 : f32 to vector<4x32xf32>
    %409 = arith.maximumf %407, %408 : vector<4x32xf32>
    %c0_281 = arith.constant 0 : index
    %c0_282 = arith.constant 0 : index
    %410 = vector.load %arg21[%c0_281, %c0_282] : memref<32x1xf32, #tpu.memory_space<vmem>>, vector<32x1xf32>
    %cst_283 = arith.constant dense<0.000000e+00> : vector<4x1xf32>
    %411 = tpu.matmul %409, %410, %cst_283 {dimension_numbers = #tpu.dot_dimension_numbers<[1], [0], [0], [1], [0, 0, 1, 1], [], []>} : vector<4x32xf32>, vector<32x1xf32>, vector<4x1xf32> -> vector<4x1xf32>
    %c0_284 = arith.constant 0 : index
    %c0_285 = arith.constant 0 : index
    %412 = vector.load %arg22[%c0_284, %c0_285] : memref<1x1xf32, #tpu.memory_space<vmem>>, vector<1x1xf32>
    %413 = vector.broadcast %412 : vector<1x1xf32> to vector<4x1xf32>
    %414 = arith.addf %411, %413 : vector<4x1xf32>
    %c0_286 = arith.constant 0 : index
    %c0_287 = arith.constant 0 : index
    %415 = vector.load %arg23[%c0_286, %c0_287] : memref<4x1xf32, #tpu.memory_space<vmem>>, vector<4x1xf32>
    tpu.vector_store %arg23[%c0_286, %c0_287], %414 {strides = array<i32>} : memref<4x1xf32, #tpu.memory_space<vmem>>, vector<4x1xf32>,
    return
  }
}

</mosaic_0001>

<llo_original>
// kernel: net_gin_forward.1
$region0: #{net_gin_forward.1}
  #allocation0 [shape = 'u32[]', space=smem, size = 0x4, offset = 0x4, fixed_abs, tag = 'smem constant byte address 0x4 - core index']
  #allocation1 [shape = 'u32[144,128]{1,0:T(1,128)}', space=vmem, size = 0x12000, scoped, tag = 'internal scratch']
  #allocation2 [shape = 'f32[1,1]{1,0:T(1,128)S(1)}', space=vmem, size = 0x200, scoped, tag = 'scoped memory for net_gin_forward.1']
  %s0 = inlined_call_operand.vmem [shape: bf16[4,64,64], index: 0, kind: input, shape index: {}]
  %s1 = inlined_call_operand.vmem [shape: bf16[64,128], index: 1, kind: input, shape index: {}]
  %s2 = inlined_call_operand.vmem [shape: bf16[4,1,128], index: 2, kind: input, shape index: {}]
  %s3 = inlined_call_operand.vmem [shape: f32[4,1,128], index: 3, kind: input, shape index: {}]
  %s4 = inlined_call_operand.vmem [shape: f32[4,1,128], index: 4, kind: input, shape index: {}]
  %s5 = inlined_call_operand.vmem [shape: bf16[4,128,128], index: 5, kind: input, shape index: {}]
  %s6 = inlined_call_operand.vmem [shape: f32[4,1,128], index: 6, kind: input, shape index: {}]
  %s7 = inlined_call_operand.vmem [shape: bf16[4,128,32], index: 7, kind: input, shape index: {}]
  %s8 = inlined_call_operand.vmem [shape: f32[4,1,32], index: 8, kind: input, shape index: {}]
  %s9 = inlined_call_operand.vmem [shape: bf16[4,32,32], index: 9, kind: input, shape index: {}]
  %s10 = inlined_call_operand.vmem [shape: f32[4,1,32], index: 10, kind: input, shape index: {}]
  %s11 = inlined_call_operand.vmem [shape: f32[4,1,32], index: 11, kind: input, shape index: {}]
  %s12 = inlined_call_operand.vmem [shape: f32[4,1,32], index: 12, kind: input, shape index: {}]
  %s13 = inlined_call_operand.vmem [shape: bf16[3,32,128], index: 13, kind: input, shape index: {}]
  %s14 = inlined_call_operand.vmem [shape: f32[4,64], index: 14, kind: input, shape index: {}]
  %s15 = inlined_call_operand.vmem [shape: f32[128,32], index: 15, kind: input, shape index: {}]
  %s16 = inlined_call_operand.vmem [shape: f32[1,32], index: 16, kind: input, shape index: {}]
  %s17 = inlined_call_operand.vmem [shape: f32[32,32], index: 17, kind: input, shape index: {}]
  %s18 = inlined_call_operand.vmem [shape: f32[1,32], index: 18, kind: input, shape index: {}]
  %s19 = inlined_call_operand.vmem [shape: f32[32,32], index: 19, kind: input, shape index: {}]
  %s20 = inlined_call_operand.vmem [shape: f32[1,32], index: 20, kind: input, shape index: {}]
  %s21 = inlined_call_operand.vmem [shape: f32[32,1], index: 21, kind: input, shape index: {}]
  %s22 = inlined_call_operand.<no memory space> [shape: f32[1,1], index: 22, kind: input, shape index: {}]
  %s23 = inlined_call_operand.vmem [shape: f32[4,1], index: 23, kind: output, shape index: {}]
  %s24 = sld [smem:[#allocation0]]
  $region102: #{net_gin_forward.1} parent=0
    _
  %s26 = ssub.s32 1, %s24
  %s27 = scalar_select 0, %s26, %s24
  %v28 = vstv %s22
  %29 = vst [vmem:[#allocation2] sm:$0x1] %v28
  // Predicated region
  $region2: #{net_gin_forward.1} parent=0 // pred_check
    _
  $region3: #{net_gin_forward.1} parent=0 // pred_check_branch
    %31 = sbr.rel (0) target = $region5
  $region4: #{net_gin_forward.1} parent=0 // pred_region
    _
  $region5: #{net_gin_forward.1} parent=0 // pred_fallthru
    _
  // Predicated region
  $region6: #{net_gin_forward.1} parent=0 // pred_check
    _
  $region7: #{net_gin_forward.1} parent=0 // pred_check_branch
    %33 = sbr.rel (0) target = $region9
  $region8: #{net_gin_forward.1} parent=0 // pred_region
    _
  $region9: #{net_gin_forward.1} parent=0 // pred_fallthru
    _
  // Predicated region
  $region10: #{net_gin_forward.1} parent=0 // pred_check
    _
  $region11: #{net_gin_forward.1} parent=0 // pred_check_branch
    %35 = sbr.rel (0) target = $region13
  $region12: #{net_gin_forward.1} parent=0 // pred_region
    _
  $region13: #{net_gin_forward.1} parent=0 // pred_fallthru
    _
  // Predicated region
  $region14: #{net_gin_forward.1} parent=0 // pred_check
    _
  $region15: #{net_gin_forward.1} parent=0 // pred_check_branch
    %37 = sbr.rel (0) target = $region17
  $region16: #{net_gin_forward.1} parent=0 // pred_region
    _
  $region17: #{net_gin_forward.1} parent=0 // pred_fallthru
    _
  // Predicated region
  $region18: #{net_gin_forward.1} parent=0 // pred_check
    _
  $region19: #{net_gin_forward.1} parent=0 // pred_check_branch
    %39 = sbr.rel (0) target = $region21
  $region20: #{net_gin_forward.1} parent=0 // pred_region
    _
  $region21: #{net_gin_forward.1} parent=0 // pred_fallthru
    _
  // Predicated region
  $region22: #{net_gin_forward.1} parent=0 // pred_check
    _
  $region23: #{net_gin_forward.1} parent=0 // pred_check_branch
    %41 = sbr.rel (0) target = $region25
  $region24: #{net_gin_forward.1} parent=0 // pred_region
    _
  $region25: #{net_gin_forward.1} parent=0 // pred_fallthru
    _
  // Predicated region
  $region26: #{net_gin_forward.1} parent=0 // pred_check
    _
  $region27: #{net_gin_forward.1} parent=0 // pred_check_branch
    %43 = sbr.rel (0) target = $region29
  $region28: #{net_gin_forward.1} parent=0 // pred_region
    _
  $region29: #{net_gin_forward.1} parent=0 // pred_fallthru
    _
  // Predicated region
  $region30: #{net_gin_forward.1} parent=0 // pred_check
    _
  $region31: #{net_gin_forward.1} parent=0 // pred_check_branch
    %45 = sbr.rel (0) target = $region33
  $region32: #{net_gin_forward.1} parent=0 // pred_region
    _
  $region33: #{net_gin_forward.1} parent=0 // pred_fallthru
    _
  // Predicated region
  $region34: #{net_gin_forward.1} parent=0 // pred_check
    _
  $region35: #{net_gin_forward.1} parent=0 // pred_check_branch
    %47 = sbr.rel (0) target = $region37
  $region36: #{net_gin_forward.1} parent=0 // pred_region
    _
  $region37: #{net_gin_forward.1} parent=0 // pred_fallthru
    _
  // Predicated region
  $region38: #{net_gin_forward.1} parent=0 // pred_check
    _
  $region39: #{net_gin_forward.1} parent=0 // pred_check_branch
    %49 = sbr.rel (0) target = $region41
  $region40: #{net_gin_forward.1} parent=0 // pred_region
    _
  $region41: #{net_gin_forward.1} parent=0 // pred_fallthru
    _
  // Predicated region
  $region42: #{net_gin_forward.1} parent=0 // pred_check
    _
  $region43: #{net_gin_forward.1} parent=0 // pred_check_branch
    %51 = sbr.rel (0) target = $region45
  $region44: #{net_gin_forward.1} parent=0 // pred_region
    _
  $region45: #{net_gin_forward.1} parent=0 // pred_fallthru
    _
  // Predicated region
  $region46: #{net_gin_forward.1} parent=0 // pred_check
    _
  $region47: #{net_gin_forward.1} parent=0 // pred_check_branch
    %53 = sbr.rel (0) target = $region49
  $region48: #{net_gin_forward.1} parent=0 // pred_region
    _
  $region49: #{net_gin_forward.1} parent=0 // pred_fallthru
    _
  // Predicated region
  $region50: #{net_gin_forward.1} parent=0 // pred_check
    _
  $region51: #{net_gin_forward.1} parent=0 // pred_check_branch
    %55 = sbr.rel (0) target = $region53
  $region52: #{net_gin_forward.1} parent=0 // pred_region
    _
  $region53: #{net_gin_forward.1} parent=0 // pred_fallthru
    _
  // Predicated region
  $region54: #{net_gin_forward.1} parent=0 // pred_check
    _
  $region55: #{net_gin_forward.1} parent=0 // pred_check_branch
    %57 = sbr.rel (0) target = $region57
  $region56: #{net_gin_forward.1} parent=0 // pred_region
    _
  $region57: #{net_gin_forward.1} parent=0 // pred_fallthru
    _
  // Predicated region
  $region58: #{net_gin_forward.1} parent=0 // pred_check
    _
  $region59: #{net_gin_forward.1} parent=0 // pred_check_branch
    %59 = sbr.rel (0) target = $region61
  $region60: #{net_gin_forward.1} parent=0 // pred_region
    _
  $region61: #{net_gin_forward.1} parent=0 // pred_fallthru
    _
  // Predicated region
  $region62: #{net_gin_forward.1} parent=0 // pred_check
    _
  $region63: #{net_gin_forward.1} parent=0 // pred_check_branch
    %61 = sbr.rel (0) target = $region65
  $region64: #{net_gin_forward.1} parent=0 // pred_region
    _
  $region65: #{net_gin_forward.1} parent=0 // pred_fallthru
    _
  // Predicated region
  $region66: #{net_gin_forward.1} parent=0 // pred_check
    _
  $region67: #{net_gin_forward.1} parent=0 // pred_check_branch
    %63 = sbr.rel (0) target = $region69
  $region68: #{net_gin_forward.1} parent=0 // pred_region
    _
  $region69: #{net_gin_forward.1} parent=0 // pred_fallthru
    _
  // Predicated region
  $region70: #{net_gin_forward.1} parent=0 // pred_check
    _
  $region71: #{net_gin_forward.1} parent=0 // pred_check_branch
    %65 = sbr.rel (0) target = $region73
  $region72: #{net_gin_forward.1} parent=0 // pred_region
    _
  $region73: #{net_gin_forward.1} parent=0 // pred_fallthru
    _
  // Predicated region
  $region74: #{net_gin_forward.1} parent=0 // pred_check
    _
  $region75: #{net_gin_forward.1} parent=0 // pred_check_branch
    %67 = sbr.rel (0) target = $region77
  $region76: #{net_gin_forward.1} parent=0 // pred_region
    _
  $region77: #{net_gin_forward.1} parent=0 // pred_fallthru
    _
  // Predicated region
  $region78: #{net_gin_forward.1} parent=0 // pred_check
    _
  $region79: #{net_gin_forward.1} parent=0 // pred_check_branch
    %69 = sbr.rel (0) target = $region81
  $region80: #{net_gin_forward.1} parent=0 // pred_region
    _
  $region81: #{net_gin_forward.1} parent=0 // pred_fallthru
    _
  // Predicated region
  $region82: #{net_gin_forward.1} parent=0 // pred_check
    _
  $region83: #{net_gin_forward.1} parent=0 // pred_check_branch
    %71 = sbr.rel (0) target = $region85
  $region84: #{net_gin_forward.1} parent=0 // pred_region
    _
  $region85: #{net_gin_forward.1} parent=0 // pred_fallthru
    _
  // Predicated region
  $region86: #{net_gin_forward.1} parent=0 // pred_check
    _
  $region87: #{net_gin_forward.1} parent=0 // pred_check_branch
    %73 = sbr.rel (0) target = $region89
  $region88: #{net_gin_forward.1} parent=0 // pred_region
    _
  $region89: #{net_gin_forward.1} parent=0 // pred_fallthru
    _
  // Predicated region
  $region90: #{net_gin_forward.1} parent=0 // pred_check
    _
  $region91: #{net_gin_forward.1} parent=0 // pred_check_branch
    %75 = sbr.rel (0) target = $region93
  $region92: #{net_gin_forward.1} parent=0 // pred_region
    _
  $region93: #{net_gin_forward.1} parent=0 // pred_fallthru
    _
  %v77 = vld [vmem:[%s2] sm:$0x1]
  %s78 = scalar_lea.vmem %s2, 1
  %v79 = vld [vmem:[%s78] sm:$0x1]
  %s80 = scalar_lea.vmem %s2, 2
  %v81 = vld [vmem:[%s80] sm:$0x1]
  %s82 = scalar_lea.vmem %s2, 3
  %v83 = vld [vmem:[%s82] sm:$0x1]
  %v84 = vld [vmem:[%s14] sm:$0xf]
  %v85 = vld [vmem:[%s1] sm:$0xf]
  %v86 = vld [vmem:[%s1 + $0x4] sm:$0xf]
  %v87 = vld [vmem:[%s1 + $0x8] sm:$0xf]
  %v88 = vld [vmem:[%s1 + $0xc] sm:$0xf]
  %v89 = vld [vmem:[%s1 + $0x10] sm:$0xf]
  %v90 = vld [vmem:[%s1 + $0x14] sm:$0xf]
  %v91 = vld [vmem:[%s1 + $0x18] sm:$0xf]
  %v92 = vld [vmem:[%s1 + $0x1c] sm:$0xf]
  %v93 = vld [vmem:[%s0] sm:$0xf]
  %v94 = vld [vmem:[%s0 + $0x4] sm:$0xf]
  %v95 = vld [vmem:[%s0 + $0x8] sm:$0xf]
  %v96 = vld [vmem:[%s0 + $0xc] sm:$0xf]
  %v97 = vld [vmem:[%s0 + $0x10] sm:$0xf]
  %v98 = vld [vmem:[%s0 + $0x14] sm:$0xf]
  %v99 = vld [vmem:[%s0 + $0x18] sm:$0xf]
  %v100 = vld [vmem:[%s0 + $0x1c] sm:$0xf]
  %v102 = vpack.i.b16 %v77, %v77
  %v104 = vlaneseq
  %v105 = vshrl.u32 %v104, 7
  %v106 = vsub.s32 0, %v105
  %v107 = vrot.slane %v102, %v106
  %v109 = vunpack.c.l.b16 %v107
  %v110 = vpack.c.b16 %v109, %v109
  %v112 = vmul.bf16 %v85, %v110
  %v113 = vmul.bf16 %v86, %v110
  %v114 = vmul.bf16 %v87, %v110
  %v115 = vmul.bf16 %v88, %v110
  %v116 = vmul.bf16 %v89, %v110
  %v117 = vmul.bf16 %v90, %v110
  %v118 = vmul.bf16 %v91, %v110
  %v119 = vmul.bf16 %v92, %v110
  %s120 = scalar_lea.vmem %s0, 32
  %v121 = vld [vmem:[%s120] sm:$0xf]
  %v122 = vld [vmem:[%s120 + $0x4] sm:$0xf]
  %v123 = vld [vmem:[%s120 + $0x8] sm:$0xf]
  %v124 = vld [vmem:[%s120 + $0xc] sm:$0xf]
  %v125 = vld [vmem:[%s120 + $0x10] sm:$0xf]
  %v126 = vld [vmem:[%s120 + $0x14] sm:$0xf]
  %v127 = vld [vmem:[%s120 + $0x18] sm:$0xf]
  %v128 = vld [vmem:[%s120 + $0x1c] sm:$0xf]
  %v130 = vpack.i.b16 %v79, %v79
  %v132 = vlaneseq
  %v133 = vshrl.u32 %v132, 7
  %v134 = vsub.s32 0, %v133
  %v135 = vrot.slane %v130, %v134
  %v137 = vunpack.c.l.b16 %v135
  %v138 = vpack.c.b16 %v137, %v137
  %v140 = vmul.bf16 %v85, %v138
  %v141 = vmul.bf16 %v86, %v138
  %v142 = vmul.bf16 %v87, %v138
  %v143 = vmul.bf16 %v88, %v138
  %v144 = vmul.bf16 %v89, %v138
  %v145 = vmul.bf16 %v90, %v138
  %v146 = vmul.bf16 %v91, %v138
  %v147 = vmul.bf16 %v92, %v138
  %v156 = vunpack.c.l.b16 %v121
  %v157 = vunpack.c.l.b16 %v122
  %v158 = vunpack.c.l.b16 %v123
  %v159 = vunpack.c.l.b16 %v124
  %v160 = vunpack.c.l.b16 %v125
  %v161 = vunpack.c.l.b16 %v126
  %v162 = vunpack.c.l.b16 %v127
  %v163 = vunpack.c.l.b16 %v128
  %v164 = vpack.c.b16 %v157, %v156
  %v165 = vpack.c.b16 %v159, %v158
  %v166 = vpack.c.b16 %v161, %v160
  %v167 = vpack.c.b16 %v163, %v162
  %v176 = vunpack.c.l.b16 %v140
  %v177 = vunpack.c.l.b16 %v141
  %v178 = vunpack.c.l.b16 %v142
  %v179 = vunpack.c.l.b16 %v143
  %v180 = vunpack.c.l.b16 %v144
  %v181 = vunpack.c.l.b16 %v145
  %v182 = vunpack.c.l.b16 %v146
  %v183 = vunpack.c.l.b16 %v147
  %v184 = vpack.c.b16 %v177, %v176
  %v185 = vpack.c.b16 %v179, %v178
  %v186 = vpack.c.b16 %v181, %v180
  %v187 = vpack.c.b16 %v183, %v182
  %vm192 = vcmask 523264
  %v194 = vsel %vm192, %v164, 0
  %v197 = vsel %vm192, %v165, 0
  %v200 = vsel %vm192, %v166, 0
  %v203 = vsel %vm192, %v167, 0
  %205 = vmatprep.subr.bf16.mxu0 0
  %206 = vmatpush1.bf16.msra.mxu0 %v184
  %207 = vmatprep.subr.bf16.mxu0 0
  %208 = vmatpush1.bf16.msra.mxu0 %v185
  %209 = vmatprep.subr.bf16.mxu0 0
  %210 = vmatpush1.bf16.msra.mxu0 %v186
  %211 = vmatprep.subr.bf16.mxu0 0
  %212 = vmatpush1.bf16.msra.mxu0 %v187
  %213 = vmatprep.subr.bf16.mxu0 0
  %214 = vmatpush1.bf16.msra.mxu0 0
  %215 = vmatprep.subr.bf16.mxu0 0
  %216 = vmatpush1.bf16.msra.mxu0 0
  %217 = vmatprep.subr.bf16.mxu0 0
  %218 = vmatpush1.bf16.msra.mxu0 0
  %219 = vmatprep.subr.bf16.mxu0 0
  %220 = vmatpush1.bf16.msra.mxu0 0
  %221 = vmatprep.subr.bf16.mxu0 0
  %222 = vmatpush1.bf16.msra.mxu0 0
  %223 = vmatprep.subr.bf16.mxu0 0
  %224 = vmatpush1.bf16.msra.mxu0 0
  %225 = vmatprep.subr.bf16.mxu0 0
  %226 = vmatpush1.bf16.msra.mxu0 0
  %227 = vmatprep.subr.bf16.mxu0 0
  %228 = vmatpush1.bf16.msra.mxu0 0
  %229 = vmatprep.subr.bf16.mxu0 0
  %230 = vmatpush1.bf16.msra.mxu0 0
  %231 = vmatprep.subr.bf16.mxu0 0
  %232 = vmatpush1.bf16.msra.mxu0 0
  %233 = vmatprep.subr.bf16.mxu0 0
  %234 = vmatpush1.bf16.msra.mxu0 0
  %235 = vmatprep.subr.bf16.mxu0 0
  %236 = vmatpush1.bf16.msra.mxu0 0
  %237 = vmatprep.mubr.bf16.mxu0 0
  %238 = vmatmul.mubr.bf16.gmra.mrb[0].mxu0 %v194
  %v239 = vpop.f32.mrb[0].mxu0
  %v240 = vadd.f32 0.0, %v239
  %v241 = vpop.f32.mrb[0].mxu0
  %v242 = vpop.f32.mrb[0].mxu0
  %v243 = vadd.f32 0.0, %v242
  %v244 = vpop.f32.mrb[0].mxu0
  %245 = vmatprep.mubr.bf16.mxu0 0
  %246 = vmatmul.mubr.bf16.gmra.mrb[0].mxu0 %v197
  %v247 = vpop.f32.mrb[0].mxu0
  %v248 = vadd.f32 0.0, %v247
  %v249 = vpop.f32.mrb[0].mxu0
  %v250 = vpop.f32.mrb[0].mxu0
  %v251 = vadd.f32 0.0, %v250
  %v252 = vpop.f32.mrb[0].mxu0
  %253 = vmatprep.mubr.bf16.mxu0 0
  %254 = vmatmul.mubr.bf16.gmra.mrb[0].mxu0 %v200
  %v255 = vpop.f32.mrb[0].mxu0
  %v256 = vadd.f32 0.0, %v255
  %v257 = vpop.f32.mrb[0].mxu0
  %v258 = vpop.f32.mrb[0].mxu0
  %v259 = vadd.f32 0.0, %v258
  %v260 = vpop.f32.mrb[0].mxu0
  %261 = vmatprep.mubr.bf16.mxu0 0
  %262 = vmatmul.mubr.bf16.gmra.mrb[0].mxu0 %v203
  %v263 = vpop.f32.mrb[0].mxu0
  %v264 = vadd.f32 0.0, %v263
  %v265 = vpop.f32.mrb[0].mxu0
  %v266 = vpop.f32.mrb[0].mxu0
  %v267 = vadd.f32 0.0, %v266
  %v268 = vpop.f32.mrb[0].mxu0
  %269 = vdwg.mxu0
  %v278 = vunpack.c.l.b16 %v93
  %v279 = vunpack.c.l.b16 %v94
  %v280 = vunpack.c.l.b16 %v95
  %v281 = vunpack.c.l.b16 %v96
  %v282 = vunpack.c.l.b16 %v97
  %v283 = vunpack.c.l.b16 %v98
  %v284 = vunpack.c.l.b16 %v99
  %v285 = vunpack.c.l.b16 %v100
  %v286 = vpack.c.b16 %v279, %v278
  %v287 = vpack.c.b16 %v281, %v280
  %v288 = vpack.c.b16 %v283, %v282
  %v289 = vpack.c.b16 %v285, %v284
  %v298 = vunpack.c.l.b16 %v112
  %v299 = vunpack.c.l.b16 %v113
  %v300 = vunpack.c.l.b16 %v114
  %v301 = vunpack.c.l.b16 %v115
  %v302 = vunpack.c.l.b16 %v116
  %v303 = vunpack.c.l.b16 %v117
  %v304 = vunpack.c.l.b16 %v118
  %v305 = vunpack.c.l.b16 %v119
  %v306 = vpack.c.b16 %v299, %v298
  %v307 = vpack.c.b16 %v301, %v300
  %v308 = vpack.c.b16 %v303, %v302
  %v309 = vpack.c.b16 %v305, %v304
  %v315 = vsel %vm192, %v286, 0
  %v318 = vsel %vm192, %v287, 0
  %v321 = vsel %vm192, %v288, 0
  %v324 = vsel %vm192, %v289, 0
  %326 = vmatprep.subr.bf16.mxu0 0
  %327 = vmatpush1.bf16.msra.mxu0 %v306
  %328 = vmatprep.subr.bf16.mxu0 0
  %329 = vmatpush1.bf16.msra.mxu0 %v307
  %330 = vmatprep.subr.bf16.mxu0 0
  %331 = vmatpush1.bf16.msra.mxu0 %v308
  %332 = vmatprep.subr.bf16.mxu0 0
  %333 = vmatpush1.bf16.msra.mxu0 %v309
  %334 = vmatprep.subr.bf16.mxu0 0
  %335 = vmatpush1.bf16.msra.mxu0 0
  %336 = vmatprep.subr.bf16.mxu0 0
  %337 = vmatpush1.bf16.msra.mxu0 0
  %338 = vmatprep.subr.bf16.mxu0 0
  %339 = vmatpush1.bf16.msra.mxu0 0
  %340 = vmatprep.subr.bf16.mxu0 0
  %341 = vmatpush1.bf16.msra.mxu0 0
  %342 = vmatprep.subr.bf16.mxu0 0
  %343 = vmatpush1.bf16.msra.mxu0 0
  %344 = vmatprep.subr.bf16.mxu0 0
  %345 = vmatpush1.bf16.msra.mxu0 0
  %346 = vmatprep.subr.bf16.mxu0 0
  %347 = vmatpush1.bf16.msra.mxu0 0
  %348 = vmatprep.subr.bf16.mxu0 0
  %349 = vmatpush1.bf16.msra.mxu0 0
  %350 = vmatprep.subr.bf16.mxu0 0
  %351 = vmatpush1.bf16.msra.mxu0 0
  %352 = vmatprep.subr.bf16.mxu0 0
  %353 = vmatpush1.bf16.msra.mxu0 0
  %354 = vmatprep.subr.bf16.mxu0 0
  %355 = vmatpush1.bf16.msra.mxu0 0
  %356 = vmatprep.subr.bf16.mxu0 0
  %357 = vmatpush1.bf16.msra.mxu0 0
  %358 = vmatprep.mubr.bf16.mxu0 0
  %359 = vmatmul.mubr.bf16.gmra.mrb[0].mxu0 %v315
  %v360 = vpop.f32.mrb[0].mxu0
  %v361 = vadd.f32 %v240, %v360
  %v362 = vpop.f32.mrb[0].mxu0
  %v363 = vpop.f32.mrb[0].mxu0
  %v364 = vadd.f32 %v243, %v363
  %v365 = vpop.f32.mrb[0].mxu0
  %366 = vmatprep.mubr.bf16.mxu0 0
  %367 = vmatmul.mubr.bf16.gmra.mrb[0].mxu0 %v318
  %v368 = vpop.f32.mrb[0].mxu0
  %v369 = vadd.f32 %v248, %v368
  %v370 = vpop.f32.mrb[0].mxu0
  %v371 = vpop.f32.mrb[0].mxu0
  %v372 = vadd.f32 %v251, %v371
  %v373 = vpop.f32.mrb[0].mxu0
  %374 = vmatprep.mubr.bf16.mxu0 0
  %375 = vmatmul.mubr.bf16.gmra.mrb[0].mxu0 %v321
  %v376 = vpop.f32.mrb[0].mxu0
  %v377 = vadd.f32 %v256, %v376
  %v378 = vpop.f32.mrb[0].mxu0
  %v379 = vpop.f32.mrb[0].mxu0
  %v380 = vadd.f32 %v259, %v379
  %v381 = vpop.f32.mrb[0].mxu0
  %382 = vmatprep.mubr.bf16.mxu0 0
  %383 = vmatmul.mubr.bf16.gmra.mrb[0].mxu0 %v324
  %v384 = vpop.f32.mrb[0].mxu0
  %v385 = vadd.f32 %v264, %v384
  %v386 = vpop.f32.mrb[0].mxu0
  %v387 = vpop.f32.mrb[0].mxu0
  %v388 = vadd.f32 %v267, %v387
  %v389 = vpop.f32.mrb[0].mxu0
  %390 = vdwg.mxu0
  %s391 = scalar_lea.vmem %s0, 64
  %v392 = vld [vmem:[%s391] sm:$0xf]
  %v393 = vld [vmem:[%s391 + $0x4] sm:$0xf]
  %v394 = vld [vmem:[%s391 + $0x8] sm:$0xf]
  %v395 = vld [vmem:[%s391 + $0xc] sm:$0xf]
  %v396 = vld [vmem:[%s391 + $0x10] sm:$0xf]
  %v397 = vld [vmem:[%s391 + $0x14] sm:$0xf]
  %v398 = vld [vmem:[%s391 + $0x18] sm:$0xf]
  %v399 = vld [vmem:[%s391 + $0x1c] sm:$0xf]
  %v401 = vpack.i.b16 %v81, %v81
  %v403 = vlaneseq
  %v404 = vshrl.u32 %v403, 7
  %v405 = vsub.s32 0, %v404
  %v406 = vrot.slane %v401, %v405
  %v408 = vunpack.c.l.b16 %v406
  %v409 = vpack.c.b16 %v408, %v408
  %v411 = vmul.bf16 %v85, %v409
  %v412 = vmul.bf16 %v86, %v409
  %v413 = vmul.bf16 %v87, %v409
  %v414 = vmul.bf16 %v88, %v409
  %v415 = vmul.bf16 %v89, %v409
  %v416 = vmul.bf16 %v90, %v409
  %v417 = vmul.bf16 %v91, %v409
  %v418 = vmul.bf16 %v92, %v409
  %v427 = vunpack.c.l.b16 %v392
  %v428 = vunpack.c.l.b16 %v393
  %v429 = vunpack.c.l.b16 %v394
  %v430 = vunpack.c.l.b16 %v395
  %v431 = vunpack.c.l.b16 %v396
  %v432 = vunpack.c.l.b16 %v397
  %v433 = vunpack.c.l.b16 %v398
  %v434 = vunpack.c.l.b16 %v399
  %v435 = vpack.c.b16 %v428, %v427
  %v436 = vpack.c.b16 %v430, %v429
  %v437 = vpack.c.b16 %v432, %v431
  %v438 = vpack.c.b16 %v434, %v433
  %v447 = vunpack.c.l.b16 %v411
  %v448 = vunpack.c.l.b16 %v412
  %v449 = vunpack.c.l.b16 %v413
  %v450 = vunpack.c.l.b16 %v414
  %v451 = vunpack.c.l.b16 %v415
  %v452 = vunpack.c.l.b16 %v416
  %v453 = vunpack.c.l.b16 %v417
  %v454 = vunpack.c.l.b16 %v418
  %v455 = vpack.c.b16 %v448, %v447
  %v456 = vpack.c.b16 %v450, %v449
  %v457 = vpack.c.b16 %v452, %v451
  %v458 = vpack.c.b16 %v454, %v453
  %v464 = vsel %vm192, %v435, 0
  %v467 = vsel %vm192, %v436, 0
  %v470 = vsel %vm192, %v437, 0
  %v473 = vsel %vm192, %v438, 0
  %475 = vmatprep.subr.bf16.mxu0 0
  %476 = vmatpush1.bf16.msra.mxu0 %v455
  %477 = vmatprep.subr.bf16.mxu0 0
  %478 = vmatpush1.bf16.msra.mxu0 %v456
  %479 = vmatprep.subr.bf16.mxu0 0
  %480 = vmatpush1.bf16.msra.mxu0 %v457
  %481 = vmatprep.subr.bf16.mxu0 0
  %482 = vmatpush1.bf16.msra.mxu0 %v458
  %483 = vmatprep.subr.bf16.mxu0 0
  %484 = vmatpush1.bf16.msra.mxu0 0
  %485 = vmatprep.subr.bf16.mxu0 0
  %486 = vmatpush1.bf16.msra.mxu0 0
  %487 = vmatprep.subr.bf16.mxu0 0
  %488 = vmatpush1.bf16.msra.mxu0 0
  %489 = vmatprep.subr.bf16.mxu0 0
  %490 = vmatpush1.bf16.msra.mxu0 0
  %491 = vmatprep.subr.bf16.mxu0 0
  %492 = vmatpush1.bf16.msra.mxu0 0
  %493 = vmatprep.subr.bf16.mxu0 0
  %494 = vmatpush1.bf16.msra.mxu0 0
  %495 = vmatprep.subr.bf16.mxu0 0
  %496 = vmatpush1.bf16.msra.mxu0 0
  %497 = vmatprep.subr.bf16.mxu0 0
  %498 = vmatpush1.bf16.msra.mxu0 0
  %499 = vmatprep.subr.bf16.mxu0 0
  %500 = vmatpush1.bf16.msra.mxu0 0
  %501 = vmatprep.subr.bf16.mxu0 0
  %502 = vmatpush1.bf16.msra.mxu0 0
  %503 = vmatprep.subr.bf16.mxu0 0
  %504 = vmatpush1.bf16.msra.mxu0 0
  %505 = vmatprep.subr.bf16.mxu0 0
  %506 = vmatpush1.bf16.msra.mxu0 0
  %507 = vmatprep.mubr.bf16.mxu0 0
  %508 = vmatmul.mubr.bf16.gmra.mrb[0].mxu0 %v464
  %v509 = vpop.f32.mrb[0].mxu0
  %v510 = vadd.f32 0.0, %v509
  %v511 = vpop.f32.mrb[0].mxu0
  %v512 = vpop.f32.mrb[0].mxu0
  %v513 = vadd.f32 0.0, %v512
  %v514 = vpop.f32.mrb[0].mxu0
  %515 = vmatprep.mubr.bf16.mxu0 0
  %516 = vmatmul.mubr.bf16.gmra.mrb[0].mxu0 %v467
  %v517 = vpop.f32.mrb[0].mxu0
  %v518 = vadd.f32 0.0, %v517
  %v519 = vpop.f32.mrb[0].mxu0
  %v520 = vpop.f32.mrb[0].mxu0
  %v521 = vadd.f32 0.0, %v520
  %v522 = vpop.f32.mrb[0].mxu0
  %523 = vmatprep.mubr.bf16.mxu0 0
  %524 = vmatmul.mubr.bf16.gmra.mrb[0].mxu0 %v470
  %v525 = vpop.f32.mrb[0].mxu0
  %v526 = vadd.f32 0.0, %v525
  %v527 = vpop.f32.mrb[0].mxu0
  %v528 = vpop.f32.mrb[0].mxu0
  %v529 = vadd.f32 0.0, %v528
  %v530 = vpop.f32.mrb[0].mxu0
  %531 = vmatprep.mubr.bf16.mxu0 0
  %532 = vmatmul.mubr.bf16.gmra.mrb[0].mxu0 %v473
  %v533 = vpop.f32.mrb[0].mxu0
  %v534 = vadd.f32 0.0, %v533
  %v535 = vpop.f32.mrb[0].mxu0
  %v536 = vpop.f32.mrb[0].mxu0
  %v537 = vadd.f32 0.0, %v536
  %v538 = vpop.f32.mrb[0].mxu0
  %539 = vdwg.mxu0
  %v540 = vadd.f32 %v361, %v510
  %v541 = vadd.f32 %v364, %v513
  %v542 = vadd.f32 %v369, %v518
  %v543 = vadd.f32 %v372, %v521
  %v544 = vadd.f32 %v377, %v526
  %v545 = vadd.f32 %v380, %v529
  %v546 = vadd.f32 %v385, %v534
  %v547 = vadd.f32 %v388, %v537
  %s548 = scalar_lea.vmem %s0, 96
  %v549 = vld [vmem:[%s548] sm:$0xf]
  %v550 = vld [vmem:[%s548 + $0x4] sm:$0xf]
  %v551 = vld [vmem:[%s548 + $0x8] sm:$0xf]
  %v552 = vld [vmem:[%s548 + $0xc] sm:$0xf]
  %v553 = vld [vmem:[%s548 + $0x10] sm:$0xf]
  %v554 = vld [vmem:[%s548 + $0x14] sm:$0xf]
  %v555 = vld [vmem:[%s548 + $0x18] sm:$0xf]
  %v556 = vld [vmem:[%s548 + $0x1c] sm:$0xf]
  %v558 = vpack.i.b16 %v83, %v83
  %v560 = vlaneseq
  %v561 = vshrl.u32 %v560, 7
  %v562 = vsub.s32 0, %v561
  %v563 = vrot.slane %v558, %v562
  %v565 = vunpack.c.l.b16 %v563
  %v566 = vpack.c.b16 %v565, %v565
  %v568 = vmul.bf16 %v85, %v566
  %v569 = vmul.bf16 %v86, %v566
  %v570 = vmul.bf16 %v87, %v566
  %v571 = vmul.bf16 %v88, %v566
  %v572 = vmul.bf16 %v89, %v566
  %v573 = vmul.bf16 %v90, %v566
  %v574 = vmul.bf16 %v91, %v566
  %v575 = vmul.bf16 %v92, %v566
  %v584 = vunpack.c.l.b16 %v549
  %v585 = vunpack.c.l.b16 %v550
  %v586 = vunpack.c.l.b16 %v551
  %v587 = vunpack.c.l.b16 %v552
  %v588 = vunpack.c.l.b16 %v553
  %v589 = vunpack.c.l.b16 %v554
  %v590 = vunpack.c.l.b16 %v555
  %v591 = vunpack.c.l.b16 %v556
  %v592 = vpack.c.b16 %v585, %v584
  %v593 = vpack.c.b16 %v587, %v586
  %v594 = vpack.c.b16 %v589, %v588
  %v595 = vpack.c.b16 %v591, %v590
  %v604 = vunpack.c.l.b16 %v568
  %v605 = vunpack.c.l.b16 %v569
  %v606 = vunpack.c.l.b16 %v570
  %v607 = vunpack.c.l.b16 %v571
  %v608 = vunpack.c.l.b16 %v572
  %v609 = vunpack.c.l.b16 %v573
  %v610 = vunpack.c.l.b16 %v574
  %v611 = vunpack.c.l.b16 %v575
  %v612 = vpack.c.b16 %v605, %v604
  %v613 = vpack.c.b16 %v607, %v606
  %v614 = vpack.c.b16 %v609, %v608
  %v615 = vpack.c.b16 %v611, %v610
  %v621 = vsel %vm192, %v592, 0
  %v624 = vsel %vm192, %v593, 0
  %v627 = vsel %vm192, %v594, 0
  %v630 = vsel %vm192, %v595, 0
  %632 = vmatprep.subr.bf16.mxu0 0
  %633 = vmatpush1.bf16.msra.mxu0 %v612
  %634 = vmatprep.subr.bf16.mxu0 0
  %635 = vmatpush1.bf16.msra.mxu0 %v613
  %636 = vmatprep.subr.bf16.mxu0 0
  %637 = vmatpush1.bf16.msra.mxu0 %v614
  %638 = vmatprep.subr.bf16.mxu0 0
  %639 = vmatpush1.bf16.msra.mxu0 %v615
  %640 = vmatprep.subr.bf16.mxu0 0
  %641 = vmatpush1.bf16.msra.mxu0 0
  %642 = vmatprep.subr.bf16.mxu0 0
  %643 = vmatpush1.bf16.msra.mxu0 0
  %644 = vmatprep.subr.bf16.mxu0 0
  %645 = vmatpush1.bf16.msra.mxu0 0
  %646 = vmatprep.subr.bf16.mxu0 0
  %647 = vmatpush1.bf16.msra.mxu0 0
  %648 = vmatprep.subr.bf16.mxu0 0
  %649 = vmatpush1.bf16.msra.mxu0 0
  %650 = vmatprep.subr.bf16.mxu0 0
  %651 = vmatpush1.bf16.msra.mxu0 0
  %652 = vmatprep.subr.bf16.mxu0 0
  %653 = vmatpush1.bf16.msra.mxu0 0
  %654 = vmatprep.subr.bf16.mxu0 0
  %655 = vmatpush1.bf16.msra.mxu0 0
  %656 = vmatprep.subr.bf16.mxu0 0
  %657 = vmatpush1.bf16.msra.mxu0 0
  %658 = vmatprep.subr.bf16.mxu0 0
  %659 = vmatpush1.bf16.msra.mxu0 0
  %660 = vmatprep.subr.bf16.mxu0 0
  %661 = vmatpush1.bf16.msra.mxu0 0
  %662 = vmatprep.subr.bf16.mxu0 0
  %663 = vmatpush1.bf16.msra.mxu0 0
  %664 = vmatprep.mubr.bf16.mxu0 0
  %665 = vmatmul.mubr.bf16.gmra.mrb[0].mxu0 %v621
  %v666 = vpop.f32.mrb[0].mxu0
  %v667 = vadd.f32 0.0, %v666
  %v668 = vpop.f32.mrb[0].mxu0
  %v669 = vpop.f32.mrb[0].mxu0
  %v670 = vadd.f32 0.0, %v669
  %v671 = vpop.f32.mrb[0].mxu0
  %672 = vmatprep.mubr.bf16.mxu0 0
  %673 = vmatmul.mubr.bf16.gmra.mrb[0].mxu0 %v624
  %v674 = vpop.f32.mrb[0].mxu0
  %v675 = vadd.f32 0.0, %v674
  %v676 = vpop.f32.mrb[0].mxu0
  %v677 = vpop.f32.mrb[0].mxu0
  %v678 = vadd.f32 0.0, %v677
  %v679 = vpop.f32.mrb[0].mxu0
  %680 = vmatprep.mubr.bf16.mxu0 0
  %681 = vmatmul.mubr.bf16.gmra.mrb[0].mxu0 %v627
  %v682 = vpop.f32.mrb[0].mxu0
  %v683 = vadd.f32 0.0, %v682
  %v684 = vpop.f32.mrb[0].mxu0
  %v685 = vpop.f32.mrb[0].mxu0
  %v686 = vadd.f32 0.0, %v685
  %v687 = vpop.f32.mrb[0].mxu0
  %688 = vmatprep.mubr.bf16.mxu0 0
  %689 = vmatmul.mubr.bf16.gmra.mrb[0].mxu0 %v630
  %v690 = vpop.f32.mrb[0].mxu0
  %v691 = vadd.f32 0.0, %v690
  %v692 = vpop.f32.mrb[0].mxu0
  %v693 = vpop.f32.mrb[0].mxu0
  %v694 = vadd.f32 0.0, %v693
  %v695 = vpop.f32.mrb[0].mxu0
  %696 = vdwg.mxu0
  %v697 = vadd.f32 %v540, %v667
  %v698 = vadd.f32 %v541, %v670
  %v699 = vadd.f32 %v542, %v675
  %v700 = vadd.f32 %v543, %v678
  %v701 = vadd.f32 %v544, %v683
  %v702 = vadd.f32 %v545, %v686
  %v703 = vadd.f32 %v546, %v691
  %v704 = vadd.f32 %v547, %v694
  %v705 = vld [vmem:[%s3] sm:$0x1]
  %v706 = vunpack.c.l.bf16 %v85
  %v707 = vunpack.c.l.bf16 %v86
  %v708 = vunpack.c.l.bf16 %v87
  %v709 = vunpack.c.l.bf16 %v88
  %v710 = vunpack.c.l.bf16 %v89
  %v711 = vunpack.c.l.bf16 %v90
  %v712 = vunpack.c.l.bf16 %v91
  %v713 = vunpack.c.l.bf16 %v92
  %v715 = vlaneseq
  %v716 = vshrl.u32 %v715, 7
  %v717 = vsub.s32 0, %v716
  %v718 = vrot.slane %v705, %v717
  %v720 = vmul.f32 %v718, %v706
  %v721 = vmul.f32 %v718, %v707
  %v722 = vmul.f32 %v718, %v708
  %v723 = vmul.f32 %v718, %v709
  %v724 = vmul.f32 %v718, %v710
  %v725 = vmul.f32 %v718, %v711
  %v726 = vmul.f32 %v718, %v712
  %v727 = vmul.f32 %v718, %v713
  %v728 = vadd.f32 %v720, %v697
  %v729 = vadd.f32 %v721, %v698
  %v730 = vadd.f32 %v722, %v699
  %v731 = vadd.f32 %v723, %v700
  %v732 = vadd.f32 %v724, %v701
  %v733 = vadd.f32 %v725, %v702
  %v734 = vadd.f32 %v726, %v703
  %v735 = vadd.f32 %v727, %v704
  %v736 = vld [vmem:[%s4] sm:$0x1]
  %v738 = vlaneseq
  %v739 = vshrl.u32 %v738, 7
  %v740 = vsub.s32 0, %v739
  %v741 = vrot.slane %v736, %v740
  %v743 = vadd.f32 %v728, %v741
  %v744 = vadd.f32 %v729, %v741
  %v745 = vadd.f32 %v730, %v741
  %v746 = vadd.f32 %v731, %v741
  %v747 = vadd.f32 %v732, %v741
  %v748 = vadd.f32 %v733, %v741
  %v749 = vadd.f32 %v734, %v741
  %v750 = vadd.f32 %v735, %v741
  %v751 = vmax.f32 %v743, 0.0
  %v752 = vmax.f32 %v744, 0.0
  %v753 = vmax.f32 %v745, 0.0
  %v754 = vmax.f32 %v746, 0.0
  %v755 = vmax.f32 %v747, 0.0
  %v756 = vmax.f32 %v748, 0.0
  %v757 = vmax.f32 %v749, 0.0
  %v758 = vmax.f32 %v750, 0.0
  %v759 = vpack.c.bf16 %v752, %v751
  %v760 = vpack.c.bf16 %v754, %v753
  %v761 = vpack.c.bf16 %v756, %v755
  %v762 = vpack.c.bf16 %v758, %v757
  %v763 = vld [vmem:[%s5] sm:$0xf]
  %v764 = vld [vmem:[%s5 + $0x4] sm:$0xf]
  %v765 = vld [vmem:[%s5 + $0x8] sm:$0xf]
  %v766 = vld [vmem:[%s5 + $0xc] sm:$0xf]
  %v767 = vld [vmem:[%s5 + $0x10] sm:$0xf]
  %v768 = vld [vmem:[%s5 + $0x14] sm:$0xf]
  %v769 = vld [vmem:[%s5 + $0x18] sm:$0xf]
  %v770 = vld [vmem:[%s5 + $0x1c] sm:$0xf]
  %v771 = vld [vmem:[%s5 + $0x20] sm:$0xf]
  %v772 = vld [vmem:[%s5 + $0x24] sm:$0xf]
  %v773 = vld [vmem:[%s5 + $0x28] sm:$0xf]
  %v774 = vld [vmem:[%s5 + $0x2c] sm:$0xf]
  %v775 = vld [vmem:[%s5 + $0x30] sm:$0xf]
  %v776 = vld [vmem:[%s5 + $0x34] sm:$0xf]
  %v777 = vld [vmem:[%s5 + $0x38] sm:$0xf]
  %v778 = vld [vmem:[%s5 + $0x3c] sm:$0xf]
  %v779 = vld [vmem:[%s6] sm:$0x1]
  %v781 = vlaneseq
  %v782 = vshrl.u32 %v781, 7
  %v783 = vsub.s32 0, %v782
  %v784 = vrot.slane %v779, %v783
  %v802 = vunpack.c.l.b16 %v763
  %v803 = vunpack.c.l.b16 %v764
  %v804 = vunpack.c.l.b16 %v765
  %v805 = vunpack.c.l.b16 %v766
  %v806 = vunpack.c.l.b16 %v767
  %v807 = vunpack.c.l.b16 %v768
  %v808 = vunpack.c.l.b16 %v769
  %v809 = vunpack.c.l.b16 %v770
  %v810 = vunpack.c.l.b16 %v771
  %v811 = vunpack.c.l.b16 %v772
  %v812 = vunpack.c.l.b16 %v773
  %v813 = vunpack.c.l.b16 %v774
  %v814 = vunpack.c.l.b16 %v775
  %v815 = vunpack.c.l.b16 %v776
  %v816 = vunpack.c.l.b16 %v777
  %v817 = vunpack.c.l.b16 %v778
  %v818 = vpack.c.b16 %v803, %v802
  %v819 = vpack.c.b16 %v805, %v804
  %v820 = vpack.c.b16 %v807, %v806
  %v821 = vpack.c.b16 %v809, %v808
  %v822 = vpack.c.b16 %v811, %v810
  %v823 = vpack.c.b16 %v813, %v812
  %v824 = vpack.c.b16 %v815, %v814
  %v825 = vpack.c.b16 %v817, %v816
  %834 = vmatprep.subr.bf16.mxu0 0
  %835 = vmatpush1.bf16.msra.mxu0 %v818
  %836 = vmatprep.subr.bf16.mxu0 0
  %837 = vmatpush1.bf16.msra.mxu0 %v819
  %838 = vmatprep.subr.bf16.mxu0 0
  %839 = vmatpush1.bf16.msra.mxu0 %v820
  %840 = vmatprep.subr.bf16.mxu0 0
  %841 = vmatpush1.bf16.msra.mxu0 %v821
  %842 = vmatprep.subr.bf16.mxu0 0
  %843 = vmatpush1.bf16.msra.mxu0 %v822
  %844 = vmatprep.subr.bf16.mxu0 0
  %845 = vmatpush1.bf16.msra.mxu0 %v823
  %846 = vmatprep.subr.bf16.mxu0 0
  %847 = vmatpush1.bf16.msra.mxu0 %v824
  %848 = vmatprep.subr.bf16.mxu0 0
  %849 = vmatpush1.bf16.msra.mxu0 %v825
  %850 = vmatprep.subr.bf16.mxu0 0
  %851 = vmatpush1.bf16.msra.mxu0 0
  %852 = vmatprep.subr.bf16.mxu0 0
  %853 = vmatpush1.bf16.msra.mxu0 0
  %854 = vmatprep.subr.bf16.mxu0 0
  %855 = vmatpush1.bf16.msra.mxu0 0
  %856 = vmatprep.subr.bf16.mxu0 0
  %857 = vmatpush1.bf16.msra.mxu0 0
  %858 = vmatprep.subr.bf16.mxu0 0
  %859 = vmatpush1.bf16.msra.mxu0 0
  %860 = vmatprep.subr.bf16.mxu0 0
  %861 = vmatpush1.bf16.msra.mxu0 0
  %862 = vmatprep.subr.bf16.mxu0 0
  %863 = vmatpush1.bf16.msra.mxu0 0
  %864 = vmatprep.subr.bf16.mxu0 0
  %865 = vmatpush1.bf16.msra.mxu0 0
  %866 = vmatprep.mubr.bf16.mxu0 0
  %867 = vmatmul.mubr.bf16.gmra.mrb[0].mxu0 %v759
  %v868 = vpop.f32.mrb[0].mxu0
  %v869 = vadd.f32 %v784, %v868
  %v870 = vpop.f32.mrb[0].mxu0
  %v871 = vpop.f32.mrb[0].mxu0
  %v872 = vadd.f32 %v784, %v871
  %v873 = vpop.f32.mrb[0].mxu0
  %874 = vmatprep.mubr.bf16.mxu0 0
  %875 = vmatmul.mubr.bf16.gmra.mrb[0].mxu0 %v760
  %v876 = vpop.f32.mrb[0].mxu0
  %v877 = vadd.f32 %v784, %v876
  %v878 = vpop.f32.mrb[0].mxu0
  %v879 = vpop.f32.mrb[0].mxu0
  %v880 = vadd.f32 %v784, %v879
  %v881 = vpop.f32.mrb[0].mxu0
  %882 = vmatprep.mubr.bf16.mxu0 0
  %883 = vmatmul.mubr.bf16.gmra.mrb[0].mxu0 %v761
  %v884 = vpop.f32.mrb[0].mxu0
  %v885 = vadd.f32 %v784, %v884
  %v886 = vpop.f32.mrb[0].mxu0
  %v887 = vpop.f32.mrb[0].mxu0
  %v888 = vadd.f32 %v784, %v887
  %v889 = vpop.f32.mrb[0].mxu0
  %890 = vmatprep.mubr.bf16.mxu0 0
  %891 = vmatmul.mubr.bf16.gmra.mrb[0].mxu0 %v762
  %v892 = vpop.f32.mrb[0].mxu0
  %v893 = vadd.f32 %v784, %v892
  %v894 = vpop.f32.mrb[0].mxu0
  %v895 = vpop.f32.mrb[0].mxu0
  %v896 = vadd.f32 %v784, %v895
  %v897 = vpop.f32.mrb[0].mxu0
  %898 = vdwg.mxu0
  %v899 = vmax.f32 %v869, 0.0
  %v900 = vmax.f32 %v872, 0.0
  %v901 = vmax.f32 %v877, 0.0
  %v902 = vmax.f32 %v880, 0.0
  %v903 = vmax.f32 %v885, 0.0
  %v904 = vmax.f32 %v888, 0.0
  %v905 = vmax.f32 %v893, 0.0
  %v906 = vmax.f32 %v896, 0.0
  %v907 = vpack.c.bf16 %v900, %v899
  %v908 = vpack.c.bf16 %v902, %v901
  %v909 = vpack.c.bf16 %v904, %v903
  %v910 = vpack.c.bf16 %v906, %v905
  %v911 = vld [vmem:[%s7] sm:$0xf]
  %v912 = vld [vmem:[%s7 + $0x4] sm:$0xf]
  %v913 = vld [vmem:[%s7 + $0x8] sm:$0xf]
  %v914 = vld [vmem:[%s7 + $0xc] sm:$0xf]
  %v915 = vld [vmem:[%s7 + $0x10] sm:$0xf]
  %v916 = vld [vmem:[%s7 + $0x14] sm:$0xf]
  %v917 = vld [vmem:[%s7 + $0x18] sm:$0xf]
  %v918 = vld [vmem:[%s7 + $0x1c] sm:$0xf]
  %v919 = vld [vmem:[%s7 + $0x20] sm:$0xf]
  %v920 = vld [vmem:[%s7 + $0x24] sm:$0xf]
  %v921 = vld [vmem:[%s7 + $0x28] sm:$0xf]
  %v922 = vld [vmem:[%s7 + $0x2c] sm:$0xf]
  %v923 = vld [vmem:[%s7 + $0x30] sm:$0xf]
  %v924 = vld [vmem:[%s7 + $0x34] sm:$0xf]
  %v925 = vld [vmem:[%s7 + $0x38] sm:$0xf]
  %v926 = vld [vmem:[%s7 + $0x3c] sm:$0xf]
  %v927 = vld [vmem:[%s8] sm:$0x1]
  %v929 = vlaneseq
  %v930 = vshrl.u32 %v929, 7
  %v931 = vsub.s32 0, %v930
  %v932 = vrot.slane %v927, %v931
  %v950 = vunpack.c.l.b16 %v911
  %v951 = vunpack.c.l.b16 %v912
  %v952 = vunpack.c.l.b16 %v913
  %v953 = vunpack.c.l.b16 %v914
  %v954 = vunpack.c.l.b16 %v915
  %v955 = vunpack.c.l.b16 %v916
  %v956 = vunpack.c.l.b16 %v917
  %v957 = vunpack.c.l.b16 %v918
  %v958 = vunpack.c.l.b16 %v919
  %v959 = vunpack.c.l.b16 %v920
  %v960 = vunpack.c.l.b16 %v921
  %v961 = vunpack.c.l.b16 %v922
  %v962 = vunpack.c.l.b16 %v923
  %v963 = vunpack.c.l.b16 %v924
  %v964 = vunpack.c.l.b16 %v925
  %v965 = vunpack.c.l.b16 %v926
  %v966 = vpack.c.b16 %v951, %v950
  %v967 = vpack.c.b16 %v953, %v952
  %v968 = vpack.c.b16 %v955, %v954
  %v969 = vpack.c.b16 %v957, %v956
  %v970 = vpack.c.b16 %v959, %v958
  %v971 = vpack.c.b16 %v961, %v960
  %v972 = vpack.c.b16 %v963, %v962
  %v973 = vpack.c.b16 %v965, %v964
  %982 = vmatprep.subr.bf16.mxu0 0
  %983 = vmatpush1.bf16.msra.mxu0 %v966
  %984 = vmatprep.subr.bf16.mxu0 0
  %985 = vmatpush1.bf16.msra.mxu0 %v967
  %986 = vmatprep.subr.bf16.mxu0 0
  %987 = vmatpush1.bf16.msra.mxu0 %v968
  %988 = vmatprep.subr.bf16.mxu0 0
  %989 = vmatpush1.bf16.msra.mxu0 %v969
  %990 = vmatprep.subr.bf16.mxu0 0
  %991 = vmatpush1.bf16.msra.mxu0 %v970
  %992 = vmatprep.subr.bf16.mxu0 0
  %993 = vmatpush1.bf16.msra.mxu0 %v971
  %994 = vmatprep.subr.bf16.mxu0 0
  %995 = vmatpush1.bf16.msra.mxu0 %v972
  %996 = vmatprep.subr.bf16.mxu0 0
  %997 = vmatpush1.bf16.msra.mxu0 %v973
  %998 = vmatprep.subr.bf16.mxu0 0
  %999 = vmatpush1.bf16.msra.mxu0 0
  %1000 = vmatprep.subr.bf16.mxu0 0
  %1001 = vmatpush1.bf16.msra.mxu0 0
  %1002 = vmatprep.subr.bf16.mxu0 0
  %1003 = vmatpush1.bf16.msra.mxu0 0
  %1004 = vmatprep.subr.bf16.mxu0 0
  %1005 = vmatpush1.bf16.msra.mxu0 0
  %1006 = vmatprep.subr.bf16.mxu0 0
  %1007 = vmatpush1.bf16.msra.mxu0 0
  %1008 = vmatprep.subr.bf16.mxu0 0
  %1009 = vmatpush1.bf16.msra.mxu0 0
  %1010 = vmatprep.subr.bf16.mxu0 0
  %1011 = vmatpush1.bf16.msra.mxu0 0
  %1012 = vmatprep.subr.bf16.mxu0 0
  %1013 = vmatpush1.bf16.msra.mxu0 0
  %1014 = vmatprep.mubr.bf16.mxu0 0
  %1015 = vmatmul.mubr.bf16.gmra.mrb[0].mxu0 %v907
  %v1016 = vpop.f32.mrb[0].mxu0
  %v1017 = vadd.f32 %v932, %v1016
  %v1018 = vpop.f32.mrb[0].mxu0
  %v1019 = vpop.f32.mrb[0].mxu0
  %v1020 = vadd.f32 %v932, %v1019
  %v1021 = vpop.f32.mrb[0].mxu0
  %1022 = vmatprep.mubr.bf16.mxu0 0
  %1023 = vmatmul.mubr.bf16.gmra.mrb[0].mxu0 %v908
  %v1024 = vpop.f32.mrb[0].mxu0
  %v1025 = vadd.f32 %v932, %v1024
  %v1026 = vpop.f32.mrb[0].mxu0
  %v1027 = vpop.f32.mrb[0].mxu0
  %v1028 = vadd.f32 %v932, %v1027
  %v1029 = vpop.f32.mrb[0].mxu0
  %1030 = vmatprep.mubr.bf16.mxu0 0
  %1031 = vmatmul.mubr.bf16.gmra.mrb[0].mxu0 %v909
  %v1032 = vpop.f32.mrb[0].mxu0
  %v1033 = vadd.f32 %v932, %v1032
  %v1034 = vpop.f32.mrb[0].mxu0
  %v1035 = vpop.f32.mrb[0].mxu0
  %v1036 = vadd.f32 %v932, %v1035
  %v1037 = vpop.f32.mrb[0].mxu0
  %1038 = vmatprep.mubr.bf16.mxu0 0
  %1039 = vmatmul.mubr.bf16.gmra.mrb[0].mxu0 %v910
  %v1040 = vpop.f32.mrb[0].mxu0
  %v1041 = vadd.f32 %v932, %v1040
  %v1042 = vpop.f32.mrb[0].mxu0
  %v1043 = vpop.f32.mrb[0].mxu0
  %v1044 = vadd.f32 %v932, %v1043
  %v1045 = vpop.f32.mrb[0].mxu0
  %1046 = vdwg.mxu0
  %v1047 = vmax.f32 %v1017, 0.0
  %v1048 = vmax.f32 %v1020, 0.0
  %v1049 = vmax.f32 %v1025, 0.0
  %v1050 = vmax.f32 %v1028, 0.0
  %v1051 = vmax.f32 %v1033, 0.0
  %v1052 = vmax.f32 %v1036, 0.0
  %v1053 = vmax.f32 %v1041, 0.0
  %v1054 = vmax.f32 %v1044, 0.0
  %v1055 = vpack.c.bf16 %v1048, %v1047
  %v1056 = vpack.c.bf16 %v1050, %v1049
  %v1057 = vpack.c.bf16 %v1052, %v1051
  %v1058 = vpack.c.bf16 %v1054, %v1053
  %v1059 = vld [vmem:[%s9] sm:$0xf]
  %v1060 = vld [vmem:[%s9 + $0x4] sm:$0xf]
  %v1061 = vld [vmem:[%s9 + $0x8] sm:$0xf]
  %v1062 = vld [vmem:[%s9 + $0xc] sm:$0xf]
  %v1063 = vld [vmem:[%s10] sm:$0x1]
  %v1065 = vlaneseq
  %v1066 = vshrl.u32 %v1065, 7
  %v1067 = vsub.s32 0, %v1066
  %v1068 = vrot.slane %v1063, %v1067
  %v1074 = vunpack.c.l.b16 %v1059
  %v1075 = vunpack.c.l.b16 %v1060
  %v1076 = vunpack.c.l.b16 %v1061
  %v1077 = vunpack.c.l.b16 %v1062
  %v1078 = vpack.c.b16 %v1075, %v1074
  %v1079 = vpack.c.b16 %v1077, %v1076
  %vm1082 = vcmask 261120
  %v1084 = vsel %vm1082, %v1055, 0
  %v1087 = vsel %vm1082, %v1056, 0
  %v1090 = vsel %vm1082, %v1057, 0
  %v1093 = vsel %vm1082, %v1058, 0
  %1095 = vmatprep.subr.bf16.mxu0 0
  %1096 = vmatpush1.bf16.msra.mxu0 %v1078
  %1097 = vmatprep.subr.bf16.mxu0 0
  %1098 = vmatpush1.bf16.msra.mxu0 %v1079
  %1099 = vmatprep.subr.bf16.mxu0 0
  %1100 = vmatpush1.bf16.msra.mxu0 0
  %1101 = vmatprep.subr.bf16.mxu0 0
  %1102 = vmatpush1.bf16.msra.mxu0 0
  %1103 = vmatprep.subr.bf16.mxu0 0
  %1104 = vmatpush1.bf16.msra.mxu0 0
  %1105 = vmatprep.subr.bf16.mxu0 0
  %1106 = vmatpush1.bf16.msra.mxu0 0
  %1107 = vmatprep.subr.bf16.mxu0 0
  %1108 = vmatpush1.bf16.msra.mxu0 0
  %1109 = vmatprep.subr.bf16.mxu0 0
  %1110 = vmatpush1.bf16.msra.mxu0 0
  %1111 = vmatprep.subr.bf16.mxu0 0
  %1112 = vmatpush1.bf16.msra.mxu0 0
  %1113 = vmatprep.subr.bf16.mxu0 0
  %1114 = vmatpush1.bf16.msra.mxu0 0
  %1115 = vmatprep.subr.bf16.mxu0 0
  %1116 = vmatpush1.bf16.msra.mxu0 0
  %1117 = vmatprep.subr.bf16.mxu0 0
  %1118 = vmatpush1.bf16.msra.mxu0 0
  %1119 = vmatprep.subr.bf16.mxu0 0
  %1120 = vmatpush1.bf16.msra.mxu0 0
  %1121 = vmatprep.subr.bf16.mxu0 0
  %1122 = vmatpush1.bf16.msra.mxu0 0
  %1123 = vmatprep.subr.bf16.mxu0 0
  %1124 = vmatpush1.bf16.msra.mxu0 0
  %1125 = vmatprep.subr.bf16.mxu0 0
  %1126 = vmatpush1.bf16.msra.mxu0 0
  %1127 = vmatprep.mubr.bf16.mxu0 0
  %1128 = vmatmul.mubr.bf16.gmra.mrb[0].mxu0 %v1084
  %v1129 = vpop.f32.mrb[0].mxu0
  %v1130 = vadd.f32 %v1068, %v1129
  %v1131 = vpop.f32.mrb[0].mxu0
  %v1132 = vpop.f32.mrb[0].mxu0
  %v1133 = vadd.f32 %v1068, %v1132
  %v1134 = vpop.f32.mrb[0].mxu0
  %1135 = vmatprep.mubr.bf16.mxu0 0
  %1136 = vmatmul.mubr.bf16.gmra.mrb[0].mxu0 %v1087
  %v1137 = vpop.f32.mrb[0].mxu0
  %v1138 = vadd.f32 %v1068, %v1137
  %v1139 = vpop.f32.mrb[0].mxu0
  %v1140 = vpop.f32.mrb[0].mxu0
  %v1141 = vadd.f32 %v1068, %v1140
  %v1142 = vpop.f32.mrb[0].mxu0
  %1143 = vmatprep.mubr.bf16.mxu0 0
  %1144 = vmatmul.mubr.bf16.gmra.mrb[0].mxu0 %v1090
  %v1145 = vpop.f32.mrb[0].mxu0
  %v1146 = vadd.f32 %v1068, %v1145
  %v1147 = vpop.f32.mrb[0].mxu0
  %v1148 = vpop.f32.mrb[0].mxu0
  %v1149 = vadd.f32 %v1068, %v1148
  %v1150 = vpop.f32.mrb[0].mxu0
  %1151 = vmatprep.mubr.bf16.mxu0 0
  %1152 = vmatmul.mubr.bf16.gmra.mrb[0].mxu0 %v1093
  %v1153 = vpop.f32.mrb[0].mxu0
  %v1154 = vadd.f32 %v1068, %v1153
  %v1155 = vpop.f32.mrb[0].mxu0
  %v1156 = vpop.f32.mrb[0].mxu0
  %v1157 = vadd.f32 %v1068, %v1156
  %v1158 = vpop.f32.mrb[0].mxu0
  %1159 = vdwg.mxu0
  %v1161 = vsel %vm192, 1.0, 0
  %1163 = vmatprep.subr.mxu0 0.0
  %1164 = vmatpush1.msra.mxu0 %v1130
  %1165 = vmatprep.subr.mxu0 0.0
  %1166 = vmatpush1.msra.mxu0 %v1133
  %1167 = vmatprep.subr.mxu0 0.0
  %1168 = vmatpush1.msra.mxu0 %v1138
  %1169 = vmatprep.subr.mxu0 0.0
  %1170 = vmatpush1.msra.mxu0 %v1141
  %1171 = vmatprep.subr.mxu0 0.0
  %1172 = vmatpush1.msra.mxu0 %v1146
  %1173 = vmatprep.subr.mxu0 0.0
  %1174 = vmatpush1.msra.mxu0 %v1149
  %1175 = vmatprep.subr.mxu0 0.0
  %1176 = vmatpush1.msra.mxu0 %v1154
  %1177 = vmatprep.subr.mxu0 0.0
  %1178 = vmatpush1.msra.mxu0 %v1157
  %1179 = vmatprep.subr.mxu0 0.0
  %1180 = vmatpush1.msra.mxu0 0.0
  %1181 = vmatprep.subr.mxu0 0.0
  %1182 = vmatpush1.msra.mxu0 0.0
  %1183 = vmatprep.subr.mxu0 0.0
  %1184 = vmatpush1.msra.mxu0 0.0
  %1185 = vmatprep.subr.mxu0 0.0
  %1186 = vmatpush1.msra.mxu0 0.0
  %1187 = vmatprep.subr.mxu0 0.0
  %1188 = vmatpush1.msra.mxu0 0.0
  %1189 = vmatprep.subr.mxu0 0.0
  %1190 = vmatpush1.msra.mxu0 0.0
  %1191 = vmatprep.subr.mxu0 0.0
  %1192 = vmatpush1.msra.mxu0 0.0
  %1193 = vmatprep.subr.mxu0 0.0
  %1194 = vmatpush1.msra.mxu0 0.0
  %1195 = vmatprep.subr.mxu0 0.0
  %1196 = vmatpush1.msra.mxu0 0.0
  %1197 = vmatprep.subr.mxu0 0.0
  %1198 = vmatpush1.msra.mxu0 0.0
  %1199 = vmatprep.subr.mxu0 0.0
  %1200 = vmatpush1.msra.mxu0 0.0
  %1201 = vmatprep.subr.mxu0 0.0
  %1202 = vmatpush1.msra.mxu0 0.0
  %1203 = vmatprep.subr.mxu0 0.0
  %1204 = vmatpush1.msra.mxu0 0.0
  %1205 = vmatprep.subr.mxu0 0.0
  %1206 = vmatpush1.msra.mxu0 0.0
  %1207 = vmatprep.subr.mxu0 0.0
  %1208 = vmatpush1.msra.mxu0 0.0
  %1209 = vmatprep.subr.mxu0 0.0
  %1210 = vmatpush1.msra.mxu0 0.0
  %1211 = vmatprep.subr.mxu0 0.0
  %1212 = vmatpush1.msra.mxu0 0.0
  %1213 = vmatprep.subr.mxu0 0.0
  %1214 = vmatpush1.msra.mxu0 0.0
  %1215 = vmatprep.subr.mxu0 0.0
  %1216 = vmatpush1.msra.mxu0 0.0
  %1217 = vmatprep.subr.mxu0 0.0
  %1218 = vmatpush1.msra.mxu0 0.0
  %1219 = vmatprep.subr.mxu0 0.0
  %1220 = vmatpush1.msra.mxu0 0.0
  %1221 = vmatprep.subr.mxu0 0.0
  %1222 = vmatpush1.msra.mxu0 0.0
  %1223 = vmatprep.subr.mxu0 0.0
  %1224 = vmatpush1.msra.mxu0 0.0
  %1225 = vmatprep.subr.mxu0 0.0
  %1226 = vmatpush1.msra.mxu0 0.0
  %1227 = vmatprep.mubr.f32.mxu0 0.0
  %1228 = vmatmul.mubr.f32.gmra.mrb[0].mxu0 %v1161
  %v1229 = vpop.f32.mrb[0].mxu0
  %v1230 = vadd.f32 0.0, %v1229
  %v1231 = vpop.f32.mrb[0].mxu0
  %1232 = vdwg.mxu0
  %v1233 = vmul.f32 %v1130, %v1130
  %v1234 = vmul.f32 %v1133, %v1133
  %v1235 = vmul.f32 %v1138, %v1138
  %v1236 = vmul.f32 %v1141, %v1141
  %v1237 = vmul.f32 %v1146, %v1146
  %v1238 = vmul.f32 %v1149, %v1149
  %v1239 = vmul.f32 %v1154, %v1154
  %v1240 = vmul.f32 %v1157, %v1157
  %1241 = vmatprep.subr.mxu0 0.0
  %1242 = vmatpush1.msra.mxu0 %v1233
  %1243 = vmatprep.subr.mxu0 0.0
  %1244 = vmatpush1.msra.mxu0 %v1234
  %1245 = vmatprep.subr.mxu0 0.0
  %1246 = vmatpush1.msra.mxu0 %v1235
  %1247 = vmatprep.subr.mxu0 0.0
  %1248 = vmatpush1.msra.mxu0 %v1236
  %1249 = vmatprep.subr.mxu0 0.0
  %1250 = vmatpush1.msra.mxu0 %v1237
  %1251 = vmatprep.subr.mxu0 0.0
  %1252 = vmatpush1.msra.mxu0 %v1238
  %1253 = vmatprep.subr.mxu0 0.0
  %1254 = vmatpush1.msra.mxu0 %v1239
  %1255 = vmatprep.subr.mxu0 0.0
  %1256 = vmatpush1.msra.mxu0 %v1240
  %1257 = vmatprep.subr.mxu0 0.0
  %1258 = vmatpush1.msra.mxu0 0.0
  %1259 = vmatprep.subr.mxu0 0.0
  %1260 = vmatpush1.msra.mxu0 0.0
  %1261 = vmatprep.subr.mxu0 0.0
  %1262 = vmatpush1.msra.mxu0 0.0
  %1263 = vmatprep.subr.mxu0 0.0
  %1264 = vmatpush1.msra.mxu0 0.0
  %1265 = vmatprep.subr.mxu0 0.0
  %1266 = vmatpush1.msra.mxu0 0.0
  %1267 = vmatprep.subr.mxu0 0.0
  %1268 = vmatpush1.msra.mxu0 0.0
  %1269 = vmatprep.subr.mxu0 0.0
  %1270 = vmatpush1.msra.mxu0 0.0
  %1271 = vmatprep.subr.mxu0 0.0
  %1272 = vmatpush1.msra.mxu0 0.0
  %1273 = vmatprep.subr.mxu0 0.0
  %1274 = vmatpush1.msra.mxu0 0.0
  %1275 = vmatprep.subr.mxu0 0.0
  %1276 = vmatpush1.msra.mxu0 0.0
  %1277 = vmatprep.subr.mxu0 0.0
  %1278 = vmatpush1.msra.mxu0 0.0
  %1279 = vmatprep.subr.mxu0 0.0
  %1280 = vmatpush1.msra.mxu0 0.0
  %1281 = vmatprep.subr.mxu0 0.0
  %1282 = vmatpush1.msra.mxu0 0.0
  %1283 = vmatprep.subr.mxu0 0.0
  %1284 = vmatpush1.msra.mxu0 0.0
  %1285 = vmatprep.subr.mxu0 0.0
  %1286 = vmatpush1.msra.mxu0 0.0
  %1287 = vmatprep.subr.mxu0 0.0
  %1288 = vmatpush1.msra.mxu0 0.0
  %1289 = vmatprep.subr.mxu0 0.0
  %1290 = vmatpush1.msra.mxu0 0.0
  %1291 = vmatprep.subr.mxu0 0.0
  %1292 = vmatpush1.msra.mxu0 0.0
  %1293 = vmatprep.subr.mxu0 0.0
  %1294 = vmatpush1.msra.mxu0 0.0
  %1295 = vmatprep.subr.mxu0 0.0
  %1296 = vmatpush1.msra.mxu0 0.0
  %1297 = vmatprep.subr.mxu0 0.0
  %1298 = vmatpush1.msra.mxu0 0.0
  %1299 = vmatprep.subr.mxu0 0.0
  %1300 = vmatpush1.msra.mxu0 0.0
  %1301 = vmatprep.subr.mxu0 0.0
  %1302 = vmatpush1.msra.mxu0 0.0
  %1303 = vmatprep.subr.mxu0 0.0
  %1304 = vmatpush1.msra.mxu0 0.0
  %1305 = vmatprep.mubr.f32.mxu0 0.0
  %1306 = vmatmul.mubr.f32.gmra.mrb[0].mxu0 %v1161
  %v1307 = vpop.f32.mrb[0].mxu0
  %v1308 = vadd.f32 0.0, %v1307
  %v1309 = vpop.f32.mrb[0].mxu0
  %1310 = vdwg.mxu0
  %v1311 = vmul.f32 %v1230, 0.015625
  %v1312 = vmul.f32 %v1308, 0.015625
  %v1313 = vmul.f32 %v1311, %v1311
  %v1314 = vsub.f32 %v1312, %v1313
  %v1315 = vld [vmem:[%s11] sm:$0x1]
  %v1316 = vlaneseq
  %v1317 = vshrl.u32 %v1316, 7
  %v1318 = vsub.s32 0, %v1317
  %v1319 = vrot.slane %v1311, %v1318
  %v1320 = vsub.f32 %v1130, %v1319
  %v1321 = vsub.f32 %v1133, %v1319
  %v1322 = vsub.f32 %v1138, %v1319
  %v1323 = vsub.f32 %v1141, %v1319
  %v1324 = vsub.f32 %v1146, %v1319
  %v1325 = vsub.f32 %v1149, %v1319
  %v1326 = vsub.f32 %v1154, %v1319
  %v1327 = vsub.f32 %v1157, %v1319
  %v1329 = vlaneseq
  %v1330 = vshrl.u32 %v1329, 7
  %v1331 = vsub.s32 0, %v1330
  %v1332 = vrot.slane %v1315, %v1331
  %v1334 = vmul.f32 %v1332, %v1320
  %v1335 = vmul.f32 %v1332, %v1321
  %v1336 = vmul.f32 %v1332, %v1322
  %v1337 = vmul.f32 %v1332, %v1323
  %v1338 = vmul.f32 %v1332, %v1324
  %v1339 = vmul.f32 %v1332, %v1325
  %v1340 = vmul.f32 %v1332, %v1326
  %v1341 = vmul.f32 %v1332, %v1327
  %v1342 = vadd.f32 %v1314, 1e-05
  %v1343 = vrsqrt.pop %v1342
  %v1344 = vlaneseq
  %v1345 = vshrl.u32 %v1344, 7
  %v1346 = vsub.s32 0, %v1345
  %v1347 = vrot.slane %v1343, %v1346
  %v1348 = vmul.f32 %v1334, %v1347
  %v1349 = vmul.f32 %v1335, %v1347
  %v1350 = vmul.f32 %v1336, %v1347
  %v1351 = vmul.f32 %v1337, %v1347
  %v1352 = vmul.f32 %v1338, %v1347
  %v1353 = vmul.f32 %v1339, %v1347
  %v1354 = vmul.f32 %v1340, %v1347
  %v1355 = vmul.f32 %v1341, %v1347
  %v1356 = vld [vmem:[%s12] sm:$0x1]
  %v1358 = vlaneseq
  %v1359 = vshrl.u32 %v1358, 7
  %v1360 = vsub.s32 0, %v1359
  %v1361 = vrot.slane %v1356, %v1360
  %v1363 = vadd.f32 %v1348, %v1361
  %v1364 = vadd.f32 %v1349, %v1361
  %v1365 = vadd.f32 %v1350, %v1361
  %v1366 = vadd.f32 %v1351, %v1361
  %v1367 = vadd.f32 %v1352, %v1361
  %v1368 = vadd.f32 %v1353, %v1361
  %v1369 = vadd.f32 %v1354, %v1361
  %v1370 = vadd.f32 %v1355, %v1361
  %v1372 = vsel %vm192, %v84, 0
  %1374 = vmatprep.subr.mxu0 0.0
  %1375 = vmatpush1.msra.mxu0 %v1363
  %1376 = vmatprep.subr.mxu0 0.0
  %1377 = vmatpush1.msra.mxu0 %v1364
  %1378 = vmatprep.subr.mxu0 0.0
  %1379 = vmatpush1.msra.mxu0 %v1365
  %1380 = vmatprep.subr.mxu0 0.0
  %1381 = vmatpush1.msra.mxu0 %v1366
  %1382 = vmatprep.subr.mxu0 0.0
  %1383 = vmatpush1.msra.mxu0 %v1367
  %1384 = vmatprep.subr.mxu0 0.0
  %1385 = vmatpush1.msra.mxu0 %v1368
  %1386 = vmatprep.subr.mxu0 0.0
  %1387 = vmatpush1.msra.mxu0 %v1369
  %1388 = vmatprep.subr.mxu0 0.0
  %1389 = vmatpush1.msra.mxu0 %v1370
  %1390 = vmatprep.subr.mxu0 0.0
  %1391 = vmatpush1.msra.mxu0 0.0
  %1392 = vmatprep.subr.mxu0 0.0
  %1393 = vmatpush1.msra.mxu0 0.0
  %1394 = vmatprep.subr.mxu0 0.0
  %1395 = vmatpush1.msra.mxu0 0.0
  %1396 = vmatprep.subr.mxu0 0.0
  %1397 = vmatpush1.msra.mxu0 0.0
  %1398 = vmatprep.subr.mxu0 0.0
  %1399 = vmatpush1.msra.mxu0 0.0
  %1400 = vmatprep.subr.mxu0 0.0
  %1401 = vmatpush1.msra.mxu0 0.0
  %1402 = vmatprep.subr.mxu0 0.0
  %1403 = vmatpush1.msra.mxu0 0.0
  %1404 = vmatprep.subr.mxu0 0.0
  %1405 = vmatpush1.msra.mxu0 0.0
  %1406 = vmatprep.subr.mxu0 0.0
  %1407 = vmatpush1.msra.mxu0 0.0
  %1408 = vmatprep.subr.mxu0 0.0
  %1409 = vmatpush1.msra.mxu0 0.0
  %1410 = vmatprep.subr.mxu0 0.0
  %1411 = vmatpush1.msra.mxu0 0.0
  %1412 = vmatprep.subr.mxu0 0.0
  %1413 = vmatpush1.msra.mxu0 0.0
  %1414 = vmatprep.subr.mxu0 0.0
  %1415 = vmatpush1.msra.mxu0 0.0
  %1416 = vmatprep.subr.mxu0 0.0
  %1417 = vmatpush1.msra.mxu0 0.0
  %1418 = vmatprep.subr.mxu0 0.0
  %1419 = vmatpush1.msra.mxu0 0.0
  %1420 = vmatprep.subr.mxu0 0.0
  %1421 = vmatpush1.msra.mxu0 0.0
  %1422 = vmatprep.subr.mxu0 0.0
  %1423 = vmatpush1.msra.mxu0 0.0
  %1424 = vmatprep.subr.mxu0 0.0
  %1425 = vmatpush1.msra.mxu0 0.0
  %1426 = vmatprep.subr.mxu0 0.0
  %1427 = vmatpush1.msra.mxu0 0.0
  %1428 = vmatprep.subr.mxu0 0.0
  %1429 = vmatpush1.msra.mxu0 0.0
  %1430 = vmatprep.subr.mxu0 0.0
  %1431 = vmatpush1.msra.mxu0 0.0
  %1432 = vmatprep.subr.mxu0 0.0
  %1433 = vmatpush1.msra.mxu0 0.0
  %1434 = vmatprep.subr.mxu0 0.0
  %1435 = vmatpush1.msra.mxu0 0.0
  %1436 = vmatprep.subr.mxu0 0.0
  %1437 = vmatpush1.msra.mxu0 0.0
  %1438 = vmatprep.mubr.f32.mxu0 0.0
  %1439 = vmatmul.mubr.f32.gmra.mrb[0].mxu0 %v1372
  %v1440 = vpop.f32.mrb[0].mxu0
  %v1441 = vadd.f32 0.0, %v1440
  %v1442 = vpop.f32.mrb[0].mxu0
  %1443 = vdwg.mxu0
  %v1444 = vld [vmem:[%s15] sm:$0xff]
  %v1445 = vld [vmem:[%s15 + $0x8] sm:$0xff]
  %v1446 = vld [vmem:[%s15 + $0x10] sm:$0xff]
  %v1447 = vld [vmem:[%s15 + $0x18] sm:$0xff]
  %v1448 = vpack.c.bf16 %v1364, %v1363
  %v1449 = vpack.c.bf16 %v1366, %v1365
  %v1450 = vpack.c.bf16 %v1368, %v1367
  %v1451 = vpack.c.bf16 %v1370, %v1369
  %v1452 = vld [vmem:[%s13] sm:$0xf]
  %v1453 = vld [vmem:[%s13 + $0x4] sm:$0xf]
  %v1454 = vld [vmem:[%s13 + $0x8] sm:$0xf]
  %v1455 = vld [vmem:[%s13 + $0xc] sm:$0xf]
  %v1460 = vunpack.c.l.b16 %v1452
  %v1461 = vunpack.c.l.b16 %v1453
  %v1462 = vunpack.c.l.b16 %v1454
  %v1463 = vunpack.c.l.b16 %v1455
  %v1464 = vpack.c.b16 %v1461, %v1460
  %v1465 = vpack.c.b16 %v1463, %v1462
  %v1469 = vsel %vm1082, %v1448, 0
  %v1472 = vsel %vm1082, %v1449, 0
  %v1475 = vsel %vm1082, %v1450, 0
  %v1478 = vsel %vm1082, %v1451, 0
  %1480 = vmatprep.subr.bf16.mxu0 0
  %1481 = vmatpush1.bf16.msra.mxu0 %v1464
  %1482 = vmatprep.subr.bf16.mxu0 0
  %1483 = vmatpush1.bf16.msra.mxu0 %v1465
  %1484 = vmatprep.subr.bf16.mxu0 0
  %1485 = vmatpush1.bf16.msra.mxu0 0
  %1486 = vmatprep.subr.bf16.mxu0 0
  %1487 = vmatpush1.bf16.msra.mxu0 0
  %1488 = vmatprep.subr.bf16.mxu0 0
  %1489 = vmatpush1.bf16.msra.mxu0 0
  %1490 = vmatprep.subr.bf16.mxu0 0
  %1491 = vmatpush1.bf16.msra.mxu0 0
  %1492 = vmatprep.subr.bf16.mxu0 0
  %1493 = vmatpush1.bf16.msra.mxu0 0
  %1494 = vmatprep.subr.bf16.mxu0 0
  %1495 = vmatpush1.bf16.msra.mxu0 0
  %1496 = vmatprep.subr.bf16.mxu0 0
  %1497 = vmatpush1.bf16.msra.mxu0 0
  %1498 = vmatprep.subr.bf16.mxu0 0
  %1499 = vmatpush1.bf16.msra.mxu0 0
  %1500 = vmatprep.subr.bf16.mxu0 0
  %1501 = vmatpush1.bf16.msra.mxu0 0
  %1502 = vmatprep.subr.bf16.mxu0 0
  %1503 = vmatpush1.bf16.msra.mxu0 0
  %1504 = vmatprep.subr.bf16.mxu0 0
  %1505 = vmatpush1.bf16.msra.mxu0 0
  %1506 = vmatprep.subr.bf16.mxu0 0
  %1507 = vmatpush1.bf16.msra.mxu0 0
  %1508 = vmatprep.subr.bf16.mxu0 0
  %1509 = vmatpush1.bf16.msra.mxu0 0
  %1510 = vmatprep.subr.bf16.mxu0 0
  %1511 = vmatpush1.bf16.msra.mxu0 0
  %1512 = vmatprep.mubr.bf16.mxu0 0
  %1513 = vmatmul.mubr.bf16.gmra.mrb[0].mxu0 %v1469
  %v1514 = vpop.f32.mrb[0].mxu0
  %v1515 = vadd.f32 0.0, %v1514
  %v1516 = vpop.f32.mrb[0].mxu0
  %v1517 = vpop.f32.mrb[0].mxu0
  %v1518 = vadd.f32 0.0, %v1517
  %v1519 = vpop.f32.mrb[0].mxu0
  %1520 = vmatprep.mubr.bf16.mxu0 0
  %1521 = vmatmul.mubr.bf16.gmra.mrb[0].mxu0 %v1472
  %v1522 = vpop.f32.mrb[0].mxu0
  %v1523 = vadd.f32 0.0, %v1522
  %v1524 = vpop.f32.mrb[0].mxu0
  %v1525 = vpop.f32.mrb[0].mxu0
  %v1526 = vadd.f32 0.0, %v1525
  %v1527 = vpop.f32.mrb[0].mxu0
  %1528 = vmatprep.mubr.bf16.mxu0 0
  %1529 = vmatmul.mubr.bf16.gmra.mrb[0].mxu0 %v1475
  %v1530 = vpop.f32.mrb[0].mxu0
  %v1531 = vadd.f32 0.0, %v1530
  %v1532 = vpop.f32.mrb[0].mxu0
  %v1533 = vpop.f32.mrb[0].mxu0
  %v1534 = vadd.f32 0.0, %v1533
  %v1535 = vpop.f32.mrb[0].mxu0
  %1536 = vmatprep.mubr.bf16.mxu0 0
  %1537 = vmatmul.mubr.bf16.gmra.mrb[0].mxu0 %v1478
  %v1538 = vpop.f32.mrb[0].mxu0
  %v1539 = vadd.f32 0.0, %v1538
  %v1540 = vpop.f32.mrb[0].mxu0
  %v1541 = vpop.f32.mrb[0].mxu0
  %v1542 = vadd.f32 0.0, %v1541
  %v1543 = vpop.f32.mrb[0].mxu0
  %1544 = vdwg.mxu0
  %v1545 = vpack.c.bf16 %v1518, %v1515
  %v1546 = vpack.c.bf16 %v1526, %v1523
  %v1547 = vpack.c.bf16 %v1534, %v1531
  %v1548 = vpack.c.bf16 %v1542, %v1539
  %v1549 = vmul.bf16 %v1545, %v107
  %v1550 = vmul.bf16 %v1546, %v107
  %v1551 = vmul.bf16 %v1547, %v107
  %v1552 = vmul.bf16 %v1548, %v107
  %v1553 = vmul.bf16 %v1545, %v135
  %v1554 = vmul.bf16 %v1546, %v135
  %v1555 = vmul.bf16 %v1547, %v135
  %v1556 = vmul.bf16 %v1548, %v135
  %1557 = vmatprep.subr.bf16.mxu0 0
  %1558 = vmatpush1.bf16.msra.mxu0 %v1553
  %1559 = vmatprep.subr.bf16.mxu0 0
  %1560 = vmatpush1.bf16.msra.mxu0 %v1554
  %1561 = vmatprep.subr.bf16.mxu0 0
  %1562 = vmatpush1.bf16.msra.mxu0 %v1555
  %1563 = vmatprep.subr.bf16.mxu0 0
  %1564 = vmatpush1.bf16.msra.mxu0 %v1556
  %1565 = vmatprep.subr.bf16.mxu0 0
  %1566 = vmatpush1.bf16.msra.mxu0 0
  %1567 = vmatprep.subr.bf16.mxu0 0
  %1568 = vmatpush1.bf16.msra.mxu0 0
  %1569 = vmatprep.subr.bf16.mxu0 0
  %1570 = vmatpush1.bf16.msra.mxu0 0
  %1571 = vmatprep.subr.bf16.mxu0 0
  %1572 = vmatpush1.bf16.msra.mxu0 0
  %1573 = vmatprep.subr.bf16.mxu0 0
  %1574 = vmatpush1.bf16.msra.mxu0 0
  %1575 = vmatprep.subr.bf16.mxu0 0
  %1576 = vmatpush1.bf16.msra.mxu0 0
  %1577 = vmatprep.subr.bf16.mxu0 0
  %1578 = vmatpush1.bf16.msra.mxu0 0
  %1579 = vmatprep.subr.bf16.mxu0 0
  %1580 = vmatpush1.bf16.msra.mxu0 0
  %1581 = vmatprep.subr.bf16.mxu0 0
  %1582 = vmatpush1.bf16.msra.mxu0 0
  %1583 = vmatprep.subr.bf16.mxu0 0
  %1584 = vmatpush1.bf16.msra.mxu0 0
  %1585 = vmatprep.subr.bf16.mxu0 0
  %1586 = vmatpush1.bf16.msra.mxu0 0
  %1587 = vmatprep.subr.bf16.mxu0 0
  %1588 = vmatpush1.bf16.msra.mxu0 0
  %1589 = vmatprep.mubr.bf16.mxu0 0
  %1590 = vmatmul.mubr.bf16.gmra.mrb[0].mxu0 %v194
  %v1591 = vpop.f32.mrb[0].mxu0
  %v1592 = vadd.f32 0.0, %v1591
  %v1593 = vpop.f32.mrb[0].mxu0
  %v1594 = vpop.f32.mrb[0].mxu0
  %v1595 = vadd.f32 0.0, %v1594
  %v1596 = vpop.f32.mrb[0].mxu0
  %1597 = vmatprep.mubr.bf16.mxu0 0
  %1598 = vmatmul.mubr.bf16.gmra.mrb[0].mxu0 %v197
  %v1599 = vpop.f32.mrb[0].mxu0
  %v1600 = vadd.f32 0.0, %v1599
  %v1601 = vpop.f32.mrb[0].mxu0
  %v1602 = vpop.f32.mrb[0].mxu0
  %v1603 = vadd.f32 0.0, %v1602
  %v1604 = vpop.f32.mrb[0].mxu0
  %1605 = vmatprep.mubr.bf16.mxu0 0
  %1606 = vmatmul.mubr.bf16.gmra.mrb[0].mxu0 %v200
  %v1607 = vpop.f32.mrb[0].mxu0
  %v1608 = vadd.f32 0.0, %v1607
  %v1609 = vpop.f32.mrb[0].mxu0
  %v1610 = vpop.f32.mrb[0].mxu0
  %v1611 = vadd.f32 0.0, %v1610
  %v1612 = vpop.f32.mrb[0].mxu0
  %1613 = vmatprep.mubr.bf16.mxu0 0
  %1614 = vmatmul.mubr.bf16.gmra.mrb[0].mxu0 %v203
  %v1615 = vpop.f32.mrb[0].mxu0
  %v1616 = vadd.f32 0.0, %v1615
  %v1617 = vpop.f32.mrb[0].mxu0
  %v1618 = vpop.f32.mrb[0].mxu0
  %v1619 = vadd.f32 0.0, %v1618
  %v1620 = vpop.f32.mrb[0].mxu0
  %1621 = vdwg.mxu0
  %1622 = vmatprep.subr.bf16.mxu0 0
  %1623 = vmatpush1.bf16.msra.mxu0 %v1549
  %1624 = vmatprep.subr.bf16.mxu0 0
  %1625 = vmatpush1.bf16.msra.mxu0 %v1550
  %1626 = vmatprep.subr.bf16.mxu0 0
  %1627 = vmatpush1.bf16.msra.mxu0 %v1551
  %1628 = vmatprep.subr.bf16.mxu0 0
  %1629 = vmatpush1.bf16.msra.mxu0 %v1552
  %1630 = vmatprep.subr.bf16.mxu0 0
  %1631 = vmatpush1.bf16.msra.mxu0 0
  %1632 = vmatprep.subr.bf16.mxu0 0
  %1633 = vmatpush1.bf16.msra.mxu0 0
  %1634 = vmatprep.subr.bf16.mxu0 0
  %1635 = vmatpush1.bf16.msra.mxu0 0
  %1636 = vmatprep.subr.bf16.mxu0 0
  %1637 = vmatpush1.bf16.msra.mxu0 0
  %1638 = vmatprep.subr.bf16.mxu0 0
  %1639 = vmatpush1.bf16.msra.mxu0 0
  %1640 = vmatprep.subr.bf16.mxu0 0
  %1641 = vmatpush1.bf16.msra.mxu0 0
  %1642 = vmatprep.subr.bf16.mxu0 0
  %1643 = vmatpush1.bf16.msra.mxu0 0
  %1644 = vmatprep.subr.bf16.mxu0 0
  %1645 = vmatpush1.bf16.msra.mxu0 0
  %1646 = vmatprep.subr.bf16.mxu0 0
  %1647 = vmatpush1.bf16.msra.mxu0 0
  %1648 = vmatprep.subr.bf16.mxu0 0
  %1649 = vmatpush1.bf16.msra.mxu0 0
  %1650 = vmatprep.subr.bf16.mxu0 0
  %1651 = vmatpush1.bf16.msra.mxu0 0
  %1652 = vmatprep.subr.bf16.mxu0 0
  %1653 = vmatpush1.bf16.msra.mxu0 0
  %1654 = vmatprep.mubr.bf16.mxu0 0
  %1655 = vmatmul.mubr.bf16.gmra.mrb[0].mxu0 %v315
  %v1656 = vpop.f32.mrb[0].mxu0
  %v1657 = vadd.f32 %v1592, %v1656
  %v1658 = vpop.f32.mrb[0].mxu0
  %v1659 = vpop.f32.mrb[0].mxu0
  %v1660 = vadd.f32 %v1595, %v1659
  %v1661 = vpop.f32.mrb[0].mxu0
  %1662 = vmatprep.mubr.bf16.mxu0 0
  %1663 = vmatmul.mubr.bf16.gmra.mrb[0].mxu0 %v318
  %v1664 = vpop.f32.mrb[0].mxu0
  %v1665 = vadd.f32 %v1600, %v1664
  %v1666 = vpop.f32.mrb[0].mxu0
  %v1667 = vpop.f32.mrb[0].mxu0
  %v1668 = vadd.f32 %v1603, %v1667
  %v1669 = vpop.f32.mrb[0].mxu0
  %1670 = vmatprep.mubr.bf16.mxu0 0
  %1671 = vmatmul.mubr.bf16.gmra.mrb[0].mxu0 %v321
  %v1672 = vpop.f32.mrb[0].mxu0
  %v1673 = vadd.f32 %v1608, %v1672
  %v1674 = vpop.f32.mrb[0].mxu0
  %v1675 = vpop.f32.mrb[0].mxu0
  %v1676 = vadd.f32 %v1611, %v1675
  %v1677 = vpop.f32.mrb[0].mxu0
  %1678 = vmatprep.mubr.bf16.mxu0 0
  %1679 = vmatmul.mubr.bf16.gmra.mrb[0].mxu0 %v324
  %v1680 = vpop.f32.mrb[0].mxu0
  %v1681 = vadd.f32 %v1616, %v1680
  %v1682 = vpop.f32.mrb[0].mxu0
  %v1683 = vpop.f32.mrb[0].mxu0
  %v1684 = vadd.f32 %v1619, %v1683
  %v1685 = vpop.f32.mrb[0].mxu0
  %1686 = vdwg.mxu0
  %v1687 = vmul.bf16 %v1545, %v406
  %v1688 = vmul.bf16 %v1546, %v406
  %v1689 = vmul.bf16 %v1547, %v406
  %v1690 = vmul.bf16 %v1548, %v406
  %1691 = vmatprep.subr.bf16.mxu0 0
  %1692 = vmatpush1.bf16.msra.mxu0 %v1687
  %1693 = vmatprep.subr.bf16.mxu0 0
  %1694 = vmatpush1.bf16.msra.mxu0 %v1688
  %1695 = vmatprep.subr.bf16.mxu0 0
  %1696 = vmatpush1.bf16.msra.mxu0 %v1689
  %1697 = vmatprep.subr.bf16.mxu0 0
  %1698 = vmatpush1.bf16.msra.mxu0 %v1690
  %1699 = vmatprep.subr.bf16.mxu0 0
  %1700 = vmatpush1.bf16.msra.mxu0 0
  %1701 = vmatprep.subr.bf16.mxu0 0
  %1702 = vmatpush1.bf16.msra.mxu0 0
  %1703 = vmatprep.subr.bf16.mxu0 0
  %1704 = vmatpush1.bf16.msra.mxu0 0
  %1705 = vmatprep.subr.bf16.mxu0 0
  %1706 = vmatpush1.bf16.msra.mxu0 0
  %1707 = vmatprep.subr.bf16.mxu0 0
  %1708 = vmatpush1.bf16.msra.mxu0 0
  %1709 = vmatprep.subr.bf16.mxu0 0
  %1710 = vmatpush1.bf16.msra.mxu0 0
  %1711 = vmatprep.subr.bf16.mxu0 0
  %1712 = vmatpush1.bf16.msra.mxu0 0
  %1713 = vmatprep.subr.bf16.mxu0 0
  %1714 = vmatpush1.bf16.msra.mxu0 0
  %1715 = vmatprep.subr.bf16.mxu0 0
  %1716 = vmatpush1.bf16.msra.mxu0 0
  %1717 = vmatprep.subr.bf16.mxu0 0
  %1718 = vmatpush1.bf16.msra.mxu0 0
  %1719 = vmatprep.subr.bf16.mxu0 0
  %1720 = vmatpush1.bf16.msra.mxu0 0
  %1721 = vmatprep.subr.bf16.mxu0 0
  %1722 = vmatpush1.bf16.msra.mxu0 0
  %1723 = vmatprep.mubr.bf16.mxu0 0
  %1724 = vmatmul.mubr.bf16.gmra.mrb[0].mxu0 %v464
  %v1725 = vpop.f32.mrb[0].mxu0
  %v1726 = vadd.f32 0.0, %v1725
  %v1727 = vpop.f32.mrb[0].mxu0
  %v1728 = vpop.f32.mrb[0].mxu0
  %v1729 = vadd.f32 0.0, %v1728
  %v1730 = vpop.f32.mrb[0].mxu0
  %1731 = vmatprep.mubr.bf16.mxu0 0
  %1732 = vmatmul.mubr.bf16.gmra.mrb[0].mxu0 %v467
  %v1733 = vpop.f32.mrb[0].mxu0
  %v1734 = vadd.f32 0.0, %v1733
  %v1735 = vpop.f32.mrb[0].mxu0
  %v1736 = vpop.f32.mrb[0].mxu0
  %v1737 = vadd.f32 0.0, %v1736
  %v1738 = vpop.f32.mrb[0].mxu0
  %1739 = vmatprep.mubr.bf16.mxu0 0
  %1740 = vmatmul.mubr.bf16.gmra.mrb[0].mxu0 %v470
  %v1741 = vpop.f32.mrb[0].mxu0
  %v1742 = vadd.f32 0.0, %v1741
  %v1743 = vpop.f32.mrb[0].mxu0
  %v1744 = vpop.f32.mrb[0].mxu0
  %v1745 = vadd.f32 0.0, %v1744
  %v1746 = vpop.f32.mrb[0].mxu0
  %1747 = vmatprep.mubr.bf16.mxu0 0
  %1748 = vmatmul.mubr.bf16.gmra.mrb[0].mxu0 %v473
  %v1749 = vpop.f32.mrb[0].mxu0
  %v1750 = vadd.f32 0.0, %v1749
  %v1751 = vpop.f32.mrb[0].mxu0
  %v1752 = vpop.f32.mrb[0].mxu0
  %v1753 = vadd.f32 0.0, %v1752
  %v1754 = vpop.f32.mrb[0].mxu0
  %1755 = vdwg.mxu0
  %v1756 = vadd.f32 %v1657, %v1726
  %v1757 = vadd.f32 %v1660, %v1729
  %v1758 = vadd.f32 %v1665, %v1734
  %v1759 = vadd.f32 %v1668, %v1737
  %v1760 = vadd.f32 %v1673, %v1742
  %v1761 = vadd.f32 %v1676, %v1745
  %v1762 = vadd.f32 %v1681, %v1750
  %v1763 = vadd.f32 %v1684, %v1753
  %v1764 = vmul.bf16 %v1545, %v563
  %v1765 = vmul.bf16 %v1546, %v563
  %v1766 = vmul.bf16 %v1547, %v563
  %v1767 = vmul.bf16 %v1548, %v563
  %1768 = vmatprep.subr.bf16.mxu0 0
  %1769 = vmatpush1.bf16.msra.mxu0 %v1764
  %1770 = vmatprep.subr.bf16.mxu0 0
  %1771 = vmatpush1.bf16.msra.mxu0 %v1765
  %1772 = vmatprep.subr.bf16.mxu0 0
  %1773 = vmatpush1.bf16.msra.mxu0 %v1766
  %1774 = vmatprep.subr.bf16.mxu0 0
  %1775 = vmatpush1.bf16.msra.mxu0 %v1767
  %1776 = vmatprep.subr.bf16.mxu0 0
  %1777 = vmatpush1.bf16.msra.mxu0 0
  %1778 = vmatprep.subr.bf16.mxu0 0
  %1779 = vmatpush1.bf16.msra.mxu0 0
  %1780 = vmatprep.subr.bf16.mxu0 0
  %1781 = vmatpush1.bf16.msra.mxu0 0
  %1782 = vmatprep.subr.bf16.mxu0 0
  %1783 = vmatpush1.bf16.msra.mxu0 0
  %1784 = vmatprep.subr.bf16.mxu0 0
  %1785 = vmatpush1.bf16.msra.mxu0 0
  %1786 = vmatprep.subr.bf16.mxu0 0
  %1787 = vmatpush1.bf16.msra.mxu0 0
  %1788 = vmatprep.subr.bf16.mxu0 0
  %1789 = vmatpush1.bf16.msra.mxu0 0
  %1790 = vmatprep.subr.bf16.mxu0 0
  %1791 = vmatpush1.bf16.msra.mxu0 0
  %1792 = vmatprep.subr.bf16.mxu0 0
  %1793 = vmatpush1.bf16.msra.mxu0 0
  %1794 = vmatprep.subr.bf16.mxu0 0
  %1795 = vmatpush1.bf16.msra.mxu0 0
  %1796 = vmatprep.subr.bf16.mxu0 0
  %1797 = vmatpush1.bf16.msra.mxu0 0
  %1798 = vmatprep.subr.bf16.mxu0 0
  %1799 = vmatpush1.bf16.msra.mxu0 0
  %1800 = vmatprep.mubr.bf16.mxu0 0
  %1801 = vmatmul.mubr.bf16.gmra.mrb[0].mxu0 %v621
  %v1802 = vpop.f32.mrb[0].mxu0
  %v1803 = vadd.f32 0.0, %v1802
  %v1804 = vpop.f32.mrb[0].mxu0
  %v1805 = vpop.f32.mrb[0].mxu0
  %v1806 = vadd.f32 0.0, %v1805
  %v1807 = vpop.f32.mrb[0].mxu0
  %1808 = vmatprep.mubr.bf16.mxu0 0
  %1809 = vmatmul.mubr.bf16.gmra.mrb[0].mxu0 %v624
  %v1810 = vpop.f32.mrb[0].mxu0
  %v1811 = vadd.f32 0.0, %v1810
  %v1812 = vpop.f32.mrb[0].mxu0
  %v1813 = vpop.f32.mrb[0].mxu0
  %v1814 = vadd.f32 0.0, %v1813
  %v1815 = vpop.f32.mrb[0].mxu0
  %1816 = vmatprep.mubr.bf16.mxu0 0
  %1817 = vmatmul.mubr.bf16.gmra.mrb[0].mxu0 %v627
  %v1818 = vpop.f32.mrb[0].mxu0
  %v1819 = vadd.f32 0.0, %v1818
  %v1820 = vpop.f32.mrb[0].mxu0
  %v1821 = vpop.f32.mrb[0].mxu0
  %v1822 = vadd.f32 0.0, %v1821
  %v1823 = vpop.f32.mrb[0].mxu0
  %1824 = vmatprep.mubr.bf16.mxu0 0
  %1825 = vmatmul.mubr.bf16.gmra.mrb[0].mxu0 %v630
  %v1826 = vpop.f32.mrb[0].mxu0
  %v1827 = vadd.f32 0.0, %v1826
  %v1828 = vpop.f32.mrb[0].mxu0
  %v1829 = vpop.f32.mrb[0].mxu0
  %v1830 = vadd.f32 0.0, %v1829
  %v1831 = vpop.f32.mrb[0].mxu0
  %1832 = vdwg.mxu0
  %v1833 = vadd.f32 %v1756, %v1803
  %v1834 = vadd.f32 %v1757, %v1806
  %v1835 = vadd.f32 %v1758, %v1811
  %v1836 = vadd.f32 %v1759, %v1814
  %v1837 = vadd.f32 %v1760, %v1819
  %v1838 = vadd.f32 %v1761, %v1822
  %v1839 = vadd.f32 %v1762, %v1827
  %v1840 = vadd.f32 %v1763, %v1830
  %s1841 = scalar_lea.vmem %s3, 1
  %v1842 = vld [vmem:[%s1841] sm:$0x1]
  %v1843 = vunpack.c.l.bf16 %v1545
  %v1844 = vunpack.c.h.bf16 %v1545
  %v1845 = vunpack.c.l.bf16 %v1546
  %v1846 = vunpack.c.h.bf16 %v1546
  %v1847 = vunpack.c.l.bf16 %v1547
  %v1848 = vunpack.c.h.bf16 %v1547
  %v1849 = vunpack.c.l.bf16 %v1548
  %v1850 = vunpack.c.h.bf16 %v1548
  %v1852 = vlaneseq
  %v1853 = vshrl.u32 %v1852, 7
  %v1854 = vsub.s32 0, %v1853
  %v1855 = vrot.slane %v1842, %v1854
  %v1857 = vmul.f32 %v1855, %v1843
  %v1858 = vmul.f32 %v1855, %v1844
  %v1859 = vmul.f32 %v1855, %v1845
  %v1860 = vmul.f32 %v1855, %v1846
  %v1861 = vmul.f32 %v1855, %v1847
  %v1862 = vmul.f32 %v1855, %v1848
  %v1863 = vmul.f32 %v1855, %v1849
  %v1864 = vmul.f32 %v1855, %v1850
  %v1865 = vadd.f32 %v1857, %v1833
  %v1866 = vadd.f32 %v1858, %v1834
  %v1867 = vadd.f32 %v1859, %v1835
  %v1868 = vadd.f32 %v1860, %v1836
  %v1869 = vadd.f32 %v1861, %v1837
  %v1870 = vadd.f32 %v1862, %v1838
  %v1871 = vadd.f32 %v1863, %v1839
  %v1872 = vadd.f32 %v1864, %v1840
  %s1873 = scalar_lea.vmem %s4, 1
  %v1874 = vld [vmem:[%s1873] sm:$0x1]
  %v1876 = vlaneseq
  %v1877 = vshrl.u32 %v1876, 7
  %v1878 = vsub.s32 0, %v1877
  %v1879 = vrot.slane %v1874, %v1878
  %v1881 = vadd.f32 %v1865, %v1879
  %v1882 = vadd.f32 %v1866, %v1879
  %v1883 = vadd.f32 %v1867, %v1879
  %v1884 = vadd.f32 %v1868, %v1879
  %v1885 = vadd.f32 %v1869, %v1879
  %v1886 = vadd.f32 %v1870, %v1879
  %v1887 = vadd.f32 %v1871, %v1879
  %v1888 = vadd.f32 %v1872, %v1879
  %v1889 = vmax.f32 %v1881, 0.0
  %v1890 = vmax.f32 %v1882, 0.0
  %v1891 = vmax.f32 %v1883, 0.0
  %v1892 = vmax.f32 %v1884, 0.0
  %v1893 = vmax.f32 %v1885, 0.0
  %v1894 = vmax.f32 %v1886, 0.0
  %v1895 = vmax.f32 %v1887, 0.0
  %v1896 = vmax.f32 %v1888, 0.0
  %v1897 = vpack.c.bf16 %v1890, %v1889
  %v1898 = vpack.c.bf16 %v1892, %v1891
  %v1899 = vpack.c.bf16 %v1894, %v1893
  %v1900 = vpack.c.bf16 %v1896, %v1895
  %s1901 = scalar_lea.vmem %s5, 64
  %v1902 = vld [vmem:[%s1901] sm:$0xf]
  %v1903 = vld [vmem:[%s1901 + $0x4] sm:$0xf]
  %v1904 = vld [vmem:[%s1901 + $0x8] sm:$0xf]
  %v1905 = vld [vmem:[%s1901 + $0xc] sm:$0xf]
  %v1906 = vld [vmem:[%s1901 + $0x10] sm:$0xf]
  %v1907 = vld [vmem:[%s1901 + $0x14] sm:$0xf]
  %v1908 = vld [vmem:[%s1901 + $0x18] sm:$0xf]
  %v1909 = vld [vmem:[%s1901 + $0x1c] sm:$0xf]
  %v1910 = vld [vmem:[%s1901 + $0x20] sm:$0xf]
  %v1911 = vld [vmem:[%s1901 + $0x24] sm:$0xf]
  %v1912 = vld [vmem:[%s1901 + $0x28] sm:$0xf]
  %v1913 = vld [vmem:[%s1901 + $0x2c] sm:$0xf]
  %v1914 = vld [vmem:[%s1901 + $0x30] sm:$0xf]
  %v1915 = vld [vmem:[%s1901 + $0x34] sm:$0xf]
  %v1916 = vld [vmem:[%s1901 + $0x38] sm:$0xf]
  %v1917 = vld [vmem:[%s1901 + $0x3c] sm:$0xf]
  %s1918 = scalar_lea.vmem %s6, 1
  %v1919 = vld [vmem:[%s1918] sm:$0x1]
  %v1921 = vlaneseq
  %v1922 = vshrl.u32 %v1921, 7
  %v1923 = vsub.s32 0, %v1922
  %v1924 = vrot.slane %v1919, %v1923
  %v1942 = vunpack.c.l.b16 %v1902
  %v1943 = vunpack.c.l.b16 %v1903
  %v1944 = vunpack.c.l.b16 %v1904
  %v1945 = vunpack.c.l.b16 %v1905
  %v1946 = vunpack.c.l.b16 %v1906
  %v1947 = vunpack.c.l.b16 %v1907
  %v1948 = vunpack.c.l.b16 %v1908
  %v1949 = vunpack.c.l.b16 %v1909
  %v1950 = vunpack.c.l.b16 %v1910
  %v1951 = vunpack.c.l.b16 %v1911
  %v1952 = vunpack.c.l.b16 %v1912
  %v1953 = vunpack.c.l.b16 %v1913
  %v1954 = vunpack.c.l.b16 %v1914
  %v1955 = vunpack.c.l.b16 %v1915
  %v1956 = vunpack.c.l.b16 %v1916
  %v1957 = vunpack.c.l.b16 %v1917
  %v1958 = vpack.c.b16 %v1943, %v1942
  %v1959 = vpack.c.b16 %v1945, %v1944
  %v1960 = vpack.c.b16 %v1947, %v1946
  %v1961 = vpack.c.b16 %v1949, %v1948
  %v1962 = vpack.c.b16 %v1951, %v1950
  %v1963 = vpack.c.b16 %v1953, %v1952
  %v1964 = vpack.c.b16 %v1955, %v1954
  %v1965 = vpack.c.b16 %v1957, %v1956
  %1974 = vmatprep.subr.bf16.mxu0 0
  %1975 = vmatpush1.bf16.msra.mxu0 %v1958
  %1976 = vmatprep.subr.bf16.mxu0 0
  %1977 = vmatpush1.bf16.msra.mxu0 %v1959
  %1978 = vmatprep.subr.bf16.mxu0 0
  %1979 = vmatpush1.bf16.msra.mxu0 %v1960
  %1980 = vmatprep.subr.bf16.mxu0 0
  %1981 = vmatpush1.bf16.msra.mxu0 %v1961
  %1982 = vmatprep.subr.bf16.mxu0 0
  %1983 = vmatpush1.bf16.msra.mxu0 %v1962
  %1984 = vmatprep.subr.bf16.mxu0 0
  %1985 = vmatpush1.bf16.msra.mxu0 %v1963
  %1986 = vmatprep.subr.bf16.mxu0 0
  %1987 = vmatpush1.bf16.msra.mxu0 %v1964
  %1988 = vmatprep.subr.bf16.mxu0 0
  %1989 = vmatpush1.bf16.msra.mxu0 %v1965
  %1990 = vmatprep.subr.bf16.mxu0 0
  %1991 = vmatpush1.bf16.msra.mxu0 0
  %1992 = vmatprep.subr.bf16.mxu0 0
  %1993 = vmatpush1.bf16.msra.mxu0 0
  %1994 = vmatprep.subr.bf16.mxu0 0
  %1995 = vmatpush1.bf16.msra.mxu0 0
  %1996 = vmatprep.subr.bf16.mxu0 0
  %1997 = vmatpush1.bf16.msra.mxu0 0
  %1998 = vmatprep.subr.bf16.mxu0 0
  %1999 = vmatpush1.bf16.msra.mxu0 0
  %2000 = vmatprep.subr.bf16.mxu0 0
  %2001 = vmatpush1.bf16.msra.mxu0 0
  %2002 = vmatprep.subr.bf16.mxu0 0
  %2003 = vmatpush1.bf16.msra.mxu0 0
  %2004 = vmatprep.subr.bf16.mxu0 0
  %2005 = vmatpush1.bf16.msra.mxu0 0
  %2006 = vmatprep.mubr.bf16.mxu0 0
  %2007 = vmatmul.mubr.bf16.gmra.mrb[0].mxu0 %v1897
  %v2008 = vpop.f32.mrb[0].mxu0
  %v2009 = vadd.f32 %v1924, %v2008
  %v2010 = vpop.f32.mrb[0].mxu0
  %v2011 = vpop.f32.mrb[0].mxu0
  %v2012 = vadd.f32 %v1924, %v2011
  %v2013 = vpop.f32.mrb[0].mxu0
  %2014 = vmatprep.mubr.bf16.mxu0 0
  %2015 = vmatmul.mubr.bf16.gmra.mrb[0].mxu0 %v1898
  %v2016 = vpop.f32.mrb[0].mxu0
  %v2017 = vadd.f32 %v1924, %v2016
  %v2018 = vpop.f32.mrb[0].mxu0
  %v2019 = vpop.f32.mrb[0].mxu0
  %v2020 = vadd.f32 %v1924, %v2019
  %v2021 = vpop.f32.mrb[0].mxu0
  %2022 = vmatprep.mubr.bf16.mxu0 0
  %2023 = vmatmul.mubr.bf16.gmra.mrb[0].mxu0 %v1899
  %v2024 = vpop.f32.mrb[0].mxu0
  %v2025 = vadd.f32 %v1924, %v2024
  %v2026 = vpop.f32.mrb[0].mxu0
  %v2027 = vpop.f32.mrb[0].mxu0
  %v2028 = vadd.f32 %v1924, %v2027
  %v2029 = vpop.f32.mrb[0].mxu0
  %2030 = vmatprep.mubr.bf16.mxu0 0
  %2031 = vmatmul.mubr.bf16.gmra.mrb[0].mxu0 %v1900
  %v2032 = vpop.f32.mrb[0].mxu0
  %v2033 = vadd.f32 %v1924, %v2032
  %v2034 = vpop.f32.mrb[0].mxu0
  %v2035 = vpop.f32.mrb[0].mxu0
  %v2036 = vadd.f32 %v1924, %v2035
  %v2037 = vpop.f32.mrb[0].mxu0
  %2038 = vdwg.mxu0
  %v2039 = vmax.f32 %v2009, 0.0
  %v2040 = vmax.f32 %v2012, 0.0
  %v2041 = vmax.f32 %v2017, 0.0
  %v2042 = vmax.f32 %v2020, 0.0
  %v2043 = vmax.f32 %v2025, 0.0
  %v2044 = vmax.f32 %v2028, 0.0
  %v2045 = vmax.f32 %v2033, 0.0
  %v2046 = vmax.f32 %v2036, 0.0
  %v2047 = vpack.c.bf16 %v2040, %v2039
  %v2048 = vpack.c.bf16 %v2042, %v2041
  %v2049 = vpack.c.bf16 %v2044, %v2043
  %v2050 = vpack.c.bf16 %v2046, %v2045
  %s2051 = scalar_lea.vmem %s7, 64
  %v2052 = vld [vmem:[%s2051] sm:$0xf]
  %v2053 = vld [vmem:[%s2051 + $0x4] sm:$0xf]
  %v2054 = vld [vmem:[%s2051 + $0x8] sm:$0xf]
  %v2055 = vld [vmem:[%s2051 + $0xc] sm:$0xf]
  %v2056 = vld [vmem:[%s2051 + $0x10] sm:$0xf]
  %v2057 = vld [vmem:[%s2051 + $0x14] sm:$0xf]
  %v2058 = vld [vmem:[%s2051 + $0x18] sm:$0xf]
  %v2059 = vld [vmem:[%s2051 + $0x1c] sm:$0xf]
  %v2060 = vld [vmem:[%s2051 + $0x20] sm:$0xf]
  %v2061 = vld [vmem:[%s2051 + $0x24] sm:$0xf]
  %v2062 = vld [vmem:[%s2051 + $0x28] sm:$0xf]
  %v2063 = vld [vmem:[%s2051 + $0x2c] sm:$0xf]
  %v2064 = vld [vmem:[%s2051 + $0x30] sm:$0xf]
  %v2065 = vld [vmem:[%s2051 + $0x34] sm:$0xf]
  %v2066 = vld [vmem:[%s2051 + $0x38] sm:$0xf]
  %v2067 = vld [vmem:[%s2051 + $0x3c] sm:$0xf]
  %s2068 = scalar_lea.vmem %s8, 1
  %v2069 = vld [vmem:[%s2068] sm:$0x1]
  %v2071 = vlaneseq
  %v2072 = vshrl.u32 %v2071, 7
  %v2073 = vsub.s32 0, %v2072
  %v2074 = vrot.slane %v2069, %v2073
  %v2092 = vunpack.c.l.b16 %v2052
  %v2093 = vunpack.c.l.b16 %v2053
  %v2094 = vunpack.c.l.b16 %v2054
  %v2095 = vunpack.c.l.b16 %v2055
  %v2096 = vunpack.c.l.b16 %v2056
  %v2097 = vunpack.c.l.b16 %v2057
  %v2098 = vunpack.c.l.b16 %v2058
  %v2099 = vunpack.c.l.b16 %v2059
  %v2100 = vunpack.c.l.b16 %v2060
  %v2101 = vunpack.c.l.b16 %v2061
  %v2102 = vunpack.c.l.b16 %v2062
  %v2103 = vunpack.c.l.b16 %v2063
  %v2104 = vunpack.c.l.b16 %v2064
  %v2105 = vunpack.c.l.b16 %v2065
  %v2106 = vunpack.c.l.b16 %v2066
  %v2107 = vunpack.c.l.b16 %v2067
  %v2108 = vpack.c.b16 %v2093, %v2092
  %v2109 = vpack.c.b16 %v2095, %v2094
  %v2110 = vpack.c.b16 %v2097, %v2096
  %v2111 = vpack.c.b16 %v2099, %v2098
  %v2112 = vpack.c.b16 %v2101, %v2100
  %v2113 = vpack.c.b16 %v2103, %v2102
  %v2114 = vpack.c.b16 %v2105, %v2104
  %v2115 = vpack.c.b16 %v2107, %v2106
  %2124 = vmatprep.subr.bf16.mxu0 0
  %2125 = vmatpush1.bf16.msra.mxu0 %v2108
  %2126 = vmatprep.subr.bf16.mxu0 0
  %2127 = vmatpush1.bf16.msra.mxu0 %v2109
  %2128 = vmatprep.subr.bf16.mxu0 0
  %2129 = vmatpush1.bf16.msra.mxu0 %v2110
  %2130 = vmatprep.subr.bf16.mxu0 0
  %2131 = vmatpush1.bf16.msra.mxu0 %v2111
  %2132 = vmatprep.subr.bf16.mxu0 0
  %2133 = vmatpush1.bf16.msra.mxu0 %v2112
  %2134 = vmatprep.subr.bf16.mxu0 0
  %2135 = vmatpush1.bf16.msra.mxu0 %v2113
  %2136 = vmatprep.subr.bf16.mxu0 0
  %2137 = vmatpush1.bf16.msra.mxu0 %v2114
  %2138 = vmatprep.subr.bf16.mxu0 0
  %2139 = vmatpush1.bf16.msra.mxu0 %v2115
  %2140 = vmatprep.subr.bf16.mxu0 0
  %2141 = vmatpush1.bf16.msra.mxu0 0
  %2142 = vmatprep.subr.bf16.mxu0 0
  %2143 = vmatpush1.bf16.msra.mxu0 0
  %2144 = vmatprep.subr.bf16.mxu0 0
  %2145 = vmatpush1.bf16.msra.mxu0 0
  %2146 = vmatprep.subr.bf16.mxu0 0
  %2147 = vmatpush1.bf16.msra.mxu0 0
  %2148 = vmatprep.subr.bf16.mxu0 0
  %2149 = vmatpush1.bf16.msra.mxu0 0
  %2150 = vmatprep.subr.bf16.mxu0 0
  %2151 = vmatpush1.bf16.msra.mxu0 0
  %2152 = vmatprep.subr.bf16.mxu0 0
  %2153 = vmatpush1.bf16.msra.mxu0 0
  %2154 = vmatprep.subr.bf16.mxu0 0
  %2155 = vmatpush1.bf16.msra.mxu0 0
  %2156 = vmatprep.mubr.bf16.mxu0 0
  %2157 = vmatmul.mubr.bf16.gmra.mrb[0].mxu0 %v2047
  %v2158 = vpop.f32.mrb[0].mxu0
  %v2159 = vadd.f32 %v2074, %v2158
  %v2160 = vpop.f32.mrb[0].mxu0
  %v2161 = vpop.f32.mrb[0].mxu0
  %v2162 = vadd.f32 %v2074, %v2161
  %v2163 = vpop.f32.mrb[0].mxu0
  %2164 = vmatprep.mubr.bf16.mxu0 0
  %2165 = vmatmul.mubr.bf16.gmra.mrb[0].mxu0 %v2048
  %v2166 = vpop.f32.mrb[0].mxu0
  %v2167 = vadd.f32 %v2074, %v2166
  %v2168 = vpop.f32.mrb[0].mxu0
  %v2169 = vpop.f32.mrb[0].mxu0
  %v2170 = vadd.f32 %v2074, %v2169
  %v2171 = vpop.f32.mrb[0].mxu0
  %2172 = vmatprep.mubr.bf16.mxu0 0
  %2173 = vmatmul.mubr.bf16.gmra.mrb[0].mxu0 %v2049
  %v2174 = vpop.f32.mrb[0].mxu0
  %v2175 = vadd.f32 %v2074, %v2174
  %v2176 = vpop.f32.mrb[0].mxu0
  %v2177 = vpop.f32.mrb[0].mxu0
  %v2178 = vadd.f32 %v2074, %v2177
  %v2179 = vpop.f32.mrb[0].mxu0
  %2180 = vmatprep.mubr.bf16.mxu0 0
  %2181 = vmatmul.mubr.bf16.gmra.mrb[0].mxu0 %v2050
  %v2182 = vpop.f32.mrb[0].mxu0
  %v2183 = vadd.f32 %v2074, %v2182
  %v2184 = vpop.f32.mrb[0].mxu0
  %v2185 = vpop.f32.mrb[0].mxu0
  %v2186 = vadd.f32 %v2074, %v2185
  %v2187 = vpop.f32.mrb[0].mxu0
  %2188 = vdwg.mxu0
  %v2189 = vmax.f32 %v2159, 0.0
  %v2190 = vmax.f32 %v2162, 0.0
  %v2191 = vmax.f32 %v2167, 0.0
  %v2192 = vmax.f32 %v2170, 0.0
  %v2193 = vmax.f32 %v2175, 0.0
  %v2194 = vmax.f32 %v2178, 0.0
  %v2195 = vmax.f32 %v2183, 0.0
  %v2196 = vmax.f32 %v2186, 0.0
  %v2197 = vpack.c.bf16 %v2190, %v2189
  %v2198 = vpack.c.bf16 %v2192, %v2191
  %v2199 = vpack.c.bf16 %v2194, %v2193
  %v2200 = vpack.c.bf16 %v2196, %v2195
  %s2201 = scalar_lea.vmem %s9, 16
  %v2202 = vld [vmem:[%s2201] sm:$0xf]
  %v2203 = vld [vmem:[%s2201 + $0x4] sm:$0xf]
  %v2204 = vld [vmem:[%s2201 + $0x8] sm:$0xf]
  %v2205 = vld [vmem:[%s2201 + $0xc] sm:$0xf]
  %s2206 = scalar_lea.vmem %s10, 1
  %v2207 = vld [vmem:[%s2206] sm:$0x1]
  %v2209 = vlaneseq
  %v2210 = vshrl.u32 %v2209, 7
  %v2211 = vsub.s32 0, %v2210
  %v2212 = vrot.slane %v2207, %v2211
  %v2218 = vunpack.c.l.b16 %v2202
  %v2219 = vunpack.c.l.b16 %v2203
  %v2220 = vunpack.c.l.b16 %v2204
  %v2221 = vunpack.c.l.b16 %v2205
  %v2222 = vpack.c.b16 %v2219, %v2218
  %v2223 = vpack.c.b16 %v2221, %v2220
  %v2227 = vsel %vm1082, %v2197, 0
  %v2230 = vsel %vm1082, %v2198, 0
  %v2233 = vsel %vm1082, %v2199, 0
  %v2236 = vsel %vm1082, %v2200, 0
  %2238 = vmatprep.subr.bf16.mxu0 0
  %2239 = vmatpush1.bf16.msra.mxu0 %v2222
  %2240 = vmatprep.subr.bf16.mxu0 0
  %2241 = vmatpush1.bf16.msra.mxu0 %v2223
  %2242 = vmatprep.subr.bf16.mxu0 0
  %2243 = vmatpush1.bf16.msra.mxu0 0
  %2244 = vmatprep.subr.bf16.mxu0 0
  %2245 = vmatpush1.bf16.msra.mxu0 0
  %2246 = vmatprep.subr.bf16.mxu0 0
  %2247 = vmatpush1.bf16.msra.mxu0 0
  %2248 = vmatprep.subr.bf16.mxu0 0
  %2249 = vmatpush1.bf16.msra.mxu0 0
  %2250 = vmatprep.subr.bf16.mxu0 0
  %2251 = vmatpush1.bf16.msra.mxu0 0
  %2252 = vmatprep.subr.bf16.mxu0 0
  %2253 = vmatpush1.bf16.msra.mxu0 0
  %2254 = vmatprep.subr.bf16.mxu0 0
  %2255 = vmatpush1.bf16.msra.mxu0 0
  %2256 = vmatprep.subr.bf16.mxu0 0
  %2257 = vmatpush1.bf16.msra.mxu0 0
  %2258 = vmatprep.subr.bf16.mxu0 0
  %2259 = vmatpush1.bf16.msra.mxu0 0
  %2260 = vmatprep.subr.bf16.mxu0 0
  %2261 = vmatpush1.bf16.msra.mxu0 0
  %2262 = vmatprep.subr.bf16.mxu0 0
  %2263 = vmatpush1.bf16.msra.mxu0 0
  %2264 = vmatprep.subr.bf16.mxu0 0
  %2265 = vmatpush1.bf16.msra.mxu0 0
  %2266 = vmatprep.subr.bf16.mxu0 0
  %2267 = vmatpush1.bf16.msra.mxu0 0
  %2268 = vmatprep.subr.bf16.mxu0 0
  %2269 = vmatpush1.bf16.msra.mxu0 0
  %2270 = vmatprep.mubr.bf16.mxu0 0
  %2271 = vmatmul.mubr.bf16.gmra.mrb[0].mxu0 %v2227
  %v2272 = vpop.f32.mrb[0].mxu0
  %v2273 = vadd.f32 %v2212, %v2272
  %v2274 = vpop.f32.mrb[0].mxu0
  %v2275 = vpop.f32.mrb[0].mxu0
  %v2276 = vadd.f32 %v2212, %v2275
  %v2277 = vpop.f32.mrb[0].mxu0
  %2278 = vmatprep.mubr.bf16.mxu0 0
  %2279 = vmatmul.mubr.bf16.gmra.mrb[0].mxu0 %v2230
  %v2280 = vpop.f32.mrb[0].mxu0
  %v2281 = vadd.f32 %v2212, %v2280
  %v2282 = vpop.f32.mrb[0].mxu0
  %v2283 = vpop.f32.mrb[0].mxu0
  %v2284 = vadd.f32 %v2212, %v2283
  %v2285 = vpop.f32.mrb[0].mxu0
  %2286 = vmatprep.mubr.bf16.mxu0 0
  %2287 = vmatmul.mubr.bf16.gmra.mrb[0].mxu0 %v2233
  %v2288 = vpop.f32.mrb[0].mxu0
  %v2289 = vadd.f32 %v2212, %v2288
  %v2290 = vpop.f32.mrb[0].mxu0
  %v2291 = vpop.f32.mrb[0].mxu0
  %v2292 = vadd.f32 %v2212, %v2291
  %v2293 = vpop.f32.mrb[0].mxu0
  %2294 = vmatprep.mubr.bf16.mxu0 0
  %2295 = vmatmul.mubr.bf16.gmra.mrb[0].mxu0 %v2236
  %v2296 = vpop.f32.mrb[0].mxu0
  %v2297 = vadd.f32 %v2212, %v2296
  %v2298 = vpop.f32.mrb[0].mxu0
  %v2299 = vpop.f32.mrb[0].mxu0
  %v2300 = vadd.f32 %v2212, %v2299
  %v2301 = vpop.f32.mrb[0].mxu0
  %2302 = vdwg.mxu0
  %2303 = vmatprep.subr.mxu0 0.0
  %2304 = vmatpush1.msra.mxu0 %v2273
  %2305 = vmatprep.subr.mxu0 0.0
  %2306 = vmatpush1.msra.mxu0 %v2276
  %2307 = vmatprep.subr.mxu0 0.0
  %2308 = vmatpush1.msra.mxu0 %v2281
  %2309 = vmatprep.subr.mxu0 0.0
  %2310 = vmatpush1.msra.mxu0 %v2284
  %2311 = vmatprep.subr.mxu0 0.0
  %2312 = vmatpush1.msra.mxu0 %v2289
  %2313 = vmatprep.subr.mxu0 0.0
  %2314 = vmatpush1.msra.mxu0 %v2292
  %2315 = vmatprep.subr.mxu0 0.0
  %2316 = vmatpush1.msra.mxu0 %v2297
  %2317 = vmatprep.subr.mxu0 0.0
  %2318 = vmatpush1.msra.mxu0 %v2300
  %2319 = vmatprep.subr.mxu0 0.0
  %2320 = vmatpush1.msra.mxu0 0.0
  %2321 = vmatprep.subr.mxu0 0.0
  %2322 = vmatpush1.msra.mxu0 0.0
  %2323 = vmatprep.subr.mxu0 0.0
  %2324 = vmatpush1.msra.mxu0 0.0
  %2325 = vmatprep.subr.mxu0 0.0
  %2326 = vmatpush1.msra.mxu0 0.0
  %2327 = vmatprep.subr.mxu0 0.0
  %2328 = vmatpush1.msra.mxu0 0.0
  %2329 = vmatprep.subr.mxu0 0.0
  %2330 = vmatpush1.msra.mxu0 0.0
  %2331 = vmatprep.subr.mxu0 0.0
  %2332 = vmatpush1.msra.mxu0 0.0
  %2333 = vmatprep.subr.mxu0 0.0
  %2334 = vmatpush1.msra.mxu0 0.0
  %2335 = vmatprep.subr.mxu0 0.0
  %2336 = vmatpush1.msra.mxu0 0.0
  %2337 = vmatprep.subr.mxu0 0.0
  %2338 = vmatpush1.msra.mxu0 0.0
  %2339 = vmatprep.subr.mxu0 0.0
  %2340 = vmatpush1.msra.mxu0 0.0
  %2341 = vmatprep.subr.mxu0 0.0
  %2342 = vmatpush1.msra.mxu0 0.0
  %2343 = vmatprep.subr.mxu0 0.0
  %2344 = vmatpush1.msra.mxu0 0.0
  %2345 = vmatprep.subr.mxu0 0.0
  %2346 = vmatpush1.msra.mxu0 0.0
  %2347 = vmatprep.subr.mxu0 0.0
  %2348 = vmatpush1.msra.mxu0 0.0
  %2349 = vmatprep.subr.mxu0 0.0
  %2350 = vmatpush1.msra.mxu0 0.0
  %2351 = vmatprep.subr.mxu0 0.0
  %2352 = vmatpush1.msra.mxu0 0.0
  %2353 = vmatprep.subr.mxu0 0.0
  %2354 = vmatpush1.msra.mxu0 0.0
  %2355 = vmatprep.subr.mxu0 0.0
  %2356 = vmatpush1.msra.mxu0 0.0
  %2357 = vmatprep.subr.mxu0 0.0
  %2358 = vmatpush1.msra.mxu0 0.0
  %2359 = vmatprep.subr.mxu0 0.0
  %2360 = vmatpush1.msra.mxu0 0.0
  %2361 = vmatprep.subr.mxu0 0.0
  %2362 = vmatpush1.msra.mxu0 0.0
  %2363 = vmatprep.subr.mxu0 0.0
  %2364 = vmatpush1.msra.mxu0 0.0
  %2365 = vmatprep.subr.mxu0 0.0
  %2366 = vmatpush1.msra.mxu0 0.0
  %2367 = vmatprep.mubr.f32.mxu0 0.0
  %2368 = vmatmul.mubr.f32.gmra.mrb[0].mxu0 %v1161
  %v2369 = vpop.f32.mrb[0].mxu0
  %v2370 = vadd.f32 0.0, %v2369
  %v2371 = vpop.f32.mrb[0].mxu0
  %2372 = vdwg.mxu0
  %v2373 = vmul.f32 %v2273, %v2273
  %v2374 = vmul.f32 %v2276, %v2276
  %v2375 = vmul.f32 %v2281, %v2281
  %v2376 = vmul.f32 %v2284, %v2284
  %v2377 = vmul.f32 %v2289, %v2289
  %v2378 = vmul.f32 %v2292, %v2292
  %v2379 = vmul.f32 %v2297, %v2297
  %v2380 = vmul.f32 %v2300, %v2300
  %2381 = vmatprep.subr.mxu0 0.0
  %2382 = vmatpush1.msra.mxu0 %v2373
  %2383 = vmatprep.subr.mxu0 0.0
  %2384 = vmatpush1.msra.mxu0 %v2374
  %2385 = vmatprep.subr.mxu0 0.0
  %2386 = vmatpush1.msra.mxu0 %v2375
  %2387 = vmatprep.subr.mxu0 0.0
  %2388 = vmatpush1.msra.mxu0 %v2376
  %2389 = vmatprep.subr.mxu0 0.0
  %2390 = vmatpush1.msra.mxu0 %v2377
  %2391 = vmatprep.subr.mxu0 0.0
  %2392 = vmatpush1.msra.mxu0 %v2378
  %2393 = vmatprep.subr.mxu0 0.0
  %2394 = vmatpush1.msra.mxu0 %v2379
  %2395 = vmatprep.subr.mxu0 0.0
  %2396 = vmatpush1.msra.mxu0 %v2380
  %2397 = vmatprep.subr.mxu0 0.0
  %2398 = vmatpush1.msra.mxu0 0.0
  %2399 = vmatprep.subr.mxu0 0.0
  %2400 = vmatpush1.msra.mxu0 0.0
  %2401 = vmatprep.subr.mxu0 0.0
  %2402 = vmatpush1.msra.mxu0 0.0
  %2403 = vmatprep.subr.mxu0 0.0
  %2404 = vmatpush1.msra.mxu0 0.0
  %2405 = vmatprep.subr.mxu0 0.0
  %2406 = vmatpush1.msra.mxu0 0.0
  %2407 = vmatprep.subr.mxu0 0.0
  %2408 = vmatpush1.msra.mxu0 0.0
  %2409 = vmatprep.subr.mxu0 0.0
  %2410 = vmatpush1.msra.mxu0 0.0
  %2411 = vmatprep.subr.mxu0 0.0
  %2412 = vmatpush1.msra.mxu0 0.0
  %2413 = vmatprep.subr.mxu0 0.0
  %2414 = vmatpush1.msra.mxu0 0.0
  %2415 = vmatprep.subr.mxu0 0.0
  %2416 = vmatpush1.msra.mxu0 0.0
  %2417 = vmatprep.subr.mxu0 0.0
  %2418 = vmatpush1.msra.mxu0 0.0
  %2419 = vmatprep.subr.mxu0 0.0
  %2420 = vmatpush1.msra.mxu0 0.0
  %2421 = vmatprep.subr.mxu0 0.0
  %2422 = vmatpush1.msra.mxu0 0.0
  %2423 = vmatprep.subr.mxu0 0.0
  %2424 = vmatpush1.msra.mxu0 0.0
  %2425 = vmatprep.subr.mxu0 0.0
  %2426 = vmatpush1.msra.mxu0 0.0
  %2427 = vmatprep.subr.mxu0 0.0
  %2428 = vmatpush1.msra.mxu0 0.0
  %2429 = vmatprep.subr.mxu0 0.0
  %2430 = vmatpush1.msra.mxu0 0.0
  %2431 = vmatprep.subr.mxu0 0.0
  %2432 = vmatpush1.msra.mxu0 0.0
  %2433 = vmatprep.subr.mxu0 0.0
  %2434 = vmatpush1.msra.mxu0 0.0
  %2435 = vmatprep.subr.mxu0 0.0
  %2436 = vmatpush1.msra.mxu0 0.0
  %2437 = vmatprep.subr.mxu0 0.0
  %2438 = vmatpush1.msra.mxu0 0.0
  %2439 = vmatprep.subr.mxu0 0.0
  %2440 = vmatpush1.msra.mxu0 0.0
  %2441 = vmatprep.subr.mxu0 0.0
  %2442 = vmatpush1.msra.mxu0 0.0
  %2443 = vmatprep.subr.mxu0 0.0
  %2444 = vmatpush1.msra.mxu0 0.0
  %2445 = vmatprep.mubr.f32.mxu0 0.0
  %2446 = vmatmul.mubr.f32.gmra.mrb[0].mxu0 %v1161
  %v2447 = vpop.f32.mrb[0].mxu0
  %v2448 = vadd.f32 0.0, %v2447
  %v2449 = vpop.f32.mrb[0].mxu0
  %2450 = vdwg.mxu0
  %v2451 = vmul.f32 %v2370, 0.015625
  %v2452 = vmul.f32 %v2448, 0.015625
  %v2453 = vmul.f32 %v2451, %v2451
  %v2454 = vsub.f32 %v2452, %v2453
  %s2455 = scalar_lea.vmem %s11, 1
  %v2456 = vld [vmem:[%s2455] sm:$0x1]
  %v2457 = vlaneseq
  %v2458 = vshrl.u32 %v2457, 7
  %v2459 = vsub.s32 0, %v2458
  %v2460 = vrot.slane %v2451, %v2459
  %v2461 = vsub.f32 %v2273, %v2460
  %v2462 = vsub.f32 %v2276, %v2460
  %v2463 = vsub.f32 %v2281, %v2460
  %v2464 = vsub.f32 %v2284, %v2460
  %v2465 = vsub.f32 %v2289, %v2460
  %v2466 = vsub.f32 %v2292, %v2460
  %v2467 = vsub.f32 %v2297, %v2460
  %v2468 = vsub.f32 %v2300, %v2460
  %v2470 = vlaneseq
  %v2471 = vshrl.u32 %v2470, 7
  %v2472 = vsub.s32 0, %v2471
  %v2473 = vrot.slane %v2456, %v2472
  %v2475 = vmul.f32 %v2473, %v2461
  %v2476 = vmul.f32 %v2473, %v2462
  %v2477 = vmul.f32 %v2473, %v2463
  %v2478 = vmul.f32 %v2473, %v2464
  %v2479 = vmul.f32 %v2473, %v2465
  %v2480 = vmul.f32 %v2473, %v2466
  %v2481 = vmul.f32 %v2473, %v2467
  %v2482 = vmul.f32 %v2473, %v2468
  %v2483 = vadd.f32 %v2454, 1e-05
  %v2484 = vrsqrt.pop %v2483
  %v2485 = vlaneseq
  %v2486 = vshrl.u32 %v2485, 7
  %v2487 = vsub.s32 0, %v2486
  %v2488 = vrot.slane %v2484, %v2487
  %v2489 = vmul.f32 %v2475, %v2488
  %v2490 = vmul.f32 %v2476, %v2488
  %v2491 = vmul.f32 %v2477, %v2488
  %v2492 = vmul.f32 %v2478, %v2488
  %v2493 = vmul.f32 %v2479, %v2488
  %v2494 = vmul.f32 %v2480, %v2488
  %v2495 = vmul.f32 %v2481, %v2488
  %v2496 = vmul.f32 %v2482, %v2488
  %s2497 = scalar_lea.vmem %s12, 1
  %v2498 = vld [vmem:[%s2497] sm:$0x1]
  %v2500 = vlaneseq
  %v2501 = vshrl.u32 %v2500, 7
  %v2502 = vsub.s32 0, %v2501
  %v2503 = vrot.slane %v2498, %v2502
  %v2505 = vadd.f32 %v2489, %v2503
  %v2506 = vadd.f32 %v2490, %v2503
  %v2507 = vadd.f32 %v2491, %v2503
  %v2508 = vadd.f32 %v2492, %v2503
  %v2509 = vadd.f32 %v2493, %v2503
  %v2510 = vadd.f32 %v2494, %v2503
  %v2511 = vadd.f32 %v2495, %v2503
  %v2512 = vadd.f32 %v2496, %v2503
  %2513 = vmatprep.subr.mxu0 0.0
  %2514 = vmatpush1.msra.mxu0 %v2505
  %2515 = vmatprep.subr.mxu0 0.0
  %2516 = vmatpush1.msra.mxu0 %v2506
  %2517 = vmatprep.subr.mxu0 0.0
  %2518 = vmatpush1.msra.mxu0 %v2507
  %2519 = vmatprep.subr.mxu0 0.0
  %2520 = vmatpush1.msra.mxu0 %v2508
  %2521 = vmatprep.subr.mxu0 0.0
  %2522 = vmatpush1.msra.mxu0 %v2509
  %2523 = vmatprep.subr.mxu0 0.0
  %2524 = vmatpush1.msra.mxu0 %v2510
  %2525 = vmatprep.subr.mxu0 0.0
  %2526 = vmatpush1.msra.mxu0 %v2511
  %2527 = vmatprep.subr.mxu0 0.0
  %2528 = vmatpush1.msra.mxu0 %v2512
  %2529 = vmatprep.subr.mxu0 0.0
  %2530 = vmatpush1.msra.mxu0 0.0
  %2531 = vmatprep.subr.mxu0 0.0
  %2532 = vmatpush1.msra.mxu0 0.0
  %2533 = vmatprep.subr.mxu0 0.0
  %2534 = vmatpush1.msra.mxu0 0.0
  %2535 = vmatprep.subr.mxu0 0.0
  %2536 = vmatpush1.msra.mxu0 0.0
  %2537 = vmatprep.subr.mxu0 0.0
  %2538 = vmatpush1.msra.mxu0 0.0
  %2539 = vmatprep.subr.mxu0 0.0
  %2540 = vmatpush1.msra.mxu0 0.0
  %2541 = vmatprep.subr.mxu0 0.0
  %2542 = vmatpush1.msra.mxu0 0.0
  %2543 = vmatprep.subr.mxu0 0.0
  %2544 = vmatpush1.msra.mxu0 0.0
  %2545 = vmatprep.subr.mxu0 0.0
  %2546 = vmatpush1.msra.mxu0 0.0
  %2547 = vmatprep.subr.mxu0 0.0
  %2548 = vmatpush1.msra.mxu0 0.0
  %2549 = vmatprep.subr.mxu0 0.0
  %2550 = vmatpush1.msra.mxu0 0.0
  %2551 = vmatprep.subr.mxu0 0.0
  %2552 = vmatpush1.msra.mxu0 0.0
  %2553 = vmatprep.subr.mxu0 0.0
  %2554 = vmatpush1.msra.mxu0 0.0
  %2555 = vmatprep.subr.mxu0 0.0
  %2556 = vmatpush1.msra.mxu0 0.0
  %2557 = vmatprep.subr.mxu0 0.0
  %2558 = vmatpush1.msra.mxu0 0.0
  %2559 = vmatprep.subr.mxu0 0.0
  %2560 = vmatpush1.msra.mxu0 0.0
  %2561 = vmatprep.subr.mxu0 0.0
  %2562 = vmatpush1.msra.mxu0 0.0
  %2563 = vmatprep.subr.mxu0 0.0
  %2564 = vmatpush1.msra.mxu0 0.0
  %2565 = vmatprep.subr.mxu0 0.0
  %2566 = vmatpush1.msra.mxu0 0.0
  %2567 = vmatprep.subr.mxu0 0.0
  %2568 = vmatpush1.msra.mxu0 0.0
  %2569 = vmatprep.subr.mxu0 0.0
  %2570 = vmatpush1.msra.mxu0 0.0
  %2571 = vmatprep.subr.mxu0 0.0
  %2572 = vmatpush1.msra.mxu0 0.0
  %2573 = vmatprep.subr.mxu0 0.0
  %2574 = vmatpush1.msra.mxu0 0.0
  %2575 = vmatprep.subr.mxu0 0.0
  %2576 = vmatpush1.msra.mxu0 0.0
  %2577 = vmatprep.mubr.f32.mxu0 0.0
  %2578 = vmatmul.mubr.f32.gmra.mrb[0].mxu0 %v1372
  %v2579 = vpop.f32.mrb[0].mxu0
  %v2580 = vadd.f32 0.0, %v2579
  %v2581 = vpop.f32.mrb[0].mxu0
  %2582 = vdwg.mxu0
  %v2583 = vld [vmem:[%s15 + $0x20] sm:$0xff]
  %v2584 = vld [vmem:[%s15 + $0x28] sm:$0xff]
  %v2585 = vld [vmem:[%s15 + $0x30] sm:$0xff]
  %v2586 = vld [vmem:[%s15 + $0x38] sm:$0xff]
  %v2588 = vsel %vm1082, %v2580, 0
  %2590 = vmatprep.subr.mxu0 0.0
  %2591 = vmatpush1.msra.mxu0 %v2583
  %2592 = vmatprep.subr.mxu0 0.0
  %2593 = vmatpush1.msra.mxu0 %v2584
  %2594 = vmatprep.subr.mxu0 0.0
  %2595 = vmatpush1.msra.mxu0 %v2585
  %2596 = vmatprep.subr.mxu0 0.0
  %2597 = vmatpush1.msra.mxu0 %v2586
  %2598 = vmatprep.subr.mxu0 0.0
  %2599 = vmatpush1.msra.mxu0 0.0
  %2600 = vmatprep.subr.mxu0 0.0
  %2601 = vmatpush1.msra.mxu0 0.0
  %2602 = vmatprep.subr.mxu0 0.0
  %2603 = vmatpush1.msra.mxu0 0.0
  %2604 = vmatprep.subr.mxu0 0.0
  %2605 = vmatpush1.msra.mxu0 0.0
  %2606 = vmatprep.subr.mxu0 0.0
  %2607 = vmatpush1.msra.mxu0 0.0
  %2608 = vmatprep.subr.mxu0 0.0
  %2609 = vmatpush1.msra.mxu0 0.0
  %2610 = vmatprep.subr.mxu0 0.0
  %2611 = vmatpush1.msra.mxu0 0.0
  %2612 = vmatprep.subr.mxu0 0.0
  %2613 = vmatpush1.msra.mxu0 0.0
  %2614 = vmatprep.subr.mxu0 0.0
  %2615 = vmatpush1.msra.mxu0 0.0
  %2616 = vmatprep.subr.mxu0 0.0
  %2617 = vmatpush1.msra.mxu0 0.0
  %2618 = vmatprep.subr.mxu0 0.0
  %2619 = vmatpush1.msra.mxu0 0.0
  %2620 = vmatprep.subr.mxu0 0.0
  %2621 = vmatpush1.msra.mxu0 0.0
  %2622 = vmatprep.subr.mxu0 0.0
  %2623 = vmatpush1.msra.mxu0 0.0
  %2624 = vmatprep.subr.mxu0 0.0
  %2625 = vmatpush1.msra.mxu0 0.0
  %2626 = vmatprep.subr.mxu0 0.0
  %2627 = vmatpush1.msra.mxu0 0.0
  %2628 = vmatprep.subr.mxu0 0.0
  %2629 = vmatpush1.msra.mxu0 0.0
  %2630 = vmatprep.subr.mxu0 0.0
  %2631 = vmatpush1.msra.mxu0 0.0
  %2632 = vmatprep.subr.mxu0 0.0
  %2633 = vmatpush1.msra.mxu0 0.0
  %2634 = vmatprep.subr.mxu0 0.0
  %2635 = vmatpush1.msra.mxu0 0.0
  %2636 = vmatprep.subr.mxu0 0.0
  %2637 = vmatpush1.msra.mxu0 0.0
  %2638 = vmatprep.subr.mxu0 0.0
  %2639 = vmatpush1.msra.mxu0 0.0
  %2640 = vmatprep.subr.mxu0 0.0
  %2641 = vmatpush1.msra.mxu0 0.0
  %2642 = vmatprep.subr.mxu0 0.0
  %2643 = vmatpush1.msra.mxu0 0.0
  %2644 = vmatprep.subr.mxu0 0.0
  %2645 = vmatpush1.msra.mxu0 0.0
  %2646 = vmatprep.subr.mxu0 0.0
  %2647 = vmatpush1.msra.mxu0 0.0
  %2648 = vmatprep.subr.mxu0 0.0
  %2649 = vmatpush1.msra.mxu0 0.0
  %2650 = vmatprep.subr.mxu0 0.0
  %2651 = vmatpush1.msra.mxu0 0.0
  %2652 = vmatprep.subr.mxu0 0.0
  %2653 = vmatpush1.msra.mxu0 0.0
  %2654 = vmatprep.mubr.f32.mxu0 0.0
  %2655 = vmatmul.mubr.f32.gmra.mrb[0].mxu0 %v2588
  %v2656 = vpop.f32.mrb[0].mxu0
  %v2657 = vadd.f32 0.0, %v2656
  %v2658 = vpop.f32.mrb[0].mxu0
  %2659 = vdwg.mxu0
  %v2661 = vsel %vm1082, %v1441, 0
  %2663 = vmatprep.subr.mxu0 0.0
  %2664 = vmatpush1.msra.mxu0 %v1444
  %2665 = vmatprep.subr.mxu0 0.0
  %2666 = vmatpush1.msra.mxu0 %v1445
  %2667 = vmatprep.subr.mxu0 0.0
  %2668 = vmatpush1.msra.mxu0 %v1446
  %2669 = vmatprep.subr.mxu0 0.0
  %2670 = vmatpush1.msra.mxu0 %v1447
  %2671 = vmatprep.subr.mxu0 0.0
  %2672 = vmatpush1.msra.mxu0 0.0
  %2673 = vmatprep.subr.mxu0 0.0
  %2674 = vmatpush1.msra.mxu0 0.0
  %2675 = vmatprep.subr.mxu0 0.0
  %2676 = vmatpush1.msra.mxu0 0.0
  %2677 = vmatprep.subr.mxu0 0.0
  %2678 = vmatpush1.msra.mxu0 0.0
  %2679 = vmatprep.subr.mxu0 0.0
  %2680 = vmatpush1.msra.mxu0 0.0
  %2681 = vmatprep.subr.mxu0 0.0
  %2682 = vmatpush1.msra.mxu0 0.0
  %2683 = vmatprep.subr.mxu0 0.0
  %2684 = vmatpush1.msra.mxu0 0.0
  %2685 = vmatprep.subr.mxu0 0.0
  %2686 = vmatpush1.msra.mxu0 0.0
  %2687 = vmatprep.subr.mxu0 0.0
  %2688 = vmatpush1.msra.mxu0 0.0
  %2689 = vmatprep.subr.mxu0 0.0
  %2690 = vmatpush1.msra.mxu0 0.0
  %2691 = vmatprep.subr.mxu0 0.0
  %2692 = vmatpush1.msra.mxu0 0.0
  %2693 = vmatprep.subr.mxu0 0.0
  %2694 = vmatpush1.msra.mxu0 0.0
  %2695 = vmatprep.subr.mxu0 0.0
  %2696 = vmatpush1.msra.mxu0 0.0
  %2697 = vmatprep.subr.mxu0 0.0
  %2698 = vmatpush1.msra.mxu0 0.0
  %2699 = vmatprep.subr.mxu0 0.0
  %2700 = vmatpush1.msra.mxu0 0.0
  %2701 = vmatprep.subr.mxu0 0.0
  %2702 = vmatpush1.msra.mxu0 0.0
  %2703 = vmatprep.subr.mxu0 0.0
  %2704 = vmatpush1.msra.mxu0 0.0
  %2705 = vmatprep.subr.mxu0 0.0
  %2706 = vmatpush1.msra.mxu0 0.0
  %2707 = vmatprep.subr.mxu0 0.0
  %2708 = vmatpush1.msra.mxu0 0.0
  %2709 = vmatprep.subr.mxu0 0.0
  %2710 = vmatpush1.msra.mxu0 0.0
  %2711 = vmatprep.subr.mxu0 0.0
  %2712 = vmatpush1.msra.mxu0 0.0
  %2713 = vmatprep.subr.mxu0 0.0
  %2714 = vmatpush1.msra.mxu0 0.0
  %2715 = vmatprep.subr.mxu0 0.0
  %2716 = vmatpush1.msra.mxu0 0.0
  %2717 = vmatprep.subr.mxu0 0.0
  %2718 = vmatpush1.msra.mxu0 0.0
  %2719 = vmatprep.subr.mxu0 0.0
  %2720 = vmatpush1.msra.mxu0 0.0
  %2721 = vmatprep.subr.mxu0 0.0
  %2722 = vmatpush1.msra.mxu0 0.0
  %2723 = vmatprep.subr.mxu0 0.0
  %2724 = vmatpush1.msra.mxu0 0.0
  %2725 = vmatprep.subr.mxu0 0.0
  %2726 = vmatpush1.msra.mxu0 0.0
  %2727 = vmatprep.mubr.f32.mxu0 0.0
  %2728 = vmatmul.mubr.f32.gmra.mrb[0].mxu0 %v2661
  %v2729 = vpop.f32.mrb[0].mxu0
  %v2730 = vadd.f32 %v2657, %v2729
  %v2731 = vpop.f32.mrb[0].mxu0
  %2732 = vdwg.mxu0
  %v2733 = vpack.c.bf16 %v2506, %v2505
  %v2734 = vpack.c.bf16 %v2508, %v2507
  %v2735 = vpack.c.bf16 %v2510, %v2509
  %v2736 = vpack.c.bf16 %v2512, %v2511
  %s2737 = scalar_lea.vmem %s13, 16
  %v2738 = vld [vmem:[%s2737] sm:$0xf]
  %v2739 = vld [vmem:[%s2737 + $0x4] sm:$0xf]
  %v2740 = vld [vmem:[%s2737 + $0x8] sm:$0xf]
  %v2741 = vld [vmem:[%s2737 + $0xc] sm:$0xf]
  %v2746 = vunpack.c.l.b16 %v2738
  %v2747 = vunpack.c.l.b16 %v2739
  %v2748 = vunpack.c.l.b16 %v2740
  %v2749 = vunpack.c.l.b16 %v2741
  %v2750 = vpack.c.b16 %v2747, %v2746
  %v2751 = vpack.c.b16 %v2749, %v2748
  %v2755 = vsel %vm1082, %v2733, 0
  %v2758 = vsel %vm1082, %v2734, 0
  %v2761 = vsel %vm1082, %v2735, 0
  %v2764 = vsel %vm1082, %v2736, 0
  %2766 = vmatprep.subr.bf16.mxu0 0
  %2767 = vmatpush1.bf16.msra.mxu0 %v2750
  %2768 = vmatprep.subr.bf16.mxu0 0
  %2769 = vmatpush1.bf16.msra.mxu0 %v2751
  %2770 = vmatprep.subr.bf16.mxu0 0
  %2771 = vmatpush1.bf16.msra.mxu0 0
  %2772 = vmatprep.subr.bf16.mxu0 0
  %2773 = vmatpush1.bf16.msra.mxu0 0
  %2774 = vmatprep.subr.bf16.mxu0 0
  %2775 = vmatpush1.bf16.msra.mxu0 0
  %2776 = vmatprep.subr.bf16.mxu0 0
  %2777 = vmatpush1.bf16.msra.mxu0 0
  %2778 = vmatprep.subr.bf16.mxu0 0
  %2779 = vmatpush1.bf16.msra.mxu0 0
  %2780 = vmatprep.subr.bf16.mxu0 0
  %2781 = vmatpush1.bf16.msra.mxu0 0
  %2782 = vmatprep.subr.bf16.mxu0 0
  %2783 = vmatpush1.bf16.msra.mxu0 0
  %2784 = vmatprep.subr.bf16.mxu0 0
  %2785 = vmatpush1.bf16.msra.mxu0 0
  %2786 = vmatprep.subr.bf16.mxu0 0
  %2787 = vmatpush1.bf16.msra.mxu0 0
  %2788 = vmatprep.subr.bf16.mxu0 0
  %2789 = vmatpush1.bf16.msra.mxu0 0
  %2790 = vmatprep.subr.bf16.mxu0 0
  %2791 = vmatpush1.bf16.msra.mxu0 0
  %2792 = vmatprep.subr.bf16.mxu0 0
  %2793 = vmatpush1.bf16.msra.mxu0 0
  %2794 = vmatprep.subr.bf16.mxu0 0
  %2795 = vmatpush1.bf16.msra.mxu0 0
  %2796 = vmatprep.subr.bf16.mxu0 0
  %2797 = vmatpush1.bf16.msra.mxu0 0
  %2798 = vmatprep.mubr.bf16.mxu0 0
  %2799 = vmatmul.mubr.bf16.gmra.mrb[0].mxu0 %v2755
  %v2800 = vpop.f32.mrb[0].mxu0
  %v2801 = vadd.f32 0.0, %v2800
  %v2802 = vpop.f32.mrb[0].mxu0
  %v2803 = vpop.f32.mrb[0].mxu0
  %v2804 = vadd.f32 0.0, %v2803
  %v2805 = vpop.f32.mrb[0].mxu0
  %2806 = vmatprep.mubr.bf16.mxu0 0
  %2807 = vmatmul.mubr.bf16.gmra.mrb[0].mxu0 %v2758
  %v2808 = vpop.f32.mrb[0].mxu0
  %v2809 = vadd.f32 0.0, %v2808
  %v2810 = vpop.f32.mrb[0].mxu0
  %v2811 = vpop.f32.mrb[0].mxu0
  %v2812 = vadd.f32 0.0, %v2811
  %v2813 = vpop.f32.mrb[0].mxu0
  %2814 = vmatprep.mubr.bf16.mxu0 0
  %2815 = vmatmul.mubr.bf16.gmra.mrb[0].mxu0 %v2761
  %v2816 = vpop.f32.mrb[0].mxu0
  %v2817 = vadd.f32 0.0, %v2816
  %v2818 = vpop.f32.mrb[0].mxu0
  %v2819 = vpop.f32.mrb[0].mxu0
  %v2820 = vadd.f32 0.0, %v2819
  %v2821 = vpop.f32.mrb[0].mxu0
  %2822 = vmatprep.mubr.bf16.mxu0 0
  %2823 = vmatmul.mubr.bf16.gmra.mrb[0].mxu0 %v2764
  %v2824 = vpop.f32.mrb[0].mxu0
  %v2825 = vadd.f32 0.0, %v2824
  %v2826 = vpop.f32.mrb[0].mxu0
  %v2827 = vpop.f32.mrb[0].mxu0
  %v2828 = vadd.f32 0.0, %v2827
  %v2829 = vpop.f32.mrb[0].mxu0
  %2830 = vdwg.mxu0
  %v2831 = vpack.c.bf16 %v2804, %v2801
  %v2832 = vpack.c.bf16 %v2812, %v2809
  %v2833 = vpack.c.bf16 %v2820, %v2817
  %v2834 = vpack.c.bf16 %v2828, %v2825
  %v2835 = vmul.bf16 %v2831, %v107
  %v2836 = vmul.bf16 %v2832, %v107
  %v2837 = vmul.bf16 %v2833, %v107
  %v2838 = vmul.bf16 %v2834, %v107
  %v2839 = vmul.bf16 %v2831, %v135
  %v2840 = vmul.bf16 %v2832, %v135
  %v2841 = vmul.bf16 %v2833, %v135
  %v2842 = vmul.bf16 %v2834, %v135
  %2843 = vmatprep.subr.bf16.mxu0 0
  %2844 = vmatpush1.bf16.msra.mxu0 %v2839
  %2845 = vmatprep.subr.bf16.mxu0 0
  %2846 = vmatpush1.bf16.msra.mxu0 %v2840
  %2847 = vmatprep.subr.bf16.mxu0 0
  %2848 = vmatpush1.bf16.msra.mxu0 %v2841
  %2849 = vmatprep.subr.bf16.mxu0 0
  %2850 = vmatpush1.bf16.msra.mxu0 %v2842
  %2851 = vmatprep.subr.bf16.mxu0 0
  %2852 = vmatpush1.bf16.msra.mxu0 0
  %2853 = vmatprep.subr.bf16.mxu0 0
  %2854 = vmatpush1.bf16.msra.mxu0 0
  %2855 = vmatprep.subr.bf16.mxu0 0
  %2856 = vmatpush1.bf16.msra.mxu0 0
  %2857 = vmatprep.subr.bf16.mxu0 0
  %2858 = vmatpush1.bf16.msra.mxu0 0
  %2859 = vmatprep.subr.bf16.mxu0 0
  %2860 = vmatpush1.bf16.msra.mxu0 0
  %2861 = vmatprep.subr.bf16.mxu0 0
  %2862 = vmatpush1.bf16.msra.mxu0 0
  %2863 = vmatprep.subr.bf16.mxu0 0
  %2864 = vmatpush1.bf16.msra.mxu0 0
  %2865 = vmatprep.subr.bf16.mxu0 0
  %2866 = vmatpush1.bf16.msra.mxu0 0
  %2867 = vmatprep.subr.bf16.mxu0 0
  %2868 = vmatpush1.bf16.msra.mxu0 0
  %2869 = vmatprep.subr.bf16.mxu0 0
  %2870 = vmatpush1.bf16.msra.mxu0 0
  %2871 = vmatprep.subr.bf16.mxu0 0
  %2872 = vmatpush1.bf16.msra.mxu0 0
  %2873 = vmatprep.subr.bf16.mxu0 0
  %2874 = vmatpush1.bf16.msra.mxu0 0
  %2875 = vmatprep.mubr.bf16.mxu0 0
  %2876 = vmatmul.mubr.bf16.gmra.mrb[0].mxu0 %v194
  %v2877 = vpop.f32.mrb[0].mxu0
  %v2878 = vadd.f32 0.0, %v2877
  %v2879 = vpop.f32.mrb[0].mxu0
  %v2880 = vpop.f32.mrb[0].mxu0
  %v2881 = vadd.f32 0.0, %v2880
  %v2882 = vpop.f32.mrb[0].mxu0
  %2883 = vmatprep.mubr.bf16.mxu0 0
  %2884 = vmatmul.mubr.bf16.gmra.mrb[0].mxu0 %v197
  %v2885 = vpop.f32.mrb[0].mxu0
  %v2886 = vadd.f32 0.0, %v2885
  %v2887 = vpop.f32.mrb[0].mxu0
  %v2888 = vpop.f32.mrb[0].mxu0
  %v2889 = vadd.f32 0.0, %v2888
  %v2890 = vpop.f32.mrb[0].mxu0
  %2891 = vmatprep.mubr.bf16.mxu0 0
  %2892 = vmatmul.mubr.bf16.gmra.mrb[0].mxu0 %v200
  %v2893 = vpop.f32.mrb[0].mxu0
  %v2894 = vadd.f32 0.0, %v2893
  %v2895 = vpop.f32.mrb[0].mxu0
  %v2896 = vpop.f32.mrb[0].mxu0
  %v2897 = vadd.f32 0.0, %v2896
  %v2898 = vpop.f32.mrb[0].mxu0
  %2899 = vmatprep.mubr.bf16.mxu0 0
  %2900 = vmatmul.mubr.bf16.gmra.mrb[0].mxu0 %v203
  %v2901 = vpop.f32.mrb[0].mxu0
  %v2902 = vadd.f32 0.0, %v2901
  %v2903 = vpop.f32.mrb[0].mxu0
  %v2904 = vpop.f32.mrb[0].mxu0
  %v2905 = vadd.f32 0.0, %v2904
  %v2906 = vpop.f32.mrb[0].mxu0
  %2907 = vdwg.mxu0
  %2908 = vmatprep.subr.bf16.mxu0 0
  %2909 = vmatpush1.bf16.msra.mxu0 %v2835
  %2910 = vmatprep.subr.bf16.mxu0 0
  %2911 = vmatpush1.bf16.msra.mxu0 %v2836
  %2912 = vmatprep.subr.bf16.mxu0 0
  %2913 = vmatpush1.bf16.msra.mxu0 %v2837
  %2914 = vmatprep.subr.bf16.mxu0 0
  %2915 = vmatpush1.bf16.msra.mxu0 %v2838
  %2916 = vmatprep.subr.bf16.mxu0 0
  %2917 = vmatpush1.bf16.msra.mxu0 0
  %2918 = vmatprep.subr.bf16.mxu0 0
  %2919 = vmatpush1.bf16.msra.mxu0 0
  %2920 = vmatprep.subr.bf16.mxu0 0
  %2921 = vmatpush1.bf16.msra.mxu0 0
  %2922 = vmatprep.subr.bf16.mxu0 0
  %2923 = vmatpush1.bf16.msra.mxu0 0
  %2924 = vmatprep.subr.bf16.mxu0 0
  %2925 = vmatpush1.bf16.msra.mxu0 0
  %2926 = vmatprep.subr.bf16.mxu0 0
  %2927 = vmatpush1.bf16.msra.mxu0 0
  %2928 = vmatprep.subr.bf16.mxu0 0
  %2929 = vmatpush1.bf16.msra.mxu0 0
  %2930 = vmatprep.subr.bf16.mxu0 0
  %2931 = vmatpush1.bf16.msra.mxu0 0
  %2932 = vmatprep.subr.bf16.mxu0 0
  %2933 = vmatpush1.bf16.msra.mxu0 0
  %2934 = vmatprep.subr.bf16.mxu0 0
  %2935 = vmatpush1.bf16.msra.mxu0 0
  %2936 = vmatprep.subr.bf16.mxu0 0
  %2937 = vmatpush1.bf16.msra.mxu0 0
  %2938 = vmatprep.subr.bf16.mxu0 0
  %2939 = vmatpush1.bf16.msra.mxu0 0
  %2940 = vmatprep.mubr.bf16.mxu0 0
  %2941 = vmatmul.mubr.bf16.gmra.mrb[0].mxu0 %v315
  %v2942 = vpop.f32.mrb[0].mxu0
  %v2943 = vadd.f32 %v2878, %v2942
  %v2944 = vpop.f32.mrb[0].mxu0
  %v2945 = vpop.f32.mrb[0].mxu0
  %v2946 = vadd.f32 %v2881, %v2945
  %v2947 = vpop.f32.mrb[0].mxu0
  %2948 = vmatprep.mubr.bf16.mxu0 0
  %2949 = vmatmul.mubr.bf16.gmra.mrb[0].mxu0 %v318
  %v2950 = vpop.f32.mrb[0].mxu0
  %v2951 = vadd.f32 %v2886, %v2950
  %v2952 = vpop.f32.mrb[0].mxu0
  %v2953 = vpop.f32.mrb[0].mxu0
  %v2954 = vadd.f32 %v2889, %v2953
  %v2955 = vpop.f32.mrb[0].mxu0
  %2956 = vmatprep.mubr.bf16.mxu0 0
  %2957 = vmatmul.mubr.bf16.gmra.mrb[0].mxu0 %v321
  %v2958 = vpop.f32.mrb[0].mxu0
  %v2959 = vadd.f32 %v2894, %v2958
  %v2960 = vpop.f32.mrb[0].mxu0
  %v2961 = vpop.f32.mrb[0].mxu0
  %v2962 = vadd.f32 %v2897, %v2961
  %v2963 = vpop.f32.mrb[0].mxu0
  %2964 = vmatprep.mubr.bf16.mxu0 0
  %2965 = vmatmul.mubr.bf16.gmra.mrb[0].mxu0 %v324
  %v2966 = vpop.f32.mrb[0].mxu0
  %v2967 = vadd.f32 %v2902, %v2966
  %v2968 = vpop.f32.mrb[0].mxu0
  %v2969 = vpop.f32.mrb[0].mxu0
  %v2970 = vadd.f32 %v2905, %v2969
  %v2971 = vpop.f32.mrb[0].mxu0
  %2972 = vdwg.mxu0
  %v2973 = vmul.bf16 %v2831, %v406
  %v2974 = vmul.bf16 %v2832, %v406
  %v2975 = vmul.bf16 %v2833, %v406
  %v2976 = vmul.bf16 %v2834, %v406
  %2977 = vmatprep.subr.bf16.mxu0 0
  %2978 = vmatpush1.bf16.msra.mxu0 %v2973
  %2979 = vmatprep.subr.bf16.mxu0 0
  %2980 = vmatpush1.bf16.msra.mxu0 %v2974
  %2981 = vmatprep.subr.bf16.mxu0 0
  %2982 = vmatpush1.bf16.msra.mxu0 %v2975
  %2983 = vmatprep.subr.bf16.mxu0 0
  %2984 = vmatpush1.bf16.msra.mxu0 %v2976
  %2985 = vmatprep.subr.bf16.mxu0 0
  %2986 = vmatpush1.bf16.msra.mxu0 0
  %2987 = vmatprep.subr.bf16.mxu0 0
  %2988 = vmatpush1.bf16.msra.mxu0 0
  %2989 = vmatprep.subr.bf16.mxu0 0
  %2990 = vmatpush1.bf16.msra.mxu0 0
  %2991 = vmatprep.subr.bf16.mxu0 0
  %2992 = vmatpush1.bf16.msra.mxu0 0
  %2993 = vmatprep.subr.bf16.mxu0 0
  %2994 = vmatpush1.bf16.msra.mxu0 0
  %2995 = vmatprep.subr.bf16.mxu0 0
  %2996 = vmatpush1.bf16.msra.mxu0 0
  %2997 = vmatprep.subr.bf16.mxu0 0
  %2998 = vmatpush1.bf16.msra.mxu0 0
  %2999 = vmatprep.subr.bf16.mxu0 0
  %3000 = vmatpush1.bf16.msra.mxu0 0
  %3001 = vmatprep.subr.bf16.mxu0 0
  %3002 = vmatpush1.bf16.msra.mxu0 0
  %3003 = vmatprep.subr.bf16.mxu0 0
  %3004 = vmatpush1.bf16.msra.mxu0 0
  %3005 = vmatprep.subr.bf16.mxu0 0
  %3006 = vmatpush1.bf16.msra.mxu0 0
  %3007 = vmatprep.subr.bf16.mxu0 0
  %3008 = vmatpush1.bf16.msra.mxu0 0
  %3009 = vmatprep.mubr.bf16.mxu0 0
  %3010 = vmatmul.mubr.bf16.gmra.mrb[0].mxu0 %v464
  %v3011 = vpop.f32.mrb[0].mxu0
  %v3012 = vadd.f32 0.0, %v3011
  %v3013 = vpop.f32.mrb[0].mxu0
  %v3014 = vpop.f32.mrb[0].mxu0
  %v3015 = vadd.f32 0.0, %v3014
  %v3016 = vpop.f32.mrb[0].mxu0
  %3017 = vmatprep.mubr.bf16.mxu0 0
  %3018 = vmatmul.mubr.bf16.gmra.mrb[0].mxu0 %v467
  %v3019 = vpop.f32.mrb[0].mxu0
  %v3020 = vadd.f32 0.0, %v3019
  %v3021 = vpop.f32.mrb[0].mxu0
  %v3022 = vpop.f32.mrb[0].mxu0
  %v3023 = vadd.f32 0.0, %v3022
  %v3024 = vpop.f32.mrb[0].mxu0
  %3025 = vmatprep.mubr.bf16.mxu0 0
  %3026 = vmatmul.mubr.bf16.gmra.mrb[0].mxu0 %v470
  %v3027 = vpop.f32.mrb[0].mxu0
  %v3028 = vadd.f32 0.0, %v3027
  %v3029 = vpop.f32.mrb[0].mxu0
  %v3030 = vpop.f32.mrb[0].mxu0
  %v3031 = vadd.f32 0.0, %v3030
  %v3032 = vpop.f32.mrb[0].mxu0
  %3033 = vmatprep.mubr.bf16.mxu0 0
  %3034 = vmatmul.mubr.bf16.gmra.mrb[0].mxu0 %v473
  %v3035 = vpop.f32.mrb[0].mxu0
  %v3036 = vadd.f32 0.0, %v3035
  %v3037 = vpop.f32.mrb[0].mxu0
  %v3038 = vpop.f32.mrb[0].mxu0
  %v3039 = vadd.f32 0.0, %v3038
  %v3040 = vpop.f32.mrb[0].mxu0
  %3041 = vdwg.mxu0
  %v3042 = vadd.f32 %v2943, %v3012
  %v3043 = vadd.f32 %v2946, %v3015
  %v3044 = vadd.f32 %v2951, %v3020
  %v3045 = vadd.f32 %v2954, %v3023
  %v3046 = vadd.f32 %v2959, %v3028
  %v3047 = vadd.f32 %v2962, %v3031
  %v3048 = vadd.f32 %v2967, %v3036
  %v3049 = vadd.f32 %v2970, %v3039
  %v3050 = vmul.bf16 %v2831, %v563
  %v3051 = vmul.bf16 %v2832, %v563
  %v3052 = vmul.bf16 %v2833, %v563
  %v3053 = vmul.bf16 %v2834, %v563
  %3054 = vmatprep.subr.bf16.mxu0 0
  %3055 = vmatpush1.bf16.msra.mxu0 %v3050
  %3056 = vmatprep.subr.bf16.mxu0 0
  %3057 = vmatpush1.bf16.msra.mxu0 %v3051
  %3058 = vmatprep.subr.bf16.mxu0 0
  %3059 = vmatpush1.bf16.msra.mxu0 %v3052
  %3060 = vmatprep.subr.bf16.mxu0 0
  %3061 = vmatpush1.bf16.msra.mxu0 %v3053
  %3062 = vmatprep.subr.bf16.mxu0 0
  %3063 = vmatpush1.bf16.msra.mxu0 0
  %3064 = vmatprep.subr.bf16.mxu0 0
  %3065 = vmatpush1.bf16.msra.mxu0 0
  %3066 = vmatprep.subr.bf16.mxu0 0
  %3067 = vmatpush1.bf16.msra.mxu0 0
  %3068 = vmatprep.subr.bf16.mxu0 0
  %3069 = vmatpush1.bf16.msra.mxu0 0
  %3070 = vmatprep.subr.bf16.mxu0 0
  %3071 = vmatpush1.bf16.msra.mxu0 0
  %3072 = vmatprep.subr.bf16.mxu0 0
  %3073 = vmatpush1.bf16.msra.mxu0 0
  %3074 = vmatprep.subr.bf16.mxu0 0
  %3075 = vmatpush1.bf16.msra.mxu0 0
  %3076 = vmatprep.subr.bf16.mxu0 0
  %3077 = vmatpush1.bf16.msra.mxu0 0
  %3078 = vmatprep.subr.bf16.mxu0 0
  %3079 = vmatpush1.bf16.msra.mxu0 0
  %3080 = vmatprep.subr.bf16.mxu0 0
  %3081 = vmatpush1.bf16.msra.mxu0 0
  %3082 = vmatprep.subr.bf16.mxu0 0
  %3083 = vmatpush1.bf16.msra.mxu0 0
  %3084 = vmatprep.subr.bf16.mxu0 0
  %3085 = vmatpush1.bf16.msra.mxu0 0
  %3086 = vmatprep.mubr.bf16.mxu0 0
  %3087 = vmatmul.mubr.bf16.gmra.mrb[0].mxu0 %v621
  %v3088 = vpop.f32.mrb[0].mxu0
  %v3089 = vadd.f32 0.0, %v3088
  %v3090 = vpop.f32.mrb[0].mxu0
  %v3091 = vpop.f32.mrb[0].mxu0
  %v3092 = vadd.f32 0.0, %v3091
  %v3093 = vpop.f32.mrb[0].mxu0
  %3094 = vmatprep.mubr.bf16.mxu0 0
  %3095 = vmatmul.mubr.bf16.gmra.mrb[0].mxu0 %v624
  %v3096 = vpop.f32.mrb[0].mxu0
  %v3097 = vadd.f32 0.0, %v3096
  %v3098 = vpop.f32.mrb[0].mxu0
  %v3099 = vpop.f32.mrb[0].mxu0
  %v3100 = vadd.f32 0.0, %v3099
  %v3101 = vpop.f32.mrb[0].mxu0
  %3102 = vmatprep.mubr.bf16.mxu0 0
  %3103 = vmatmul.mubr.bf16.gmra.mrb[0].mxu0 %v627
  %v3104 = vpop.f32.mrb[0].mxu0
  %v3105 = vadd.f32 0.0, %v3104
  %v3106 = vpop.f32.mrb[0].mxu0
  %v3107 = vpop.f32.mrb[0].mxu0
  %v3108 = vadd.f32 0.0, %v3107
  %v3109 = vpop.f32.mrb[0].mxu0
  %3110 = vmatprep.mubr.bf16.mxu0 0
  %3111 = vmatmul.mubr.bf16.gmra.mrb[0].mxu0 %v630
  %v3112 = vpop.f32.mrb[0].mxu0
  %v3113 = vadd.f32 0.0, %v3112
  %v3114 = vpop.f32.mrb[0].mxu0
  %v3115 = vpop.f32.mrb[0].mxu0
  %v3116 = vadd.f32 0.0, %v3115
  %v3117 = vpop.f32.mrb[0].mxu0
  %3118 = vdwg.mxu0
  %v3119 = vadd.f32 %v3042, %v3089
  %v3120 = vadd.f32 %v3043, %v3092
  %v3121 = vadd.f32 %v3044, %v3097
  %v3122 = vadd.f32 %v3045, %v3100
  %v3123 = vadd.f32 %v3046, %v3105
  %v3124 = vadd.f32 %v3047, %v3108
  %v3125 = vadd.f32 %v3048, %v3113
  %v3126 = vadd.f32 %v3049, %v3116
  %s3127 = scalar_lea.vmem %s3, 2
  %v3128 = vld [vmem:[%s3127] sm:$0x1]
  %v3129 = vunpack.c.l.bf16 %v2831
  %v3130 = vunpack.c.h.bf16 %v2831
  %v3131 = vunpack.c.l.bf16 %v2832
  %v3132 = vunpack.c.h.bf16 %v2832
  %v3133 = vunpack.c.l.bf16 %v2833
  %v3134 = vunpack.c.h.bf16 %v2833
  %v3135 = vunpack.c.l.bf16 %v2834
  %v3136 = vunpack.c.h.bf16 %v2834
  %v3138 = vlaneseq
  %v3139 = vshrl.u32 %v3138, 7
  %v3140 = vsub.s32 0, %v3139
  %v3141 = vrot.slane %v3128, %v3140
  %v3143 = vmul.f32 %v3141, %v3129
  %v3144 = vmul.f32 %v3141, %v3130
  %v3145 = vmul.f32 %v3141, %v3131
  %v3146 = vmul.f32 %v3141, %v3132
  %v3147 = vmul.f32 %v3141, %v3133
  %v3148 = vmul.f32 %v3141, %v3134
  %v3149 = vmul.f32 %v3141, %v3135
  %v3150 = vmul.f32 %v3141, %v3136
  %v3151 = vadd.f32 %v3143, %v3119
  %v3152 = vadd.f32 %v3144, %v3120
  %v3153 = vadd.f32 %v3145, %v3121
  %v3154 = vadd.f32 %v3146, %v3122
  %v3155 = vadd.f32 %v3147, %v3123
  %v3156 = vadd.f32 %v3148, %v3124
  %v3157 = vadd.f32 %v3149, %v3125
  %v3158 = vadd.f32 %v3150, %v3126
  %s3159 = scalar_lea.vmem %s4, 2
  %v3160 = vld [vmem:[%s3159] sm:$0x1]
  %v3162 = vlaneseq
  %v3163 = vshrl.u32 %v3162, 7
  %v3164 = vsub.s32 0, %v3163
  %v3165 = vrot.slane %v3160, %v3164
  %v3167 = vadd.f32 %v3151, %v3165
  %v3168 = vadd.f32 %v3152, %v3165
  %v3169 = vadd.f32 %v3153, %v3165
  %v3170 = vadd.f32 %v3154, %v3165
  %v3171 = vadd.f32 %v3155, %v3165
  %v3172 = vadd.f32 %v3156, %v3165
  %v3173 = vadd.f32 %v3157, %v3165
  %v3174 = vadd.f32 %v3158, %v3165
  %v3175 = vmax.f32 %v3167, 0.0
  %v3176 = vmax.f32 %v3168, 0.0
  %v3177 = vmax.f32 %v3169, 0.0
  %v3178 = vmax.f32 %v3170, 0.0
  %v3179 = vmax.f32 %v3171, 0.0
  %v3180 = vmax.f32 %v3172, 0.0
  %v3181 = vmax.f32 %v3173, 0.0
  %v3182 = vmax.f32 %v3174, 0.0
  %v3183 = vpack.c.bf16 %v3176, %v3175
  %v3184 = vpack.c.bf16 %v3178, %v3177
  %v3185 = vpack.c.bf16 %v3180, %v3179
  %v3186 = vpack.c.bf16 %v3182, %v3181
  %s3187 = scalar_lea.vmem %s5, 128
  %v3188 = vld [vmem:[%s3187] sm:$0xf]
  %v3189 = vld [vmem:[%s3187 + $0x4] sm:$0xf]
  %v3190 = vld [vmem:[%s3187 + $0x8] sm:$0xf]
  %v3191 = vld [vmem:[%s3187 + $0xc] sm:$0xf]
  %v3192 = vld [vmem:[%s3187 + $0x10] sm:$0xf]
  %v3193 = vld [vmem:[%s3187 + $0x14] sm:$0xf]
  %v3194 = vld [vmem:[%s3187 + $0x18] sm:$0xf]
  %v3195 = vld [vmem:[%s3187 + $0x1c] sm:$0xf]
  %v3196 = vld [vmem:[%s3187 + $0x20] sm:$0xf]
  %v3197 = vld [vmem:[%s3187 + $0x24] sm:$0xf]
  %v3198 = vld [vmem:[%s3187 + $0x28] sm:$0xf]
  %v3199 = vld [vmem:[%s3187 + $0x2c] sm:$0xf]
  %v3200 = vld [vmem:[%s3187 + $0x30] sm:$0xf]
  %v3201 = vld [vmem:[%s3187 + $0x34] sm:$0xf]
  %v3202 = vld [vmem:[%s3187 + $0x38] sm:$0xf]
  %v3203 = vld [vmem:[%s3187 + $0x3c] sm:$0xf]
  %s3204 = scalar_lea.vmem %s6, 2
  %v3205 = vld [vmem:[%s3204] sm:$0x1]
  %v3207 = vlaneseq
  %v3208 = vshrl.u32 %v3207, 7
  %v3209 = vsub.s32 0, %v3208
  %v3210 = vrot.slane %v3205, %v3209
  %v3228 = vunpack.c.l.b16 %v3188
  %v3229 = vunpack.c.l.b16 %v3189
  %v3230 = vunpack.c.l.b16 %v3190
  %v3231 = vunpack.c.l.b16 %v3191
  %v3232 = vunpack.c.l.b16 %v3192
  %v3233 = vunpack.c.l.b16 %v3193
  %v3234 = vunpack.c.l.b16 %v3194
  %v3235 = vunpack.c.l.b16 %v3195
  %v3236 = vunpack.c.l.b16 %v3196
  %v3237 = vunpack.c.l.b16 %v3197
  %v3238 = vunpack.c.l.b16 %v3198
  %v3239 = vunpack.c.l.b16 %v3199
  %v3240 = vunpack.c.l.b16 %v3200
  %v3241 = vunpack.c.l.b16 %v3201
  %v3242 = vunpack.c.l.b16 %v3202
  %v3243 = vunpack.c.l.b16 %v3203
  %v3244 = vpack.c.b16 %v3229, %v3228
  %v3245 = vpack.c.b16 %v3231, %v3230
  %v3246 = vpack.c.b16 %v3233, %v3232
  %v3247 = vpack.c.b16 %v3235, %v3234
  %v3248 = vpack.c.b16 %v3237, %v3236
  %v3249 = vpack.c.b16 %v3239, %v3238
  %v3250 = vpack.c.b16 %v3241, %v3240
  %v3251 = vpack.c.b16 %v3243, %v3242
  %3260 = vmatprep.subr.bf16.mxu0 0
  %3261 = vmatpush1.bf16.msra.mxu0 %v3244
  %3262 = vmatprep.subr.bf16.mxu0 0
  %3263 = vmatpush1.bf16.msra.mxu0 %v3245
  %3264 = vmatprep.subr.bf16.mxu0 0
  %3265 = vmatpush1.bf16.msra.mxu0 %v3246
  %3266 = vmatprep.subr.bf16.mxu0 0
  %3267 = vmatpush1.bf16.msra.mxu0 %v3247
  %3268 = vmatprep.subr.bf16.mxu0 0
  %3269 = vmatpush1.bf16.msra.mxu0 %v3248
  %3270 = vmatprep.subr.bf16.mxu0 0
  %3271 = vmatpush1.bf16.msra.mxu0 %v3249
  %3272 = vmatprep.subr.bf16.mxu0 0
  %3273 = vmatpush1.bf16.msra.mxu0 %v3250
  %3274 = vmatprep.subr.bf16.mxu0 0
  %3275 = vmatpush1.bf16.msra.mxu0 %v3251
  %3276 = vmatprep.subr.bf16.mxu0 0
  %3277 = vmatpush1.bf16.msra.mxu0 0
  %3278 = vmatprep.subr.bf16.mxu0 0
  %3279 = vmatpush1.bf16.msra.mxu0 0
  %3280 = vmatprep.subr.bf16.mxu0 0
  %3281 = vmatpush1.bf16.msra.mxu0 0
  %3282 = vmatprep.subr.bf16.mxu0 0
  %3283 = vmatpush1.bf16.msra.mxu0 0
  %3284 = vmatprep.subr.bf16.mxu0 0
  %3285 = vmatpush1.bf16.msra.mxu0 0
  %3286 = vmatprep.subr.bf16.mxu0 0
  %3287 = vmatpush1.bf16.msra.mxu0 0
  %3288 = vmatprep.subr.bf16.mxu0 0
  %3289 = vmatpush1.bf16.msra.mxu0 0
  %3290 = vmatprep.subr.bf16.mxu0 0
  %3291 = vmatpush1.bf16.msra.mxu0 0
  %3292 = vmatprep.mubr.bf16.mxu0 0
  %3293 = vmatmul.mubr.bf16.gmra.mrb[0].mxu0 %v3183
  %v3294 = vpop.f32.mrb[0].mxu0
  %v3295 = vadd.f32 %v3210, %v3294
  %v3296 = vpop.f32.mrb[0].mxu0
  %v3297 = vpop.f32.mrb[0].mxu0
  %v3298 = vadd.f32 %v3210, %v3297
  %v3299 = vpop.f32.mrb[0].mxu0
  %3300 = vmatprep.mubr.bf16.mxu0 0
  %3301 = vmatmul.mubr.bf16.gmra.mrb[0].mxu0 %v3184
  %v3302 = vpop.f32.mrb[0].mxu0
  %v3303 = vadd.f32 %v3210, %v3302
  %v3304 = vpop.f32.mrb[0].mxu0
  %v3305 = vpop.f32.mrb[0].mxu0
  %v3306 = vadd.f32 %v3210, %v3305
  %v3307 = vpop.f32.mrb[0].mxu0
  %3308 = vmatprep.mubr.bf16.mxu0 0
  %3309 = vmatmul.mubr.bf16.gmra.mrb[0].mxu0 %v3185
  %v3310 = vpop.f32.mrb[0].mxu0
  %v3311 = vadd.f32 %v3210, %v3310
  %v3312 = vpop.f32.mrb[0].mxu0
  %v3313 = vpop.f32.mrb[0].mxu0
  %v3314 = vadd.f32 %v3210, %v3313
  %v3315 = vpop.f32.mrb[0].mxu0
  %3316 = vmatprep.mubr.bf16.mxu0 0
  %3317 = vmatmul.mubr.bf16.gmra.mrb[0].mxu0 %v3186
  %v3318 = vpop.f32.mrb[0].mxu0
  %v3319 = vadd.f32 %v3210, %v3318
  %v3320 = vpop.f32.mrb[0].mxu0
  %v3321 = vpop.f32.mrb[0].mxu0
  %v3322 = vadd.f32 %v3210, %v3321
  %v3323 = vpop.f32.mrb[0].mxu0
  %3324 = vdwg.mxu0
  %v3325 = vmax.f32 %v3295, 0.0
  %v3326 = vmax.f32 %v3298, 0.0
  %v3327 = vmax.f32 %v3303, 0.0
  %v3328 = vmax.f32 %v3306, 0.0
  %v3329 = vmax.f32 %v3311, 0.0
  %v3330 = vmax.f32 %v3314, 0.0
  %v3331 = vmax.f32 %v3319, 0.0
  %v3332 = vmax.f32 %v3322, 0.0
  %v3333 = vpack.c.bf16 %v3326, %v3325
  %v3334 = vpack.c.bf16 %v3328, %v3327
  %v3335 = vpack.c.bf16 %v3330, %v3329
  %v3336 = vpack.c.bf16 %v3332, %v3331
  %s3337 = scalar_lea.vmem %s7, 128
  %v3338 = vld [vmem:[%s3337] sm:$0xf]
  %v3339 = vld [vmem:[%s3337 + $0x4] sm:$0xf]
  %v3340 = vld [vmem:[%s3337 + $0x8] sm:$0xf]
  %v3341 = vld [vmem:[%s3337 + $0xc] sm:$0xf]
  %v3342 = vld [vmem:[%s3337 + $0x10] sm:$0xf]
  %v3343 = vld [vmem:[%s3337 + $0x14] sm:$0xf]
  %v3344 = vld [vmem:[%s3337 + $0x18] sm:$0xf]
  %v3345 = vld [vmem:[%s3337 + $0x1c] sm:$0xf]
  %v3346 = vld [vmem:[%s3337 + $0x20] sm:$0xf]
  %v3347 = vld [vmem:[%s3337 + $0x24] sm:$0xf]
  %v3348 = vld [vmem:[%s3337 + $0x28] sm:$0xf]
  %v3349 = vld [vmem:[%s3337 + $0x2c] sm:$0xf]
  %v3350 = vld [vmem:[%s3337 + $0x30] sm:$0xf]
  %v3351 = vld [vmem:[%s3337 + $0x34] sm:$0xf]
  %v3352 = vld [vmem:[%s3337 + $0x38] sm:$0xf]
  %v3353 = vld [vmem:[%s3337 + $0x3c] sm:$0xf]
  %s3354 = scalar_lea.vmem %s8, 2
  %v3355 = vld [vmem:[%s3354] sm:$0x1]
  %v3357 = vlaneseq
  %v3358 = vshrl.u32 %v3357, 7
  %v3359 = vsub.s32 0, %v3358
  %v3360 = vrot.slane %v3355, %v3359
  %v3378 = vunpack.c.l.b16 %v3338
  %v3379 = vunpack.c.l.b16 %v3339
  %v3380 = vunpack.c.l.b16 %v3340
  %v3381 = vunpack.c.l.b16 %v3341
  %v3382 = vunpack.c.l.b16 %v3342
  %v3383 = vunpack.c.l.b16 %v3343
  %v3384 = vunpack.c.l.b16 %v3344
  %v3385 = vunpack.c.l.b16 %v3345
  %v3386 = vunpack.c.l.b16 %v3346
  %v3387 = vunpack.c.l.b16 %v3347
  %v3388 = vunpack.c.l.b16 %v3348
  %v3389 = vunpack.c.l.b16 %v3349
  %v3390 = vunpack.c.l.b16 %v3350
  %v3391 = vunpack.c.l.b16 %v3351
  %v3392 = vunpack.c.l.b16 %v3352
  %v3393 = vunpack.c.l.b16 %v3353
  %v3394 = vpack.c.b16 %v3379, %v3378
  %v3395 = vpack.c.b16 %v3381, %v3380
  %v3396 = vpack.c.b16 %v3383, %v3382
  %v3397 = vpack.c.b16 %v3385, %v3384
  %v3398 = vpack.c.b16 %v3387, %v3386
  %v3399 = vpack.c.b16 %v3389, %v3388
  %v3400 = vpack.c.b16 %v3391, %v3390
  %v3401 = vpack.c.b16 %v3393, %v3392
  %3410 = vmatprep.subr.bf16.mxu0 0
  %3411 = vmatpush1.bf16.msra.mxu0 %v3394
  %3412 = vmatprep.subr.bf16.mxu0 0
  %3413 = vmatpush1.bf16.msra.mxu0 %v3395
  %3414 = vmatprep.subr.bf16.mxu0 0
  %3415 = vmatpush1.bf16.msra.mxu0 %v3396
  %3416 = vmatprep.subr.bf16.mxu0 0
  %3417 = vmatpush1.bf16.msra.mxu0 %v3397
  %3418 = vmatprep.subr.bf16.mxu0 0
  %3419 = vmatpush1.bf16.msra.mxu0 %v3398
  %3420 = vmatprep.subr.bf16.mxu0 0
  %3421 = vmatpush1.bf16.msra.mxu0 %v3399
  %3422 = vmatprep.subr.bf16.mxu0 0
  %3423 = vmatpush1.bf16.msra.mxu0 %v3400
  %3424 = vmatprep.subr.bf16.mxu0 0
  %3425 = vmatpush1.bf16.msra.mxu0 %v3401
  %3426 = vmatprep.subr.bf16.mxu0 0
  %3427 = vmatpush1.bf16.msra.mxu0 0
  %3428 = vmatprep.subr.bf16.mxu0 0
  %3429 = vmatpush1.bf16.msra.mxu0 0
  %3430 = vmatprep.subr.bf16.mxu0 0
  %3431 = vmatpush1.bf16.msra.mxu0 0
  %3432 = vmatprep.subr.bf16.mxu0 0
  %3433 = vmatpush1.bf16.msra.mxu0 0
  %3434 = vmatprep.subr.bf16.mxu0 0
  %3435 = vmatpush1.bf16.msra.mxu0 0
  %3436 = vmatprep.subr.bf16.mxu0 0
  %3437 = vmatpush1.bf16.msra.mxu0 0
  %3438 = vmatprep.subr.bf16.mxu0 0
  %3439 = vmatpush1.bf16.msra.mxu0 0
  %3440 = vmatprep.subr.bf16.mxu0 0
  %3441 = vmatpush1.bf16.msra.mxu0 0
  %3442 = vmatprep.mubr.bf16.mxu0 0
  %3443 = vmatmul.mubr.bf16.gmra.mrb[0].mxu0 %v3333
  %v3444 = vpop.f32.mrb[0].mxu0
  %v3445 = vadd.f32 %v3360, %v3444
  %v3446 = vpop.f32.mrb[0].mxu0
  %v3447 = vpop.f32.mrb[0].mxu0
  %v3448 = vadd.f32 %v3360, %v3447
  %v3449 = vpop.f32.mrb[0].mxu0
  %3450 = vmatprep.mubr.bf16.mxu0 0
  %3451 = vmatmul.mubr.bf16.gmra.mrb[0].mxu0 %v3334
  %v3452 = vpop.f32.mrb[0].mxu0
  %v3453 = vadd.f32 %v3360, %v3452
  %v3454 = vpop.f32.mrb[0].mxu0
  %v3455 = vpop.f32.mrb[0].mxu0
  %v3456 = vadd.f32 %v3360, %v3455
  %v3457 = vpop.f32.mrb[0].mxu0
  %3458 = vmatprep.mubr.bf16.mxu0 0
  %3459 = vmatmul.mubr.bf16.gmra.mrb[0].mxu0 %v3335
  %v3460 = vpop.f32.mrb[0].mxu0
  %v3461 = vadd.f32 %v3360, %v3460
  %v3462 = vpop.f32.mrb[0].mxu0
  %v3463 = vpop.f32.mrb[0].mxu0
  %v3464 = vadd.f32 %v3360, %v3463
  %v3465 = vpop.f32.mrb[0].mxu0
  %3466 = vmatprep.mubr.bf16.mxu0 0
  %3467 = vmatmul.mubr.bf16.gmra.mrb[0].mxu0 %v3336
  %v3468 = vpop.f32.mrb[0].mxu0
  %v3469 = vadd.f32 %v3360, %v3468
  %v3470 = vpop.f32.mrb[0].mxu0
  %v3471 = vpop.f32.mrb[0].mxu0
  %v3472 = vadd.f32 %v3360, %v3471
  %v3473 = vpop.f32.mrb[0].mxu0
  %3474 = vdwg.mxu0
  %v3475 = vmax.f32 %v3445, 0.0
  %v3476 = vmax.f32 %v3448, 0.0
  %v3477 = vmax.f32 %v3453, 0.0
  %v3478 = vmax.f32 %v3456, 0.0
  %v3479 = vmax.f32 %v3461, 0.0
  %v3480 = vmax.f32 %v3464, 0.0
  %v3481 = vmax.f32 %v3469, 0.0
  %v3482 = vmax.f32 %v3472, 0.0
  %v3483 = vpack.c.bf16 %v3476, %v3475
  %v3484 = vpack.c.bf16 %v3478, %v3477
  %v3485 = vpack.c.bf16 %v3480, %v3479
  %v3486 = vpack.c.bf16 %v3482, %v3481
  %s3487 = scalar_lea.vmem %s9, 32
  %v3488 = vld [vmem:[%s3487] sm:$0xf]
  %v3489 = vld [vmem:[%s3487 + $0x4] sm:$0xf]
  %v3490 = vld [vmem:[%s3487 + $0x8] sm:$0xf]
  %v3491 = vld [vmem:[%s3487 + $0xc] sm:$0xf]
  %s3492 = scalar_lea.vmem %s10, 2
  %v3493 = vld [vmem:[%s3492] sm:$0x1]
  %v3495 = vlaneseq
  %v3496 = vshrl.u32 %v3495, 7
  %v3497 = vsub.s32 0, %v3496
  %v3498 = vrot.slane %v3493, %v3497
  %v3504 = vunpack.c.l.b16 %v3488
  %v3505 = vunpack.c.l.b16 %v3489
  %v3506 = vunpack.c.l.b16 %v3490
  %v3507 = vunpack.c.l.b16 %v3491
  %v3508 = vpack.c.b16 %v3505, %v3504
  %v3509 = vpack.c.b16 %v3507, %v3506
  %v3513 = vsel %vm1082, %v3483, 0
  %v3516 = vsel %vm1082, %v3484, 0
  %v3519 = vsel %vm1082, %v3485, 0
  %v3522 = vsel %vm1082, %v3486, 0
  %3524 = vmatprep.subr.bf16.mxu0 0
  %3525 = vmatpush1.bf16.msra.mxu0 %v3508
  %3526 = vmatprep.subr.bf16.mxu0 0
  %3527 = vmatpush1.bf16.msra.mxu0 %v3509
  %3528 = vmatprep.subr.bf16.mxu0 0
  %3529 = vmatpush1.bf16.msra.mxu0 0
  %3530 = vmatprep.subr.bf16.mxu0 0
  %3531 = vmatpush1.bf16.msra.mxu0 0
  %3532 = vmatprep.subr.bf16.mxu0 0
  %3533 = vmatpush1.bf16.msra.mxu0 0
  %3534 = vmatprep.subr.bf16.mxu0 0
  %3535 = vmatpush1.bf16.msra.mxu0 0
  %3536 = vmatprep.subr.bf16.mxu0 0
  %3537 = vmatpush1.bf16.msra.mxu0 0
  %3538 = vmatprep.subr.bf16.mxu0 0
  %3539 = vmatpush1.bf16.msra.mxu0 0
  %3540 = vmatprep.subr.bf16.mxu0 0
  %3541 = vmatpush1.bf16.msra.mxu0 0
  %3542 = vmatprep.subr.bf16.mxu0 0
  %3543 = vmatpush1.bf16.msra.mxu0 0
  %3544 = vmatprep.subr.bf16.mxu0 0
  %3545 = vmatpush1.bf16.msra.mxu0 0
  %3546 = vmatprep.subr.bf16.mxu0 0
  %3547 = vmatpush1.bf16.msra.mxu0 0
  %3548 = vmatprep.subr.bf16.mxu0 0
  %3549 = vmatpush1.bf16.msra.mxu0 0
  %3550 = vmatprep.subr.bf16.mxu0 0
  %3551 = vmatpush1.bf16.msra.mxu0 0
  %3552 = vmatprep.subr.bf16.mxu0 0
  %3553 = vmatpush1.bf16.msra.mxu0 0
  %3554 = vmatprep.subr.bf16.mxu0 0
  %3555 = vmatpush1.bf16.msra.mxu0 0
  %3556 = vmatprep.mubr.bf16.mxu0 0
  %3557 = vmatmul.mubr.bf16.gmra.mrb[0].mxu0 %v3513
  %v3558 = vpop.f32.mrb[0].mxu0
  %v3559 = vadd.f32 %v3498, %v3558
  %v3560 = vpop.f32.mrb[0].mxu0
  %v3561 = vpop.f32.mrb[0].mxu0
  %v3562 = vadd.f32 %v3498, %v3561
  %v3563 = vpop.f32.mrb[0].mxu0
  %3564 = vmatprep.mubr.bf16.mxu0 0
  %3565 = vmatmul.mubr.bf16.gmra.mrb[0].mxu0 %v3516
  %v3566 = vpop.f32.mrb[0].mxu0
  %v3567 = vadd.f32 %v3498, %v3566
  %v3568 = vpop.f32.mrb[0].mxu0
  %v3569 = vpop.f32.mrb[0].mxu0
  %v3570 = vadd.f32 %v3498, %v3569
  %v3571 = vpop.f32.mrb[0].mxu0
  %3572 = vmatprep.mubr.bf16.mxu0 0
  %3573 = vmatmul.mubr.bf16.gmra.mrb[0].mxu0 %v3519
  %v3574 = vpop.f32.mrb[0].mxu0
  %v3575 = vadd.f32 %v3498, %v3574
  %v3576 = vpop.f32.mrb[0].mxu0
  %v3577 = vpop.f32.mrb[0].mxu0
  %v3578 = vadd.f32 %v3498, %v3577
  %v3579 = vpop.f32.mrb[0].mxu0
  %3580 = vmatprep.mubr.bf16.mxu0 0
  %3581 = vmatmul.mubr.bf16.gmra.mrb[0].mxu0 %v3522
  %v3582 = vpop.f32.mrb[0].mxu0
  %v3583 = vadd.f32 %v3498, %v3582
  %v3584 = vpop.f32.mrb[0].mxu0
  %v3585 = vpop.f32.mrb[0].mxu0
  %v3586 = vadd.f32 %v3498, %v3585
  %v3587 = vpop.f32.mrb[0].mxu0
  %3588 = vdwg.mxu0
  %3589 = vmatprep.subr.mxu0 0.0
  %3590 = vmatpush1.msra.mxu0 %v3559
  %3591 = vmatprep.subr.mxu0 0.0
  %3592 = vmatpush1.msra.mxu0 %v3562
  %3593 = vmatprep.subr.mxu0 0.0
  %3594 = vmatpush1.msra.mxu0 %v3567
  %3595 = vmatprep.subr.mxu0 0.0
  %3596 = vmatpush1.msra.mxu0 %v3570
  %3597 = vmatprep.subr.mxu0 0.0
  %3598 = vmatpush1.msra.mxu0 %v3575
  %3599 = vmatprep.subr.mxu0 0.0
  %3600 = vmatpush1.msra.mxu0 %v3578
  %3601 = vmatprep.subr.mxu0 0.0
  %3602 = vmatpush1.msra.mxu0 %v3583
  %3603 = vmatprep.subr.mxu0 0.0
  %3604 = vmatpush1.msra.mxu0 %v3586
  %3605 = vmatprep.subr.mxu0 0.0
  %3606 = vmatpush1.msra.mxu0 0.0
  %3607 = vmatprep.subr.mxu0 0.0
  %3608 = vmatpush1.msra.mxu0 0.0
  %3609 = vmatprep.subr.mxu0 0.0
  %3610 = vmatpush1.msra.mxu0 0.0
  %3611 = vmatprep.subr.mxu0 0.0
  %3612 = vmatpush1.msra.mxu0 0.0
  %3613 = vmatprep.subr.mxu0 0.0
  %3614 = vmatpush1.msra.mxu0 0.0
  %3615 = vmatprep.subr.mxu0 0.0
  %3616 = vmatpush1.msra.mxu0 0.0
  %3617 = vmatprep.subr.mxu0 0.0
  %3618 = vmatpush1.msra.mxu0 0.0
  %3619 = vmatprep.subr.mxu0 0.0
  %3620 = vmatpush1.msra.mxu0 0.0
  %3621 = vmatprep.subr.mxu0 0.0
  %3622 = vmatpush1.msra.mxu0 0.0
  %3623 = vmatprep.subr.mxu0 0.0
  %3624 = vmatpush1.msra.mxu0 0.0
  %3625 = vmatprep.subr.mxu0 0.0
  %3626 = vmatpush1.msra.mxu0 0.0
  %3627 = vmatprep.subr.mxu0 0.0
  %3628 = vmatpush1.msra.mxu0 0.0
  %3629 = vmatprep.subr.mxu0 0.0
  %3630 = vmatpush1.msra.mxu0 0.0
  %3631 = vmatprep.subr.mxu0 0.0
  %3632 = vmatpush1.msra.mxu0 0.0
  %3633 = vmatprep.subr.mxu0 0.0
  %3634 = vmatpush1.msra.mxu0 0.0
  %3635 = vmatprep.subr.mxu0 0.0
  %3636 = vmatpush1.msra.mxu0 0.0
  %3637 = vmatprep.subr.mxu0 0.0
  %3638 = vmatpush1.msra.mxu0 0.0
  %3639 = vmatprep.subr.mxu0 0.0
  %3640 = vmatpush1.msra.mxu0 0.0
  %3641 = vmatprep.subr.mxu0 0.0
  %3642 = vmatpush1.msra.mxu0 0.0
  %3643 = vmatprep.subr.mxu0 0.0
  %3644 = vmatpush1.msra.mxu0 0.0
  %3645 = vmatprep.subr.mxu0 0.0
  %3646 = vmatpush1.msra.mxu0 0.0
  %3647 = vmatprep.subr.mxu0 0.0
  %3648 = vmatpush1.msra.mxu0 0.0
  %3649 = vmatprep.subr.mxu0 0.0
  %3650 = vmatpush1.msra.mxu0 0.0
  %3651 = vmatprep.subr.mxu0 0.0
  %3652 = vmatpush1.msra.mxu0 0.0
  %3653 = vmatprep.mubr.f32.mxu0 0.0
  %3654 = vmatmul.mubr.f32.gmra.mrb[0].mxu0 %v1161
  %v3655 = vpop.f32.mrb[0].mxu0
  %v3656 = vadd.f32 0.0, %v3655
  %v3657 = vpop.f32.mrb[0].mxu0
  %3658 = vdwg.mxu0
  %v3659 = vmul.f32 %v3559, %v3559
  %v3660 = vmul.f32 %v3562, %v3562
  %v3661 = vmul.f32 %v3567, %v3567
  %v3662 = vmul.f32 %v3570, %v3570
  %v3663 = vmul.f32 %v3575, %v3575
  %v3664 = vmul.f32 %v3578, %v3578
  %v3665 = vmul.f32 %v3583, %v3583
  %v3666 = vmul.f32 %v3586, %v3586
  %3667 = vmatprep.subr.mxu0 0.0
  %3668 = vmatpush1.msra.mxu0 %v3659
  %3669 = vmatprep.subr.mxu0 0.0
  %3670 = vmatpush1.msra.mxu0 %v3660
  %3671 = vmatprep.subr.mxu0 0.0
  %3672 = vmatpush1.msra.mxu0 %v3661
  %3673 = vmatprep.subr.mxu0 0.0
  %3674 = vmatpush1.msra.mxu0 %v3662
  %3675 = vmatprep.subr.mxu0 0.0
  %3676 = vmatpush1.msra.mxu0 %v3663
  %3677 = vmatprep.subr.mxu0 0.0
  %3678 = vmatpush1.msra.mxu0 %v3664
  %3679 = vmatprep.subr.mxu0 0.0
  %3680 = vmatpush1.msra.mxu0 %v3665
  %3681 = vmatprep.subr.mxu0 0.0
  %3682 = vmatpush1.msra.mxu0 %v3666
  %3683 = vmatprep.subr.mxu0 0.0
  %3684 = vmatpush1.msra.mxu0 0.0
  %3685 = vmatprep.subr.mxu0 0.0
  %3686 = vmatpush1.msra.mxu0 0.0
  %3687 = vmatprep.subr.mxu0 0.0
  %3688 = vmatpush1.msra.mxu0 0.0
  %3689 = vmatprep.subr.mxu0 0.0
  %3690 = vmatpush1.msra.mxu0 0.0
  %3691 = vmatprep.subr.mxu0 0.0
  %3692 = vmatpush1.msra.mxu0 0.0
  %3693 = vmatprep.subr.mxu0 0.0
  %3694 = vmatpush1.msra.mxu0 0.0
  %3695 = vmatprep.subr.mxu0 0.0
  %3696 = vmatpush1.msra.mxu0 0.0
  %3697 = vmatprep.subr.mxu0 0.0
  %3698 = vmatpush1.msra.mxu0 0.0
  %3699 = vmatprep.subr.mxu0 0.0
  %3700 = vmatpush1.msra.mxu0 0.0
  %3701 = vmatprep.subr.mxu0 0.0
  %3702 = vmatpush1.msra.mxu0 0.0
  %3703 = vmatprep.subr.mxu0 0.0
  %3704 = vmatpush1.msra.mxu0 0.0
  %3705 = vmatprep.subr.mxu0 0.0
  %3706 = vmatpush1.msra.mxu0 0.0
  %3707 = vmatprep.subr.mxu0 0.0
  %3708 = vmatpush1.msra.mxu0 0.0
  %3709 = vmatprep.subr.mxu0 0.0
  %3710 = vmatpush1.msra.mxu0 0.0
  %3711 = vmatprep.subr.mxu0 0.0
  %3712 = vmatpush1.msra.mxu0 0.0
  %3713 = vmatprep.subr.mxu0 0.0
  %3714 = vmatpush1.msra.mxu0 0.0
  %3715 = vmatprep.subr.mxu0 0.0
  %3716 = vmatpush1.msra.mxu0 0.0
  %3717 = vmatprep.subr.mxu0 0.0
  %3718 = vmatpush1.msra.mxu0 0.0
  %3719 = vmatprep.subr.mxu0 0.0
  %3720 = vmatpush1.msra.mxu0 0.0
  %3721 = vmatprep.subr.mxu0 0.0
  %3722 = vmatpush1.msra.mxu0 0.0
  %3723 = vmatprep.subr.mxu0 0.0
  %3724 = vmatpush1.msra.mxu0 0.0
  %3725 = vmatprep.subr.mxu0 0.0
  %3726 = vmatpush1.msra.mxu0 0.0
  %3727 = vmatprep.subr.mxu0 0.0
  %3728 = vmatpush1.msra.mxu0 0.0
  %3729 = vmatprep.subr.mxu0 0.0
  %3730 = vmatpush1.msra.mxu0 0.0
  %3731 = vmatprep.mubr.f32.mxu0 0.0
  %3732 = vmatmul.mubr.f32.gmra.mrb[0].mxu0 %v1161
  %v3733 = vpop.f32.mrb[0].mxu0
  %v3734 = vadd.f32 0.0, %v3733
  %v3735 = vpop.f32.mrb[0].mxu0
  %3736 = vdwg.mxu0
  %v3737 = vmul.f32 %v3656, 0.015625
  %v3738 = vmul.f32 %v3734, 0.015625
  %v3739 = vmul.f32 %v3737, %v3737
  %v3740 = vsub.f32 %v3738, %v3739
  %s3741 = scalar_lea.vmem %s11, 2
  %v3742 = vld [vmem:[%s3741] sm:$0x1]
  %v3743 = vlaneseq
  %v3744 = vshrl.u32 %v3743, 7
  %v3745 = vsub.s32 0, %v3744
  %v3746 = vrot.slane %v3737, %v3745
  %v3747 = vsub.f32 %v3559, %v3746
  %v3748 = vsub.f32 %v3562, %v3746
  %v3749 = vsub.f32 %v3567, %v3746
  %v3750 = vsub.f32 %v3570, %v3746
  %v3751 = vsub.f32 %v3575, %v3746
  %v3752 = vsub.f32 %v3578, %v3746
  %v3753 = vsub.f32 %v3583, %v3746
  %v3754 = vsub.f32 %v3586, %v3746
  %v3756 = vlaneseq
  %v3757 = vshrl.u32 %v3756, 7
  %v3758 = vsub.s32 0, %v3757
  %v3759 = vrot.slane %v3742, %v3758
  %v3761 = vmul.f32 %v3759, %v3747
  %v3762 = vmul.f32 %v3759, %v3748
  %v3763 = vmul.f32 %v3759, %v3749
  %v3764 = vmul.f32 %v3759, %v3750
  %v3765 = vmul.f32 %v3759, %v3751
  %v3766 = vmul.f32 %v3759, %v3752
  %v3767 = vmul.f32 %v3759, %v3753
  %v3768 = vmul.f32 %v3759, %v3754
  %v3769 = vadd.f32 %v3740, 1e-05
  %v3770 = vrsqrt.pop %v3769
  %v3771 = vlaneseq
  %v3772 = vshrl.u32 %v3771, 7
  %v3773 = vsub.s32 0, %v3772
  %v3774 = vrot.slane %v3770, %v3773
  %v3775 = vmul.f32 %v3761, %v3774
  %v3776 = vmul.f32 %v3762, %v3774
  %v3777 = vmul.f32 %v3763, %v3774
  %v3778 = vmul.f32 %v3764, %v3774
  %v3779 = vmul.f32 %v3765, %v3774
  %v3780 = vmul.f32 %v3766, %v3774
  %v3781 = vmul.f32 %v3767, %v3774
  %v3782 = vmul.f32 %v3768, %v3774
  %s3783 = scalar_lea.vmem %s12, 2
  %v3784 = vld [vmem:[%s3783] sm:$0x1]
  %v3786 = vlaneseq
  %v3787 = vshrl.u32 %v3786, 7
  %v3788 = vsub.s32 0, %v3787
  %v3789 = vrot.slane %v3784, %v3788
  %v3791 = vadd.f32 %v3775, %v3789
  %v3792 = vadd.f32 %v3776, %v3789
  %v3793 = vadd.f32 %v3777, %v3789
  %v3794 = vadd.f32 %v3778, %v3789
  %v3795 = vadd.f32 %v3779, %v3789
  %v3796 = vadd.f32 %v3780, %v3789
  %v3797 = vadd.f32 %v3781, %v3789
  %v3798 = vadd.f32 %v3782, %v3789
  %3799 = vmatprep.subr.mxu0 0.0
  %3800 = vmatpush1.msra.mxu0 %v3791
  %3801 = vmatprep.subr.mxu0 0.0
  %3802 = vmatpush1.msra.mxu0 %v3792
  %3803 = vmatprep.subr.mxu0 0.0
  %3804 = vmatpush1.msra.mxu0 %v3793
  %3805 = vmatprep.subr.mxu0 0.0
  %3806 = vmatpush1.msra.mxu0 %v3794
  %3807 = vmatprep.subr.mxu0 0.0
  %3808 = vmatpush1.msra.mxu0 %v3795
  %3809 = vmatprep.subr.mxu0 0.0
  %3810 = vmatpush1.msra.mxu0 %v3796
  %3811 = vmatprep.subr.mxu0 0.0
  %3812 = vmatpush1.msra.mxu0 %v3797
  %3813 = vmatprep.subr.mxu0 0.0
  %3814 = vmatpush1.msra.mxu0 %v3798
  %3815 = vmatprep.subr.mxu0 0.0
  %3816 = vmatpush1.msra.mxu0 0.0
  %3817 = vmatprep.subr.mxu0 0.0
  %3818 = vmatpush1.msra.mxu0 0.0
  %3819 = vmatprep.subr.mxu0 0.0
  %3820 = vmatpush1.msra.mxu0 0.0
  %3821 = vmatprep.subr.mxu0 0.0
  %3822 = vmatpush1.msra.mxu0 0.0
  %3823 = vmatprep.subr.mxu0 0.0
  %3824 = vmatpush1.msra.mxu0 0.0
  %3825 = vmatprep.subr.mxu0 0.0
  %3826 = vmatpush1.msra.mxu0 0.0
  %3827 = vmatprep.subr.mxu0 0.0
  %3828 = vmatpush1.msra.mxu0 0.0
  %3829 = vmatprep.subr.mxu0 0.0
  %3830 = vmatpush1.msra.mxu0 0.0
  %3831 = vmatprep.subr.mxu0 0.0
  %3832 = vmatpush1.msra.mxu0 0.0
  %3833 = vmatprep.subr.mxu0 0.0
  %3834 = vmatpush1.msra.mxu0 0.0
  %3835 = vmatprep.subr.mxu0 0.0
  %3836 = vmatpush1.msra.mxu0 0.0
  %3837 = vmatprep.subr.mxu0 0.0
  %3838 = vmatpush1.msra.mxu0 0.0
  %3839 = vmatprep.subr.mxu0 0.0
  %3840 = vmatpush1.msra.mxu0 0.0
  %3841 = vmatprep.subr.mxu0 0.0
  %3842 = vmatpush1.msra.mxu0 0.0
  %3843 = vmatprep.subr.mxu0 0.0
  %3844 = vmatpush1.msra.mxu0 0.0
  %3845 = vmatprep.subr.mxu0 0.0
  %3846 = vmatpush1.msra.mxu0 0.0
  %3847 = vmatprep.subr.mxu0 0.0
  %3848 = vmatpush1.msra.mxu0 0.0
  %3849 = vmatprep.subr.mxu0 0.0
  %3850 = vmatpush1.msra.mxu0 0.0
  %3851 = vmatprep.subr.mxu0 0.0
  %3852 = vmatpush1.msra.mxu0 0.0
  %3853 = vmatprep.subr.mxu0 0.0
  %3854 = vmatpush1.msra.mxu0 0.0
  %3855 = vmatprep.subr.mxu0 0.0
  %3856 = vmatpush1.msra.mxu0 0.0
  %3857 = vmatprep.subr.mxu0 0.0
  %3858 = vmatpush1.msra.mxu0 0.0
  %3859 = vmatprep.subr.mxu0 0.0
  %3860 = vmatpush1.msra.mxu0 0.0
  %3861 = vmatprep.subr.mxu0 0.0
  %3862 = vmatpush1.msra.mxu0 0.0
  %3863 = vmatprep.mubr.f32.mxu0 0.0
  %3864 = vmatmul.mubr.f32.gmra.mrb[0].mxu0 %v1372
  %v3865 = vpop.f32.mrb[0].mxu0
  %v3866 = vadd.f32 0.0, %v3865
  %v3867 = vpop.f32.mrb[0].mxu0
  %3868 = vdwg.mxu0
  %v3869 = vld [vmem:[%s15 + $0x40] sm:$0xff]
  %v3870 = vld [vmem:[%s15 + $0x48] sm:$0xff]
  %v3871 = vld [vmem:[%s15 + $0x50] sm:$0xff]
  %v3872 = vld [vmem:[%s15 + $0x58] sm:$0xff]
  %v3874 = vsel %vm1082, %v3866, 0
  %3876 = vmatprep.subr.mxu0 0.0
  %3877 = vmatpush1.msra.mxu0 %v3869
  %3878 = vmatprep.subr.mxu0 0.0
  %3879 = vmatpush1.msra.mxu0 %v3870
  %3880 = vmatprep.subr.mxu0 0.0
  %3881 = vmatpush1.msra.mxu0 %v3871
  %3882 = vmatprep.subr.mxu0 0.0
  %3883 = vmatpush1.msra.mxu0 %v3872
  %3884 = vmatprep.subr.mxu0 0.0
  %3885 = vmatpush1.msra.mxu0 0.0
  %3886 = vmatprep.subr.mxu0 0.0
  %3887 = vmatpush1.msra.mxu0 0.0
  %3888 = vmatprep.subr.mxu0 0.0
  %3889 = vmatpush1.msra.mxu0 0.0
  %3890 = vmatprep.subr.mxu0 0.0
  %3891 = vmatpush1.msra.mxu0 0.0
  %3892 = vmatprep.subr.mxu0 0.0
  %3893 = vmatpush1.msra.mxu0 0.0
  %3894 = vmatprep.subr.mxu0 0.0
  %3895 = vmatpush1.msra.mxu0 0.0
  %3896 = vmatprep.subr.mxu0 0.0
  %3897 = vmatpush1.msra.mxu0 0.0
  %3898 = vmatprep.subr.mxu0 0.0
  %3899 = vmatpush1.msra.mxu0 0.0
  %3900 = vmatprep.subr.mxu0 0.0
  %3901 = vmatpush1.msra.mxu0 0.0
  %3902 = vmatprep.subr.mxu0 0.0
  %3903 = vmatpush1.msra.mxu0 0.0
  %3904 = vmatprep.subr.mxu0 0.0
  %3905 = vmatpush1.msra.mxu0 0.0
  %3906 = vmatprep.subr.mxu0 0.0
  %3907 = vmatpush1.msra.mxu0 0.0
  %3908 = vmatprep.subr.mxu0 0.0
  %3909 = vmatpush1.msra.mxu0 0.0
  %3910 = vmatprep.subr.mxu0 0.0
  %3911 = vmatpush1.msra.mxu0 0.0
  %3912 = vmatprep.subr.mxu0 0.0
  %3913 = vmatpush1.msra.mxu0 0.0
  %3914 = vmatprep.subr.mxu0 0.0
  %3915 = vmatpush1.msra.mxu0 0.0
  %3916 = vmatprep.subr.mxu0 0.0
  %3917 = vmatpush1.msra.mxu0 0.0
  %3918 = vmatprep.subr.mxu0 0.0
  %3919 = vmatpush1.msra.mxu0 0.0
  %3920 = vmatprep.subr.mxu0 0.0
  %3921 = vmatpush1.msra.mxu0 0.0
  %3922 = vmatprep.subr.mxu0 0.0
  %3923 = vmatpush1.msra.mxu0 0.0
  %3924 = vmatprep.subr.mxu0 0.0
  %3925 = vmatpush1.msra.mxu0 0.0
  %3926 = vmatprep.subr.mxu0 0.0
  %3927 = vmatpush1.msra.mxu0 0.0
  %3928 = vmatprep.subr.mxu0 0.0
  %3929 = vmatpush1.msra.mxu0 0.0
  %3930 = vmatprep.subr.mxu0 0.0
  %3931 = vmatpush1.msra.mxu0 0.0
  %3932 = vmatprep.subr.mxu0 0.0
  %3933 = vmatpush1.msra.mxu0 0.0
  %3934 = vmatprep.subr.mxu0 0.0
  %3935 = vmatpush1.msra.mxu0 0.0
  %3936 = vmatprep.subr.mxu0 0.0
  %3937 = vmatpush1.msra.mxu0 0.0
  %3938 = vmatprep.subr.mxu0 0.0
  %3939 = vmatpush1.msra.mxu0 0.0
  %3940 = vmatprep.mubr.f32.mxu0 0.0
  %3941 = vmatmul.mubr.f32.gmra.mrb[0].mxu0 %v3874
  %v3942 = vpop.f32.mrb[0].mxu0
  %v3943 = vadd.f32 0.0, %v3942
  %v3944 = vpop.f32.mrb[0].mxu0
  %3945 = vdwg.mxu0
  %v3946 = vadd.f32 %v2730, %v3943
  %v3947 = vpack.c.bf16 %v3792, %v3791
  %v3948 = vpack.c.bf16 %v3794, %v3793
  %v3949 = vpack.c.bf16 %v3796, %v3795
  %v3950 = vpack.c.bf16 %v3798, %v3797
  %s3951 = scalar_lea.vmem %s13, 32
  %v3952 = vld [vmem:[%s3951] sm:$0xf]
  %v3953 = vld [vmem:[%s3951 + $0x4] sm:$0xf]
  %v3954 = vld [vmem:[%s3951 + $0x8] sm:$0xf]
  %v3955 = vld [vmem:[%s3951 + $0xc] sm:$0xf]
  %v3960 = vunpack.c.l.b16 %v3952
  %v3961 = vunpack.c.l.b16 %v3953
  %v3962 = vunpack.c.l.b16 %v3954
  %v3963 = vunpack.c.l.b16 %v3955
  %v3964 = vpack.c.b16 %v3961, %v3960
  %v3965 = vpack.c.b16 %v3963, %v3962
  %v3969 = vsel %vm1082, %v3947, 0
  %v3972 = vsel %vm1082, %v3948, 0
  %v3975 = vsel %vm1082, %v3949, 0
  %v3978 = vsel %vm1082, %v3950, 0
  %3980 = vmatprep.subr.bf16.mxu0 0
  %3981 = vmatpush1.bf16.msra.mxu0 %v3964
  %3982 = vmatprep.subr.bf16.mxu0 0
  %3983 = vmatpush1.bf16.msra.mxu0 %v3965
  %3984 = vmatprep.subr.bf16.mxu0 0
  %3985 = vmatpush1.bf16.msra.mxu0 0
  %3986 = vmatprep.subr.bf16.mxu0 0
  %3987 = vmatpush1.bf16.msra.mxu0 0
  %3988 = vmatprep.subr.bf16.mxu0 0
  %3989 = vmatpush1.bf16.msra.mxu0 0
  %3990 = vmatprep.subr.bf16.mxu0 0
  %3991 = vmatpush1.bf16.msra.mxu0 0
  %3992 = vmatprep.subr.bf16.mxu0 0
  %3993 = vmatpush1.bf16.msra.mxu0 0
  %3994 = vmatprep.subr.bf16.mxu0 0
  %3995 = vmatpush1.bf16.msra.mxu0 0
  %3996 = vmatprep.subr.bf16.mxu0 0
  %3997 = vmatpush1.bf16.msra.mxu0 0
  %3998 = vmatprep.subr.bf16.mxu0 0
  %3999 = vmatpush1.bf16.msra.mxu0 0
  %4000 = vmatprep.subr.bf16.mxu0 0
  %4001 = vmatpush1.bf16.msra.mxu0 0
  %4002 = vmatprep.subr.bf16.mxu0 0
  %4003 = vmatpush1.bf16.msra.mxu0 0
  %4004 = vmatprep.subr.bf16.mxu0 0
  %4005 = vmatpush1.bf16.msra.mxu0 0
  %4006 = vmatprep.subr.bf16.mxu0 0
  %4007 = vmatpush1.bf16.msra.mxu0 0
  %4008 = vmatprep.subr.bf16.mxu0 0
  %4009 = vmatpush1.bf16.msra.mxu0 0
  %4010 = vmatprep.subr.bf16.mxu0 0
  %4011 = vmatpush1.bf16.msra.mxu0 0
  %4012 = vmatprep.mubr.bf16.mxu0 0
  %4013 = vmatmul.mubr.bf16.gmra.mrb[0].mxu0 %v3969
  %v4014 = vpop.f32.mrb[0].mxu0
  %v4015 = vadd.f32 0.0, %v4014
  %v4016 = vpop.f32.mrb[0].mxu0
  %v4017 = vpop.f32.mrb[0].mxu0
  %v4018 = vadd.f32 0.0, %v4017
  %v4019 = vpop.f32.mrb[0].mxu0
  %4020 = vmatprep.mubr.bf16.mxu0 0
  %4021 = vmatmul.mubr.bf16.gmra.mrb[0].mxu0 %v3972
  %v4022 = vpop.f32.mrb[0].mxu0
  %v4023 = vadd.f32 0.0, %v4022
  %v4024 = vpop.f32.mrb[0].mxu0
  %v4025 = vpop.f32.mrb[0].mxu0
  %v4026 = vadd.f32 0.0, %v4025
  %v4027 = vpop.f32.mrb[0].mxu0
  %4028 = vmatprep.mubr.bf16.mxu0 0
  %4029 = vmatmul.mubr.bf16.gmra.mrb[0].mxu0 %v3975
  %v4030 = vpop.f32.mrb[0].mxu0
  %v4031 = vadd.f32 0.0, %v4030
  %v4032 = vpop.f32.mrb[0].mxu0
  %v4033 = vpop.f32.mrb[0].mxu0
  %v4034 = vadd.f32 0.0, %v4033
  %v4035 = vpop.f32.mrb[0].mxu0
  %4036 = vmatprep.mubr.bf16.mxu0 0
  %4037 = vmatmul.mubr.bf16.gmra.mrb[0].mxu0 %v3978
  %v4038 = vpop.f32.mrb[0].mxu0
  %v4039 = vadd.f32 0.0, %v4038
  %v4040 = vpop.f32.mrb[0].mxu0
  %v4041 = vpop.f32.mrb[0].mxu0
  %v4042 = vadd.f32 0.0, %v4041
  %v4043 = vpop.f32.mrb[0].mxu0
  %4044 = vdwg.mxu0
  %v4045 = vpack.c.bf16 %v4018, %v4015
  %v4046 = vpack.c.bf16 %v4026, %v4023
  %v4047 = vpack.c.bf16 %v4034, %v4031
  %v4048 = vpack.c.bf16 %v4042, %v4039
  %v4049 = vmul.bf16 %v4045, %v107
  %v4050 = vmul.bf16 %v4046, %v107
  %v4051 = vmul.bf16 %v4047, %v107
  %v4052 = vmul.bf16 %v4048, %v107
  %v4053 = vmul.bf16 %v4045, %v135
  %v4054 = vmul.bf16 %v4046, %v135
  %v4055 = vmul.bf16 %v4047, %v135
  %v4056 = vmul.bf16 %v4048, %v135
  %4057 = vmatprep.subr.bf16.mxu0 0
  %4058 = vmatpush1.bf16.msra.mxu0 %v4053
  %4059 = vmatprep.subr.bf16.mxu0 0
  %4060 = vmatpush1.bf16.msra.mxu0 %v4054
  %4061 = vmatprep.subr.bf16.mxu0 0
  %4062 = vmatpush1.bf16.msra.mxu0 %v4055
  %4063 = vmatprep.subr.bf16.mxu0 0
  %4064 = vmatpush1.bf16.msra.mxu0 %v4056
  %4065 = vmatprep.subr.bf16.mxu0 0
  %4066 = vmatpush1.bf16.msra.mxu0 0
  %4067 = vmatprep.subr.bf16.mxu0 0
  %4068 = vmatpush1.bf16.msra.mxu0 0
  %4069 = vmatprep.subr.bf16.mxu0 0
  %4070 = vmatpush1.bf16.msra.mxu0 0
  %4071 = vmatprep.subr.bf16.mxu0 0
  %4072 = vmatpush1.bf16.msra.mxu0 0
  %4073 = vmatprep.subr.bf16.mxu0 0
  %4074 = vmatpush1.bf16.msra.mxu0 0
  %4075 = vmatprep.subr.bf16.mxu0 0
  %4076 = vmatpush1.bf16.msra.mxu0 0
  %4077 = vmatprep.subr.bf16.mxu0 0
  %4078 = vmatpush1.bf16.msra.mxu0 0
  %4079 = vmatprep.subr.bf16.mxu0 0
  %4080 = vmatpush1.bf16.msra.mxu0 0
  %4081 = vmatprep.subr.bf16.mxu0 0
  %4082 = vmatpush1.bf16.msra.mxu0 0
  %4083 = vmatprep.subr.bf16.mxu0 0
  %4084 = vmatpush1.bf16.msra.mxu0 0
  %4085 = vmatprep.subr.bf16.mxu0 0
  %4086 = vmatpush1.bf16.msra.mxu0 0
  %4087 = vmatprep.subr.bf16.mxu0 0
  %4088 = vmatpush1.bf16.msra.mxu0 0
  %4089 = vmatprep.mubr.bf16.mxu0 0
  %4090 = vmatmul.mubr.bf16.gmra.mrb[0].mxu0 %v194
  %v4091 = vpop.f32.mrb[0].mxu0
  %v4092 = vadd.f32 0.0, %v4091
  %v4093 = vpop.f32.mrb[0].mxu0
  %v4094 = vpop.f32.mrb[0].mxu0
  %v4095 = vadd.f32 0.0, %v4094
  %v4096 = vpop.f32.mrb[0].mxu0
  %4097 = vmatprep.mubr.bf16.mxu0 0
  %4098 = vmatmul.mubr.bf16.gmra.mrb[0].mxu0 %v197
  %v4099 = vpop.f32.mrb[0].mxu0
  %v4100 = vadd.f32 0.0, %v4099
  %v4101 = vpop.f32.mrb[0].mxu0
  %v4102 = vpop.f32.mrb[0].mxu0
  %v4103 = vadd.f32 0.0, %v4102
  %v4104 = vpop.f32.mrb[0].mxu0
  %4105 = vmatprep.mubr.bf16.mxu0 0
  %4106 = vmatmul.mubr.bf16.gmra.mrb[0].mxu0 %v200
  %v4107 = vpop.f32.mrb[0].mxu0
  %v4108 = vadd.f32 0.0, %v4107
  %v4109 = vpop.f32.mrb[0].mxu0
  %v4110 = vpop.f32.mrb[0].mxu0
  %v4111 = vadd.f32 0.0, %v4110
  %v4112 = vpop.f32.mrb[0].mxu0
  %4113 = vmatprep.mubr.bf16.mxu0 0
  %4114 = vmatmul.mubr.bf16.gmra.mrb[0].mxu0 %v203
  %v4115 = vpop.f32.mrb[0].mxu0
  %v4116 = vadd.f32 0.0, %v4115
  %v4117 = vpop.f32.mrb[0].mxu0
  %v4118 = vpop.f32.mrb[0].mxu0
  %v4119 = vadd.f32 0.0, %v4118
  %v4120 = vpop.f32.mrb[0].mxu0
  %4121 = vdwg.mxu0
  %4122 = vmatprep.subr.bf16.mxu0 0
  %4123 = vmatpush1.bf16.msra.mxu0 %v4049
  %4124 = vmatprep.subr.bf16.mxu0 0
  %4125 = vmatpush1.bf16.msra.mxu0 %v4050
  %4126 = vmatprep.subr.bf16.mxu0 0
  %4127 = vmatpush1.bf16.msra.mxu0 %v4051
  %4128 = vmatprep.subr.bf16.mxu0 0
  %4129 = vmatpush1.bf16.msra.mxu0 %v4052
  %4130 = vmatprep.subr.bf16.mxu0 0
  %4131 = vmatpush1.bf16.msra.mxu0 0
  %4132 = vmatprep.subr.bf16.mxu0 0
  %4133 = vmatpush1.bf16.msra.mxu0 0
  %4134 = vmatprep.subr.bf16.mxu0 0
  %4135 = vmatpush1.bf16.msra.mxu0 0
  %4136 = vmatprep.subr.bf16.mxu0 0
  %4137 = vmatpush1.bf16.msra.mxu0 0
  %4138 = vmatprep.subr.bf16.mxu0 0
  %4139 = vmatpush1.bf16.msra.mxu0 0
  %4140 = vmatprep.subr.bf16.mxu0 0
  %4141 = vmatpush1.bf16.msra.mxu0 0
  %4142 = vmatprep.subr.bf16.mxu0 0
  %4143 = vmatpush1.bf16.msra.mxu0 0
  %4144 = vmatprep.subr.bf16.mxu0 0
  %4145 = vmatpush1.bf16.msra.mxu0 0
  %4146 = vmatprep.subr.bf16.mxu0 0
  %4147 = vmatpush1.bf16.msra.mxu0 0
  %4148 = vmatprep.subr.bf16.mxu0 0
  %4149 = vmatpush1.bf16.msra.mxu0 0
  %4150 = vmatprep.subr.bf16.mxu0 0
  %4151 = vmatpush1.bf16.msra.mxu0 0
  %4152 = vmatprep.subr.bf16.mxu0 0
  %4153 = vmatpush1.bf16.msra.mxu0 0
  %4154 = vmatprep.mubr.bf16.mxu0 0
  %4155 = vmatmul.mubr.bf16.gmra.mrb[0].mxu0 %v315
  %v4156 = vpop.f32.mrb[0].mxu0
  %v4157 = vadd.f32 %v4092, %v4156
  %v4158 = vpop.f32.mrb[0].mxu0
  %v4159 = vpop.f32.mrb[0].mxu0
  %v4160 = vadd.f32 %v4095, %v4159
  %v4161 = vpop.f32.mrb[0].mxu0
  %4162 = vmatprep.mubr.bf16.mxu0 0
  %4163 = vmatmul.mubr.bf16.gmra.mrb[0].mxu0 %v318
  %v4164 = vpop.f32.mrb[0].mxu0
  %v4165 = vadd.f32 %v4100, %v4164
  %v4166 = vpop.f32.mrb[0].mxu0
  %v4167 = vpop.f32.mrb[0].mxu0
  %v4168 = vadd.f32 %v4103, %v4167
  %v4169 = vpop.f32.mrb[0].mxu0
  %4170 = vmatprep.mubr.bf16.mxu0 0
  %4171 = vmatmul.mubr.bf16.gmra.mrb[0].mxu0 %v321
  %v4172 = vpop.f32.mrb[0].mxu0
  %v4173 = vadd.f32 %v4108, %v4172
  %v4174 = vpop.f32.mrb[0].mxu0
  %v4175 = vpop.f32.mrb[0].mxu0
  %v4176 = vadd.f32 %v4111, %v4175
  %v4177 = vpop.f32.mrb[0].mxu0
  %4178 = vmatprep.mubr.bf16.mxu0 0
  %4179 = vmatmul.mubr.bf16.gmra.mrb[0].mxu0 %v324
  %v4180 = vpop.f32.mrb[0].mxu0
  %v4181 = vadd.f32 %v4116, %v4180
  %v4182 = vpop.f32.mrb[0].mxu0
  %v4183 = vpop.f32.mrb[0].mxu0
  %v4184 = vadd.f32 %v4119, %v4183
  %v4185 = vpop.f32.mrb[0].mxu0
  %4186 = vdwg.mxu0
  %v4187 = vmul.bf16 %v4045, %v406
  %v4188 = vmul.bf16 %v4046, %v406
  %v4189 = vmul.bf16 %v4047, %v406
  %v4190 = vmul.bf16 %v4048, %v406
  %4191 = vmatprep.subr.bf16.mxu0 0
  %4192 = vmatpush1.bf16.msra.mxu0 %v4187
  %4193 = vmatprep.subr.bf16.mxu0 0
  %4194 = vmatpush1.bf16.msra.mxu0 %v4188
  %4195 = vmatprep.subr.bf16.mxu0 0
  %4196 = vmatpush1.bf16.msra.mxu0 %v4189
  %4197 = vmatprep.subr.bf16.mxu0 0
  %4198 = vmatpush1.bf16.msra.mxu0 %v4190
  %4199 = vmatprep.subr.bf16.mxu0 0
  %4200 = vmatpush1.bf16.msra.mxu0 0
  %4201 = vmatprep.subr.bf16.mxu0 0
  %4202 = vmatpush1.bf16.msra.mxu0 0
  %4203 = vmatprep.subr.bf16.mxu0 0
  %4204 = vmatpush1.bf16.msra.mxu0 0
  %4205 = vmatprep.subr.bf16.mxu0 0
  %4206 = vmatpush1.bf16.msra.mxu0 0
  %4207 = vmatprep.subr.bf16.mxu0 0
  %4208 = vmatpush1.bf16.msra.mxu0 0
  %4209 = vmatprep.subr.bf16.mxu0 0
  %4210 = vmatpush1.bf16.msra.mxu0 0
  %4211 = vmatprep.subr.bf16.mxu0 0
  %4212 = vmatpush1.bf16.msra.mxu0 0
  %4213 = vmatprep.subr.bf16.mxu0 0
  %4214 = vmatpush1.bf16.msra.mxu0 0
  %4215 = vmatprep.subr.bf16.mxu0 0
  %4216 = vmatpush1.bf16.msra.mxu0 0
  %4217 = vmatprep.subr.bf16.mxu0 0
  %4218 = vmatpush1.bf16.msra.mxu0 0
  %4219 = vmatprep.subr.bf16.mxu0 0
  %4220 = vmatpush1.bf16.msra.mxu0 0
  %4221 = vmatprep.subr.bf16.mxu0 0
  %4222 = vmatpush1.bf16.msra.mxu0 0
  %4223 = vmatprep.mubr.bf16.mxu0 0
  %4224 = vmatmul.mubr.bf16.gmra.mrb[0].mxu0 %v464
  %v4225 = vpop.f32.mrb[0].mxu0
  %v4226 = vadd.f32 0.0, %v4225
  %v4227 = vpop.f32.mrb[0].mxu0
  %v4228 = vpop.f32.mrb[0].mxu0
  %v4229 = vadd.f32 0.0, %v4228
  %v4230 = vpop.f32.mrb[0].mxu0
  %4231 = vmatprep.mubr.bf16.mxu0 0
  %4232 = vmatmul.mubr.bf16.gmra.mrb[0].mxu0 %v467
  %v4233 = vpop.f32.mrb[0].mxu0
  %v4234 = vadd.f32 0.0, %v4233
  %v4235 = vpop.f32.mrb[0].mxu0
  %v4236 = vpop.f32.mrb[0].mxu0
  %v4237 = vadd.f32 0.0, %v4236
  %v4238 = vpop.f32.mrb[0].mxu0
  %4239 = vmatprep.mubr.bf16.mxu0 0
  %4240 = vmatmul.mubr.bf16.gmra.mrb[0].mxu0 %v470
  %v4241 = vpop.f32.mrb[0].mxu0
  %v4242 = vadd.f32 0.0, %v4241
  %v4243 = vpop.f32.mrb[0].mxu0
  %v4244 = vpop.f32.mrb[0].mxu0
  %v4245 = vadd.f32 0.0, %v4244
  %v4246 = vpop.f32.mrb[0].mxu0
  %4247 = vmatprep.mubr.bf16.mxu0 0
  %4248 = vmatmul.mubr.bf16.gmra.mrb[0].mxu0 %v473
  %v4249 = vpop.f32.mrb[0].mxu0
  %v4250 = vadd.f32 0.0, %v4249
  %v4251 = vpop.f32.mrb[0].mxu0
  %v4252 = vpop.f32.mrb[0].mxu0
  %v4253 = vadd.f32 0.0, %v4252
  %v4254 = vpop.f32.mrb[0].mxu0
  %4255 = vdwg.mxu0
  %v4256 = vadd.f32 %v4157, %v4226
  %v4257 = vadd.f32 %v4160, %v4229
  %v4258 = vadd.f32 %v4165, %v4234
  %v4259 = vadd.f32 %v4168, %v4237
  %v4260 = vadd.f32 %v4173, %v4242
  %v4261 = vadd.f32 %v4176, %v4245
  %v4262 = vadd.f32 %v4181, %v4250
  %v4263 = vadd.f32 %v4184, %v4253
  %v4264 = vmul.bf16 %v4045, %v563
  %v4265 = vmul.bf16 %v4046, %v563
  %v4266 = vmul.bf16 %v4047, %v563
  %v4267 = vmul.bf16 %v4048, %v563
  %4268 = vmatprep.subr.bf16.mxu0 0
  %4269 = vmatpush1.bf16.msra.mxu0 %v4264
  %4270 = vmatprep.subr.bf16.mxu0 0
  %4271 = vmatpush1.bf16.msra.mxu0 %v4265
  %4272 = vmatprep.subr.bf16.mxu0 0
  %4273 = vmatpush1.bf16.msra.mxu0 %v4266
  %4274 = vmatprep.subr.bf16.mxu0 0
  %4275 = vmatpush1.bf16.msra.mxu0 %v4267
  %4276 = vmatprep.subr.bf16.mxu0 0
  %4277 = vmatpush1.bf16.msra.mxu0 0
  %4278 = vmatprep.subr.bf16.mxu0 0
  %4279 = vmatpush1.bf16.msra.mxu0 0
  %4280 = vmatprep.subr.bf16.mxu0 0
  %4281 = vmatpush1.bf16.msra.mxu0 0
  %4282 = vmatprep.subr.bf16.mxu0 0
  %4283 = vmatpush1.bf16.msra.mxu0 0
  %4284 = vmatprep.subr.bf16.mxu0 0
  %4285 = vmatpush1.bf16.msra.mxu0 0
  %4286 = vmatprep.subr.bf16.mxu0 0
  %4287 = vmatpush1.bf16.msra.mxu0 0
  %4288 = vmatprep.subr.bf16.mxu0 0
  %4289 = vmatpush1.bf16.msra.mxu0 0
  %4290 = vmatprep.subr.bf16.mxu0 0
  %4291 = vmatpush1.bf16.msra.mxu0 0
  %4292 = vmatprep.subr.bf16.mxu0 0
  %4293 = vmatpush1.bf16.msra.mxu0 0
  %4294 = vmatprep.subr.bf16.mxu0 0
  %4295 = vmatpush1.bf16.msra.mxu0 0
  %4296 = vmatprep.subr.bf16.mxu0 0
  %4297 = vmatpush1.bf16.msra.mxu0 0
  %4298 = vmatprep.subr.bf16.mxu0 0
  %4299 = vmatpush1.bf16.msra.mxu0 0
  %4300 = vmatprep.mubr.bf16.mxu0 0
  %4301 = vmatmul.mubr.bf16.gmra.mrb[0].mxu0 %v621
  %v4302 = vpop.f32.mrb[0].mxu0
  %v4303 = vadd.f32 0.0, %v4302
  %v4304 = vpop.f32.mrb[0].mxu0
  %v4305 = vpop.f32.mrb[0].mxu0
  %v4306 = vadd.f32 0.0, %v4305
  %v4307 = vpop.f32.mrb[0].mxu0
  %4308 = vmatprep.mubr.bf16.mxu0 0
  %4309 = vmatmul.mubr.bf16.gmra.mrb[0].mxu0 %v624
  %v4310 = vpop.f32.mrb[0].mxu0
  %v4311 = vadd.f32 0.0, %v4310
  %v4312 = vpop.f32.mrb[0].mxu0
  %v4313 = vpop.f32.mrb[0].mxu0
  %v4314 = vadd.f32 0.0, %v4313
  %v4315 = vpop.f32.mrb[0].mxu0
  %4316 = vmatprep.mubr.bf16.mxu0 0
  %4317 = vmatmul.mubr.bf16.gmra.mrb[0].mxu0 %v627
  %v4318 = vpop.f32.mrb[0].mxu0
  %v4319 = vadd.f32 0.0, %v4318
  %v4320 = vpop.f32.mrb[0].mxu0
  %v4321 = vpop.f32.mrb[0].mxu0
  %v4322 = vadd.f32 0.0, %v4321
  %v4323 = vpop.f32.mrb[0].mxu0
  %4324 = vmatprep.mubr.bf16.mxu0 0
  %4325 = vmatmul.mubr.bf16.gmra.mrb[0].mxu0 %v630
  %v4326 = vpop.f32.mrb[0].mxu0
  %v4327 = vadd.f32 0.0, %v4326
  %v4328 = vpop.f32.mrb[0].mxu0
  %v4329 = vpop.f32.mrb[0].mxu0
  %v4330 = vadd.f32 0.0, %v4329
  %v4331 = vpop.f32.mrb[0].mxu0
  %4332 = vdwg.mxu0
  %v4333 = vadd.f32 %v4256, %v4303
  %v4334 = vadd.f32 %v4257, %v4306
  %v4335 = vadd.f32 %v4258, %v4311
  %v4336 = vadd.f32 %v4259, %v4314
  %v4337 = vadd.f32 %v4260, %v4319
  %v4338 = vadd.f32 %v4261, %v4322
  %v4339 = vadd.f32 %v4262, %v4327
  %v4340 = vadd.f32 %v4263, %v4330
  %s4341 = scalar_lea.vmem %s3, 3
  %v4342 = vld [vmem:[%s4341] sm:$0x1]
  %v4343 = vunpack.c.l.bf16 %v4045
  %v4344 = vunpack.c.h.bf16 %v4045
  %v4345 = vunpack.c.l.bf16 %v4046
  %v4346 = vunpack.c.h.bf16 %v4046
  %v4347 = vunpack.c.l.bf16 %v4047
  %v4348 = vunpack.c.h.bf16 %v4047
  %v4349 = vunpack.c.l.bf16 %v4048
  %v4350 = vunpack.c.h.bf16 %v4048
  %v4352 = vlaneseq
  %v4353 = vshrl.u32 %v4352, 7
  %v4354 = vsub.s32 0, %v4353
  %v4355 = vrot.slane %v4342, %v4354
  %v4357 = vmul.f32 %v4355, %v4343
  %v4358 = vmul.f32 %v4355, %v4344
  %v4359 = vmul.f32 %v4355, %v4345
  %v4360 = vmul.f32 %v4355, %v4346
  %v4361 = vmul.f32 %v4355, %v4347
  %v4362 = vmul.f32 %v4355, %v4348
  %v4363 = vmul.f32 %v4355, %v4349
  %v4364 = vmul.f32 %v4355, %v4350
  %v4365 = vadd.f32 %v4357, %v4333
  %v4366 = vadd.f32 %v4358, %v4334
  %v4367 = vadd.f32 %v4359, %v4335
  %v4368 = vadd.f32 %v4360, %v4336
  %v4369 = vadd.f32 %v4361, %v4337
  %v4370 = vadd.f32 %v4362, %v4338
  %v4371 = vadd.f32 %v4363, %v4339
  %v4372 = vadd.f32 %v4364, %v4340
  %s4373 = scalar_lea.vmem %s4, 3
  %v4374 = vld [vmem:[%s4373] sm:$0x1]
  %v4376 = vlaneseq
  %v4377 = vshrl.u32 %v4376, 7
  %v4378 = vsub.s32 0, %v4377
  %v4379 = vrot.slane %v4374, %v4378
  %v4381 = vadd.f32 %v4365, %v4379
  %v4382 = vadd.f32 %v4366, %v4379
  %v4383 = vadd.f32 %v4367, %v4379
  %v4384 = vadd.f32 %v4368, %v4379
  %v4385 = vadd.f32 %v4369, %v4379
  %v4386 = vadd.f32 %v4370, %v4379
  %v4387 = vadd.f32 %v4371, %v4379
  %v4388 = vadd.f32 %v4372, %v4379
  %v4389 = vmax.f32 %v4381, 0.0
  %v4390 = vmax.f32 %v4382, 0.0
  %v4391 = vmax.f32 %v4383, 0.0
  %v4392 = vmax.f32 %v4384, 0.0
  %v4393 = vmax.f32 %v4385, 0.0
  %v4394 = vmax.f32 %v4386, 0.0
  %v4395 = vmax.f32 %v4387, 0.0
  %v4396 = vmax.f32 %v4388, 0.0
  %v4397 = vpack.c.bf16 %v4390, %v4389
  %v4398 = vpack.c.bf16 %v4392, %v4391
  %v4399 = vpack.c.bf16 %v4394, %v4393
  %v4400 = vpack.c.bf16 %v4396, %v4395
  %s4401 = scalar_lea.vmem %s5, 192
  %v4402 = vld [vmem:[%s4401] sm:$0xf]
  %v4403 = vld [vmem:[%s4401 + $0x4] sm:$0xf]
  %v4404 = vld [vmem:[%s4401 + $0x8] sm:$0xf]
  %v4405 = vld [vmem:[%s4401 + $0xc] sm:$0xf]
  %v4406 = vld [vmem:[%s4401 + $0x10] sm:$0xf]
  %v4407 = vld [vmem:[%s4401 + $0x14] sm:$0xf]
  %v4408 = vld [vmem:[%s4401 + $0x18] sm:$0xf]
  %v4409 = vld [vmem:[%s4401 + $0x1c] sm:$0xf]
  %v4410 = vld [vmem:[%s4401 + $0x20] sm:$0xf]
  %v4411 = vld [vmem:[%s4401 + $0x24] sm:$0xf]
  %v4412 = vld [vmem:[%s4401 + $0x28] sm:$0xf]
  %v4413 = vld [vmem:[%s4401 + $0x2c] sm:$0xf]
  %v4414 = vld [vmem:[%s4401 + $0x30] sm:$0xf]
  %v4415 = vld [vmem:[%s4401 + $0x34] sm:$0xf]
  %v4416 = vld [vmem:[%s4401 + $0x38] sm:$0xf]
  %v4417 = vld [vmem:[%s4401 + $0x3c] sm:$0xf]
  %s4418 = scalar_lea.vmem %s6, 3
  %v4419 = vld [vmem:[%s4418] sm:$0x1]
  %v4421 = vlaneseq
  %v4422 = vshrl.u32 %v4421, 7
  %v4423 = vsub.s32 0, %v4422
  %v4424 = vrot.slane %v4419, %v4423
  %v4442 = vunpack.c.l.b16 %v4402
  %v4443 = vunpack.c.l.b16 %v4403
  %v4444 = vunpack.c.l.b16 %v4404
  %v4445 = vunpack.c.l.b16 %v4405
  %v4446 = vunpack.c.l.b16 %v4406
  %v4447 = vunpack.c.l.b16 %v4407
  %v4448 = vunpack.c.l.b16 %v4408
  %v4449 = vunpack.c.l.b16 %v4409
  %v4450 = vunpack.c.l.b16 %v4410
  %v4451 = vunpack.c.l.b16 %v4411
  %v4452 = vunpack.c.l.b16 %v4412
  %v4453 = vunpack.c.l.b16 %v4413
  %v4454 = vunpack.c.l.b16 %v4414
  %v4455 = vunpack.c.l.b16 %v4415
  %v4456 = vunpack.c.l.b16 %v4416
  %v4457 = vunpack.c.l.b16 %v4417
  %v4458 = vpack.c.b16 %v4443, %v4442
  %v4459 = vpack.c.b16 %v4445, %v4444
  %v4460 = vpack.c.b16 %v4447, %v4446
  %v4461 = vpack.c.b16 %v4449, %v4448
  %v4462 = vpack.c.b16 %v4451, %v4450
  %v4463 = vpack.c.b16 %v4453, %v4452
  %v4464 = vpack.c.b16 %v4455, %v4454
  %v4465 = vpack.c.b16 %v4457, %v4456
  %4474 = vmatprep.subr.bf16.mxu0 0
  %4475 = vmatpush1.bf16.msra.mxu0 %v4458
  %4476 = vmatprep.subr.bf16.mxu0 0
  %4477 = vmatpush1.bf16.msra.mxu0 %v4459
  %4478 = vmatprep.subr.bf16.mxu0 0
  %4479 = vmatpush1.bf16.msra.mxu0 %v4460
  %4480 = vmatprep.subr.bf16.mxu0 0
  %4481 = vmatpush1.bf16.msra.mxu0 %v4461
  %4482 = vmatprep.subr.bf16.mxu0 0
  %4483 = vmatpush1.bf16.msra.mxu0 %v4462
  %4484 = vmatprep.subr.bf16.mxu0 0
  %4485 = vmatpush1.bf16.msra.mxu0 %v4463
  %4486 = vmatprep.subr.bf16.mxu0 0
  %4487 = vmatpush1.bf16.msra.mxu0 %v4464
  %4488 = vmatprep.subr.bf16.mxu0 0
  %4489 = vmatpush1.bf16.msra.mxu0 %v4465
  %4490 = vmatprep.subr.bf16.mxu0 0
  %4491 = vmatpush1.bf16.msra.mxu0 0
  %4492 = vmatprep.subr.bf16.mxu0 0
  %4493 = vmatpush1.bf16.msra.mxu0 0
  %4494 = vmatprep.subr.bf16.mxu0 0
  %4495 = vmatpush1.bf16.msra.mxu0 0
  %4496 = vmatprep.subr.bf16.mxu0 0
  %4497 = vmatpush1.bf16.msra.mxu0 0
  %4498 = vmatprep.subr.bf16.mxu0 0
  %4499 = vmatpush1.bf16.msra.mxu0 0
  %4500 = vmatprep.subr.bf16.mxu0 0
  %4501 = vmatpush1.bf16.msra.mxu0 0
  %4502 = vmatprep.subr.bf16.mxu0 0
  %4503 = vmatpush1.bf16.msra.mxu0 0
  %4504 = vmatprep.subr.bf16.mxu0 0
  %4505 = vmatpush1.bf16.msra.mxu0 0
  %4506 = vmatprep.mubr.bf16.mxu0 0
  %4507 = vmatmul.mubr.bf16.gmra.mrb[0].mxu0 %v4397
  %v4508 = vpop.f32.mrb[0].mxu0
  %v4509 = vadd.f32 %v4424, %v4508
  %v4510 = vpop.f32.mrb[0].mxu0
  %v4511 = vpop.f32.mrb[0].mxu0
  %v4512 = vadd.f32 %v4424, %v4511
  %v4513 = vpop.f32.mrb[0].mxu0
  %4514 = vmatprep.mubr.bf16.mxu0 0
  %4515 = vmatmul.mubr.bf16.gmra.mrb[0].mxu0 %v4398
  %v4516 = vpop.f32.mrb[0].mxu0
  %v4517 = vadd.f32 %v4424, %v4516
  %v4518 = vpop.f32.mrb[0].mxu0
  %v4519 = vpop.f32.mrb[0].mxu0
  %v4520 = vadd.f32 %v4424, %v4519
  %v4521 = vpop.f32.mrb[0].mxu0
  %4522 = vmatprep.mubr.bf16.mxu0 0
  %4523 = vmatmul.mubr.bf16.gmra.mrb[0].mxu0 %v4399
  %v4524 = vpop.f32.mrb[0].mxu0
  %v4525 = vadd.f32 %v4424, %v4524
  %v4526 = vpop.f32.mrb[0].mxu0
  %v4527 = vpop.f32.mrb[0].mxu0
  %v4528 = vadd.f32 %v4424, %v4527
  %v4529 = vpop.f32.mrb[0].mxu0
  %4530 = vmatprep.mubr.bf16.mxu0 0
  %4531 = vmatmul.mubr.bf16.gmra.mrb[0].mxu0 %v4400
  %v4532 = vpop.f32.mrb[0].mxu0
  %v4533 = vadd.f32 %v4424, %v4532
  %v4534 = vpop.f32.mrb[0].mxu0
  %v4535 = vpop.f32.mrb[0].mxu0
  %v4536 = vadd.f32 %v4424, %v4535
  %v4537 = vpop.f32.mrb[0].mxu0
  %4538 = vdwg.mxu0
  %v4539 = vmax.f32 %v4509, 0.0
  %v4540 = vmax.f32 %v4512, 0.0
  %v4541 = vmax.f32 %v4517, 0.0
  %v4542 = vmax.f32 %v4520, 0.0
  %v4543 = vmax.f32 %v4525, 0.0
  %v4544 = vmax.f32 %v4528, 0.0
  %v4545 = vmax.f32 %v4533, 0.0
  %v4546 = vmax.f32 %v4536, 0.0
  %v4547 = vpack.c.bf16 %v4540, %v4539
  %v4548 = vpack.c.bf16 %v4542, %v4541
  %v4549 = vpack.c.bf16 %v4544, %v4543
  %v4550 = vpack.c.bf16 %v4546, %v4545
  %s4551 = scalar_lea.vmem %s7, 192
  %v4552 = vld [vmem:[%s4551] sm:$0xf]
  %v4553 = vld [vmem:[%s4551 + $0x4] sm:$0xf]
  %v4554 = vld [vmem:[%s4551 + $0x8] sm:$0xf]
  %v4555 = vld [vmem:[%s4551 + $0xc] sm:$0xf]
  %v4556 = vld [vmem:[%s4551 + $0x10] sm:$0xf]
  %v4557 = vld [vmem:[%s4551 + $0x14] sm:$0xf]
  %v4558 = vld [vmem:[%s4551 + $0x18] sm:$0xf]
  %v4559 = vld [vmem:[%s4551 + $0x1c] sm:$0xf]
  %v4560 = vld [vmem:[%s4551 + $0x20] sm:$0xf]
  %v4561 = vld [vmem:[%s4551 + $0x24] sm:$0xf]
  %v4562 = vld [vmem:[%s4551 + $0x28] sm:$0xf]
  %v4563 = vld [vmem:[%s4551 + $0x2c] sm:$0xf]
  %v4564 = vld [vmem:[%s4551 + $0x30] sm:$0xf]
  %v4565 = vld [vmem:[%s4551 + $0x34] sm:$0xf]
  %v4566 = vld [vmem:[%s4551 + $0x38] sm:$0xf]
  %v4567 = vld [vmem:[%s4551 + $0x3c] sm:$0xf]
  %s4568 = scalar_lea.vmem %s8, 3
  %v4569 = vld [vmem:[%s4568] sm:$0x1]
  %v4571 = vlaneseq
  %v4572 = vshrl.u32 %v4571, 7
  %v4573 = vsub.s32 0, %v4572
  %v4574 = vrot.slane %v4569, %v4573
  %v4592 = vunpack.c.l.b16 %v4552
  %v4593 = vunpack.c.l.b16 %v4553
  %v4594 = vunpack.c.l.b16 %v4554
  %v4595 = vunpack.c.l.b16 %v4555
  %v4596 = vunpack.c.l.b16 %v4556
  %v4597 = vunpack.c.l.b16 %v4557
  %v4598 = vunpack.c.l.b16 %v4558
  %v4599 = vunpack.c.l.b16 %v4559
  %v4600 = vunpack.c.l.b16 %v4560
  %v4601 = vunpack.c.l.b16 %v4561
  %v4602 = vunpack.c.l.b16 %v4562
  %v4603 = vunpack.c.l.b16 %v4563
  %v4604 = vunpack.c.l.b16 %v4564
  %v4605 = vunpack.c.l.b16 %v4565
  %v4606 = vunpack.c.l.b16 %v4566
  %v4607 = vunpack.c.l.b16 %v4567
  %v4608 = vpack.c.b16 %v4593, %v4592
  %v4609 = vpack.c.b16 %v4595, %v4594
  %v4610 = vpack.c.b16 %v4597, %v4596
  %v4611 = vpack.c.b16 %v4599, %v4598
  %v4612 = vpack.c.b16 %v4601, %v4600
  %v4613 = vpack.c.b16 %v4603, %v4602
  %v4614 = vpack.c.b16 %v4605, %v4604
  %v4615 = vpack.c.b16 %v4607, %v4606
  %4624 = vmatprep.subr.bf16.mxu0 0
  %4625 = vmatpush1.bf16.msra.mxu0 %v4608
  %4626 = vmatprep.subr.bf16.mxu0 0
  %4627 = vmatpush1.bf16.msra.mxu0 %v4609
  %4628 = vmatprep.subr.bf16.mxu0 0
  %4629 = vmatpush1.bf16.msra.mxu0 %v4610
  %4630 = vmatprep.subr.bf16.mxu0 0
  %4631 = vmatpush1.bf16.msra.mxu0 %v4611
  %4632 = vmatprep.subr.bf16.mxu0 0
  %4633 = vmatpush1.bf16.msra.mxu0 %v4612
  %4634 = vmatprep.subr.bf16.mxu0 0
  %4635 = vmatpush1.bf16.msra.mxu0 %v4613
  %4636 = vmatprep.subr.bf16.mxu0 0
  %4637 = vmatpush1.bf16.msra.mxu0 %v4614
  %4638 = vmatprep.subr.bf16.mxu0 0
  %4639 = vmatpush1.bf16.msra.mxu0 %v4615
  %4640 = vmatprep.subr.bf16.mxu0 0
  %4641 = vmatpush1.bf16.msra.mxu0 0
  %4642 = vmatprep.subr.bf16.mxu0 0
  %4643 = vmatpush1.bf16.msra.mxu0 0
  %4644 = vmatprep.subr.bf16.mxu0 0
  %4645 = vmatpush1.bf16.msra.mxu0 0
  %4646 = vmatprep.subr.bf16.mxu0 0
  %4647 = vmatpush1.bf16.msra.mxu0 0
  %4648 = vmatprep.subr.bf16.mxu0 0
  %4649 = vmatpush1.bf16.msra.mxu0 0
  %4650 = vmatprep.subr.bf16.mxu0 0
  %4651 = vmatpush1.bf16.msra.mxu0 0
  %4652 = vmatprep.subr.bf16.mxu0 0
  %4653 = vmatpush1.bf16.msra.mxu0 0
  %4654 = vmatprep.subr.bf16.mxu0 0
  %4655 = vmatpush1.bf16.msra.mxu0 0
  %4656 = vmatprep.mubr.bf16.mxu0 0
  %4657 = vmatmul.mubr.bf16.gmra.mrb[0].mxu0 %v4547
  %v4658 = vpop.f32.mrb[0].mxu0
  %v4659 = vadd.f32 %v4574, %v4658
  %v4660 = vpop.f32.mrb[0].mxu0
  %v4661 = vpop.f32.mrb[0].mxu0
  %v4662 = vadd.f32 %v4574, %v4661
  %v4663 = vpop.f32.mrb[0].mxu0
  %4664 = vmatprep.mubr.bf16.mxu0 0
  %4665 = vmatmul.mubr.bf16.gmra.mrb[0].mxu0 %v4548
  %v4666 = vpop.f32.mrb[0].mxu0
  %v4667 = vadd.f32 %v4574, %v4666
  %v4668 = vpop.f32.mrb[0].mxu0
  %v4669 = vpop.f32.mrb[0].mxu0
  %v4670 = vadd.f32 %v4574, %v4669
  %v4671 = vpop.f32.mrb[0].mxu0
  %4672 = vmatprep.mubr.bf16.mxu0 0
  %4673 = vmatmul.mubr.bf16.gmra.mrb[0].mxu0 %v4549
  %v4674 = vpop.f32.mrb[0].mxu0
  %v4675 = vadd.f32 %v4574, %v4674
  %v4676 = vpop.f32.mrb[0].mxu0
  %v4677 = vpop.f32.mrb[0].mxu0
  %v4678 = vadd.f32 %v4574, %v4677
  %v4679 = vpop.f32.mrb[0].mxu0
  %4680 = vmatprep.mubr.bf16.mxu0 0
  %4681 = vmatmul.mubr.bf16.gmra.mrb[0].mxu0 %v4550
  %v4682 = vpop.f32.mrb[0].mxu0
  %v4683 = vadd.f32 %v4574, %v4682
  %v4684 = vpop.f32.mrb[0].mxu0
  %v4685 = vpop.f32.mrb[0].mxu0
  %v4686 = vadd.f32 %v4574, %v4685
  %v4687 = vpop.f32.mrb[0].mxu0
  %4688 = vdwg.mxu0
  %v4689 = vmax.f32 %v4659, 0.0
  %v4690 = vmax.f32 %v4662, 0.0
  %v4691 = vmax.f32 %v4667, 0.0
  %v4692 = vmax.f32 %v4670, 0.0
  %v4693 = vmax.f32 %v4675, 0.0
  %v4694 = vmax.f32 %v4678, 0.0
  %v4695 = vmax.f32 %v4683, 0.0
  %v4696 = vmax.f32 %v4686, 0.0
  %v4697 = vpack.c.bf16 %v4690, %v4689
  %v4698 = vpack.c.bf16 %v4692, %v4691
  %v4699 = vpack.c.bf16 %v4694, %v4693
  %v4700 = vpack.c.bf16 %v4696, %v4695
  %s4701 = scalar_lea.vmem %s9, 48
  %v4702 = vld [vmem:[%s4701] sm:$0xf]
  %v4703 = vld [vmem:[%s4701 + $0x4] sm:$0xf]
  %v4704 = vld [vmem:[%s4701 + $0x8] sm:$0xf]
  %v4705 = vld [vmem:[%s4701 + $0xc] sm:$0xf]
  %s4706 = scalar_lea.vmem %s10, 3
  %v4707 = vld [vmem:[%s4706] sm:$0x1]
  %v4709 = vlaneseq
  %v4710 = vshrl.u32 %v4709, 7
  %v4711 = vsub.s32 0, %v4710
  %v4712 = vrot.slane %v4707, %v4711
  %v4718 = vunpack.c.l.b16 %v4702
  %v4719 = vunpack.c.l.b16 %v4703
  %v4720 = vunpack.c.l.b16 %v4704
  %v4721 = vunpack.c.l.b16 %v4705
  %v4722 = vpack.c.b16 %v4719, %v4718
  %v4723 = vpack.c.b16 %v4721, %v4720
  %v4727 = vsel %vm1082, %v4697, 0
  %v4730 = vsel %vm1082, %v4698, 0
  %v4733 = vsel %vm1082, %v4699, 0
  %v4736 = vsel %vm1082, %v4700, 0
  %4738 = vmatprep.subr.bf16.mxu0 0
  %4739 = vmatpush1.bf16.msra.mxu0 %v4722
  %4740 = vmatprep.subr.bf16.mxu0 0
  %4741 = vmatpush1.bf16.msra.mxu0 %v4723
  %4742 = vmatprep.subr.bf16.mxu0 0
  %4743 = vmatpush1.bf16.msra.mxu0 0
  %4744 = vmatprep.subr.bf16.mxu0 0
  %4745 = vmatpush1.bf16.msra.mxu0 0
  %4746 = vmatprep.subr.bf16.mxu0 0
  %4747 = vmatpush1.bf16.msra.mxu0 0
  %4748 = vmatprep.subr.bf16.mxu0 0
  %4749 = vmatpush1.bf16.msra.mxu0 0
  %4750 = vmatprep.subr.bf16.mxu0 0
  %4751 = vmatpush1.bf16.msra.mxu0 0
  %4752 = vmatprep.subr.bf16.mxu0 0
  %4753 = vmatpush1.bf16.msra.mxu0 0
  %4754 = vmatprep.subr.bf16.mxu0 0
  %4755 = vmatpush1.bf16.msra.mxu0 0
  %4756 = vmatprep.subr.bf16.mxu0 0
  %4757 = vmatpush1.bf16.msra.mxu0 0
  %4758 = vmatprep.subr.bf16.mxu0 0
  %4759 = vmatpush1.bf16.msra.mxu0 0
  %4760 = vmatprep.subr.bf16.mxu0 0
  %4761 = vmatpush1.bf16.msra.mxu0 0
  %4762 = vmatprep.subr.bf16.mxu0 0
  %4763 = vmatpush1.bf16.msra.mxu0 0
  %4764 = vmatprep.subr.bf16.mxu0 0
  %4765 = vmatpush1.bf16.msra.mxu0 0
  %4766 = vmatprep.subr.bf16.mxu0 0
  %4767 = vmatpush1.bf16.msra.mxu0 0
  %4768 = vmatprep.subr.bf16.mxu0 0
  %4769 = vmatpush1.bf16.msra.mxu0 0
  %4770 = vmatprep.mubr.bf16.mxu0 0
  %4771 = vmatmul.mubr.bf16.gmra.mrb[0].mxu0 %v4727
  %v4772 = vpop.f32.mrb[0].mxu0
  %v4773 = vadd.f32 %v4712, %v4772
  %v4774 = vpop.f32.mrb[0].mxu0
  %v4775 = vpop.f32.mrb[0].mxu0
  %v4776 = vadd.f32 %v4712, %v4775
  %v4777 = vpop.f32.mrb[0].mxu0
  %4778 = vmatprep.mubr.bf16.mxu0 0
  %4779 = vmatmul.mubr.bf16.gmra.mrb[0].mxu0 %v4730
  %v4780 = vpop.f32.mrb[0].mxu0
  %v4781 = vadd.f32 %v4712, %v4780
  %v4782 = vpop.f32.mrb[0].mxu0
  %v4783 = vpop.f32.mrb[0].mxu0
  %v4784 = vadd.f32 %v4712, %v4783
  %v4785 = vpop.f32.mrb[0].mxu0
  %4786 = vmatprep.mubr.bf16.mxu0 0
  %4787 = vmatmul.mubr.bf16.gmra.mrb[0].mxu0 %v4733
  %v4788 = vpop.f32.mrb[0].mxu0
  %v4789 = vadd.f32 %v4712, %v4788
  %v4790 = vpop.f32.mrb[0].mxu0
  %v4791 = vpop.f32.mrb[0].mxu0
  %v4792 = vadd.f32 %v4712, %v4791
  %v4793 = vpop.f32.mrb[0].mxu0
  %4794 = vmatprep.mubr.bf16.mxu0 0
  %4795 = vmatmul.mubr.bf16.gmra.mrb[0].mxu0 %v4736
  %v4796 = vpop.f32.mrb[0].mxu0
  %v4797 = vadd.f32 %v4712, %v4796
  %v4798 = vpop.f32.mrb[0].mxu0
  %v4799 = vpop.f32.mrb[0].mxu0
  %v4800 = vadd.f32 %v4712, %v4799
  %v4801 = vpop.f32.mrb[0].mxu0
  %4802 = vdwg.mxu0
  %4803 = vmatprep.subr.mxu0 0.0
  %4804 = vmatpush1.msra.mxu0 %v4773
  %4805 = vmatprep.subr.mxu0 0.0
  %4806 = vmatpush1.msra.mxu0 %v4776
  %4807 = vmatprep.subr.mxu0 0.0
  %4808 = vmatpush1.msra.mxu0 %v4781
  %4809 = vmatprep.subr.mxu0 0.0
  %4810 = vmatpush1.msra.mxu0 %v4784
  %4811 = vmatprep.subr.mxu0 0.0
  %4812 = vmatpush1.msra.mxu0 %v4789
  %4813 = vmatprep.subr.mxu0 0.0
  %4814 = vmatpush1.msra.mxu0 %v4792
  %4815 = vmatprep.subr.mxu0 0.0
  %4816 = vmatpush1.msra.mxu0 %v4797
  %4817 = vmatprep.subr.mxu0 0.0
  %4818 = vmatpush1.msra.mxu0 %v4800
  %4819 = vmatprep.subr.mxu0 0.0
  %4820 = vmatpush1.msra.mxu0 0.0
  %4821 = vmatprep.subr.mxu0 0.0
  %4822 = vmatpush1.msra.mxu0 0.0
  %4823 = vmatprep.subr.mxu0 0.0
  %4824 = vmatpush1.msra.mxu0 0.0
  %4825 = vmatprep.subr.mxu0 0.0
  %4826 = vmatpush1.msra.mxu0 0.0
  %4827 = vmatprep.subr.mxu0 0.0
  %4828 = vmatpush1.msra.mxu0 0.0
  %4829 = vmatprep.subr.mxu0 0.0
  %4830 = vmatpush1.msra.mxu0 0.0
  %4831 = vmatprep.subr.mxu0 0.0
  %4832 = vmatpush1.msra.mxu0 0.0
  %4833 = vmatprep.subr.mxu0 0.0
  %4834 = vmatpush1.msra.mxu0 0.0
  %4835 = vmatprep.subr.mxu0 0.0
  %4836 = vmatpush1.msra.mxu0 0.0
  %4837 = vmatprep.subr.mxu0 0.0
  %4838 = vmatpush1.msra.mxu0 0.0
  %4839 = vmatprep.subr.mxu0 0.0
  %4840 = vmatpush1.msra.mxu0 0.0
  %4841 = vmatprep.subr.mxu0 0.0
  %4842 = vmatpush1.msra.mxu0 0.0
  %4843 = vmatprep.subr.mxu0 0.0
  %4844 = vmatpush1.msra.mxu0 0.0
  %4845 = vmatprep.subr.mxu0 0.0
  %4846 = vmatpush1.msra.mxu0 0.0
  %4847 = vmatprep.subr.mxu0 0.0
  %4848 = vmatpush1.msra.mxu0 0.0
  %4849 = vmatprep.subr.mxu0 0.0
  %4850 = vmatpush1.msra.mxu0 0.0
  %4851 = vmatprep.subr.mxu0 0.0
  %4852 = vmatpush1.msra.mxu0 0.0
  %4853 = vmatprep.subr.mxu0 0.0
  %4854 = vmatpush1.msra.mxu0 0.0
  %4855 = vmatprep.subr.mxu0 0.0
  %4856 = vmatpush1.msra.mxu0 0.0
  %4857 = vmatprep.subr.mxu0 0.0
  %4858 = vmatpush1.msra.mxu0 0.0
  %4859 = vmatprep.subr.mxu0 0.0
  %4860 = vmatpush1.msra.mxu0 0.0
  %4861 = vmatprep.subr.mxu0 0.0
  %4862 = vmatpush1.msra.mxu0 0.0
  %4863 = vmatprep.subr.mxu0 0.0
  %4864 = vmatpush1.msra.mxu0 0.0
  %4865 = vmatprep.subr.mxu0 0.0
  %4866 = vmatpush1.msra.mxu0 0.0
  %4867 = vmatprep.mubr.f32.mxu0 0.0
  %4868 = vmatmul.mubr.f32.gmra.mrb[0].mxu0 %v1161
  %v4869 = vpop.f32.mrb[0].mxu0
  %v4870 = vadd.f32 0.0, %v4869
  %v4871 = vpop.f32.mrb[0].mxu0
  %4872 = vdwg.mxu0
  %v4873 = vmul.f32 %v4773, %v4773
  %v4874 = vmul.f32 %v4776, %v4776
  %v4875 = vmul.f32 %v4781, %v4781
  %v4876 = vmul.f32 %v4784, %v4784
  %v4877 = vmul.f32 %v4789, %v4789
  %v4878 = vmul.f32 %v4792, %v4792
  %v4879 = vmul.f32 %v4797, %v4797
  %v4880 = vmul.f32 %v4800, %v4800
  %4881 = vmatprep.subr.mxu0 0.0
  %4882 = vmatpush1.msra.mxu0 %v4873
  %4883 = vmatprep.subr.mxu0 0.0
  %4884 = vmatpush1.msra.mxu0 %v4874
  %4885 = vmatprep.subr.mxu0 0.0
  %4886 = vmatpush1.msra.mxu0 %v4875
  %4887 = vmatprep.subr.mxu0 0.0
  %4888 = vmatpush1.msra.mxu0 %v4876
  %4889 = vmatprep.subr.mxu0 0.0
  %4890 = vmatpush1.msra.mxu0 %v4877
  %4891 = vmatprep.subr.mxu0 0.0
  %4892 = vmatpush1.msra.mxu0 %v4878
  %4893 = vmatprep.subr.mxu0 0.0
  %4894 = vmatpush1.msra.mxu0 %v4879
  %4895 = vmatprep.subr.mxu0 0.0
  %4896 = vmatpush1.msra.mxu0 %v4880
  %4897 = vmatprep.subr.mxu0 0.0
  %4898 = vmatpush1.msra.mxu0 0.0
  %4899 = vmatprep.subr.mxu0 0.0
  %4900 = vmatpush1.msra.mxu0 0.0
  %4901 = vmatprep.subr.mxu0 0.0
  %4902 = vmatpush1.msra.mxu0 0.0
  %4903 = vmatprep.subr.mxu0 0.0
  %4904 = vmatpush1.msra.mxu0 0.0
  %4905 = vmatprep.subr.mxu0 0.0
  %4906 = vmatpush1.msra.mxu0 0.0
  %4907 = vmatprep.subr.mxu0 0.0
  %4908 = vmatpush1.msra.mxu0 0.0
  %4909 = vmatprep.subr.mxu0 0.0
  %4910 = vmatpush1.msra.mxu0 0.0
  %4911 = vmatprep.subr.mxu0 0.0
  %4912 = vmatpush1.msra.mxu0 0.0
  %4913 = vmatprep.subr.mxu0 0.0
  %4914 = vmatpush1.msra.mxu0 0.0
  %4915 = vmatprep.subr.mxu0 0.0
  %4916 = vmatpush1.msra.mxu0 0.0
  %4917 = vmatprep.subr.mxu0 0.0
  %4918 = vmatpush1.msra.mxu0 0.0
  %4919 = vmatprep.subr.mxu0 0.0
  %4920 = vmatpush1.msra.mxu0 0.0
  %4921 = vmatprep.subr.mxu0 0.0
  %4922 = vmatpush1.msra.mxu0 0.0
  %4923 = vmatprep.subr.mxu0 0.0
  %4924 = vmatpush1.msra.mxu0 0.0
  %4925 = vmatprep.subr.mxu0 0.0
  %4926 = vmatpush1.msra.mxu0 0.0
  %4927 = vmatprep.subr.mxu0 0.0
  %4928 = vmatpush1.msra.mxu0 0.0
  %4929 = vmatprep.subr.mxu0 0.0
  %4930 = vmatpush1.msra.mxu0 0.0
  %4931 = vmatprep.subr.mxu0 0.0
  %4932 = vmatpush1.msra.mxu0 0.0
  %4933 = vmatprep.subr.mxu0 0.0
  %4934 = vmatpush1.msra.mxu0 0.0
  %4935 = vmatprep.subr.mxu0 0.0
  %4936 = vmatpush1.msra.mxu0 0.0
  %4937 = vmatprep.subr.mxu0 0.0
  %4938 = vmatpush1.msra.mxu0 0.0
  %4939 = vmatprep.subr.mxu0 0.0
  %4940 = vmatpush1.msra.mxu0 0.0
  %4941 = vmatprep.subr.mxu0 0.0
  %4942 = vmatpush1.msra.mxu0 0.0
  %4943 = vmatprep.subr.mxu0 0.0
  %4944 = vmatpush1.msra.mxu0 0.0
  %4945 = vmatprep.mubr.f32.mxu0 0.0
  %4946 = vmatmul.mubr.f32.gmra.mrb[0].mxu0 %v1161
  %v4947 = vpop.f32.mrb[0].mxu0
  %v4948 = vadd.f32 0.0, %v4947
  %v4949 = vpop.f32.mrb[0].mxu0
  %4950 = vdwg.mxu0
  %v4951 = vmul.f32 %v4870, 0.015625
  %v4952 = vmul.f32 %v4948, 0.015625
  %v4953 = vmul.f32 %v4951, %v4951
  %v4954 = vsub.f32 %v4952, %v4953
  %s4955 = scalar_lea.vmem %s11, 3
  %v4956 = vld [vmem:[%s4955] sm:$0x1]
  %v4957 = vlaneseq
  %v4958 = vshrl.u32 %v4957, 7
  %v4959 = vsub.s32 0, %v4958
  %v4960 = vrot.slane %v4951, %v4959
  %v4961 = vsub.f32 %v4773, %v4960
  %v4962 = vsub.f32 %v4776, %v4960
  %v4963 = vsub.f32 %v4781, %v4960
  %v4964 = vsub.f32 %v4784, %v4960
  %v4965 = vsub.f32 %v4789, %v4960
  %v4966 = vsub.f32 %v4792, %v4960
  %v4967 = vsub.f32 %v4797, %v4960
  %v4968 = vsub.f32 %v4800, %v4960
  %v4970 = vlaneseq
  %v4971 = vshrl.u32 %v4970, 7
  %v4972 = vsub.s32 0, %v4971
  %v4973 = vrot.slane %v4956, %v4972
  %v4975 = vmul.f32 %v4973, %v4961
  %v4976 = vmul.f32 %v4973, %v4962
  %v4977 = vmul.f32 %v4973, %v4963
  %v4978 = vmul.f32 %v4973, %v4964
  %v4979 = vmul.f32 %v4973, %v4965
  %v4980 = vmul.f32 %v4973, %v4966
  %v4981 = vmul.f32 %v4973, %v4967
  %v4982 = vmul.f32 %v4973, %v4968
  %v4983 = vadd.f32 %v4954, 1e-05
  %v4984 = vrsqrt.pop %v4983
  %v4985 = vlaneseq
  %v4986 = vshrl.u32 %v4985, 7
  %v4987 = vsub.s32 0, %v4986
  %v4988 = vrot.slane %v4984, %v4987
  %v4989 = vmul.f32 %v4975, %v4988
  %v4990 = vmul.f32 %v4976, %v4988
  %v4991 = vmul.f32 %v4977, %v4988
  %v4992 = vmul.f32 %v4978, %v4988
  %v4993 = vmul.f32 %v4979, %v4988
  %v4994 = vmul.f32 %v4980, %v4988
  %v4995 = vmul.f32 %v4981, %v4988
  %v4996 = vmul.f32 %v4982, %v4988
  %s4997 = scalar_lea.vmem %s12, 3
  %v4998 = vld [vmem:[%s4997] sm:$0x1]
  %v5000 = vlaneseq
  %v5001 = vshrl.u32 %v5000, 7
  %v5002 = vsub.s32 0, %v5001
  %v5003 = vrot.slane %v4998, %v5002
  %v5005 = vadd.f32 %v4989, %v5003
  %v5006 = vadd.f32 %v4990, %v5003
  %v5007 = vadd.f32 %v4991, %v5003
  %v5008 = vadd.f32 %v4992, %v5003
  %v5009 = vadd.f32 %v4993, %v5003
  %v5010 = vadd.f32 %v4994, %v5003
  %v5011 = vadd.f32 %v4995, %v5003
  %v5012 = vadd.f32 %v4996, %v5003
  %5013 = vmatprep.subr.mxu0 0.0
  %5014 = vmatpush1.msra.mxu0 %v5005
  %5015 = vmatprep.subr.mxu0 0.0
  %5016 = vmatpush1.msra.mxu0 %v5006
  %5017 = vmatprep.subr.mxu0 0.0
  %5018 = vmatpush1.msra.mxu0 %v5007
  %5019 = vmatprep.subr.mxu0 0.0
  %5020 = vmatpush1.msra.mxu0 %v5008
  %5021 = vmatprep.subr.mxu0 0.0
  %5022 = vmatpush1.msra.mxu0 %v5009
  %5023 = vmatprep.subr.mxu0 0.0
  %5024 = vmatpush1.msra.mxu0 %v5010
  %5025 = vmatprep.subr.mxu0 0.0
  %5026 = vmatpush1.msra.mxu0 %v5011
  %5027 = vmatprep.subr.mxu0 0.0
  %5028 = vmatpush1.msra.mxu0 %v5012
  %5029 = vmatprep.subr.mxu0 0.0
  %5030 = vmatpush1.msra.mxu0 0.0
  %5031 = vmatprep.subr.mxu0 0.0
  %5032 = vmatpush1.msra.mxu0 0.0
  %5033 = vmatprep.subr.mxu0 0.0
  %5034 = vmatpush1.msra.mxu0 0.0
  %5035 = vmatprep.subr.mxu0 0.0
  %5036 = vmatpush1.msra.mxu0 0.0
  %5037 = vmatprep.subr.mxu0 0.0
  %5038 = vmatpush1.msra.mxu0 0.0
  %5039 = vmatprep.subr.mxu0 0.0
  %5040 = vmatpush1.msra.mxu0 0.0
  %5041 = vmatprep.subr.mxu0 0.0
  %5042 = vmatpush1.msra.mxu0 0.0
  %5043 = vmatprep.subr.mxu0 0.0
  %5044 = vmatpush1.msra.mxu0 0.0
  %5045 = vmatprep.subr.mxu0 0.0
  %5046 = vmatpush1.msra.mxu0 0.0
  %5047 = vmatprep.subr.mxu0 0.0
  %5048 = vmatpush1.msra.mxu0 0.0
  %5049 = vmatprep.subr.mxu0 0.0
  %5050 = vmatpush1.msra.mxu0 0.0
  %5051 = vmatprep.subr.mxu0 0.0
  %5052 = vmatpush1.msra.mxu0 0.0
  %5053 = vmatprep.subr.mxu0 0.0
  %5054 = vmatpush1.msra.mxu0 0.0
  %5055 = vmatprep.subr.mxu0 0.0
  %5056 = vmatpush1.msra.mxu0 0.0
  %5057 = vmatprep.subr.mxu0 0.0
  %5058 = vmatpush1.msra.mxu0 0.0
  %5059 = vmatprep.subr.mxu0 0.0
  %5060 = vmatpush1.msra.mxu0 0.0
  %5061 = vmatprep.subr.mxu0 0.0
  %5062 = vmatpush1.msra.mxu0 0.0
  %5063 = vmatprep.subr.mxu0 0.0
  %5064 = vmatpush1.msra.mxu0 0.0
  %5065 = vmatprep.subr.mxu0 0.0
  %5066 = vmatpush1.msra.mxu0 0.0
  %5067 = vmatprep.subr.mxu0 0.0
  %5068 = vmatpush1.msra.mxu0 0.0
  %5069 = vmatprep.subr.mxu0 0.0
  %5070 = vmatpush1.msra.mxu0 0.0
  %5071 = vmatprep.subr.mxu0 0.0
  %5072 = vmatpush1.msra.mxu0 0.0
  %5073 = vmatprep.subr.mxu0 0.0
  %5074 = vmatpush1.msra.mxu0 0.0
  %5075 = vmatprep.subr.mxu0 0.0
  %5076 = vmatpush1.msra.mxu0 0.0
  %5077 = vmatprep.mubr.f32.mxu0 0.0
  %5078 = vmatmul.mubr.f32.gmra.mrb[0].mxu0 %v1372
  %v5079 = vpop.f32.mrb[0].mxu0
  %v5080 = vadd.f32 0.0, %v5079
  %v5081 = vpop.f32.mrb[0].mxu0
  %5082 = vdwg.mxu0
  %v5083 = vld [vmem:[%s15 + $0x60] sm:$0xff]
  %v5084 = vld [vmem:[%s15 + $0x68] sm:$0xff]
  %v5085 = vld [vmem:[%s15 + $0x70] sm:$0xff]
  %v5086 = vld [vmem:[%s15 + $0x78] sm:$0xff]
  %v5088 = vsel %vm1082, %v5080, 0
  %5090 = vmatprep.subr.mxu0 0.0
  %5091 = vmatpush1.msra.mxu0 %v5083
  %5092 = vmatprep.subr.mxu0 0.0
  %5093 = vmatpush1.msra.mxu0 %v5084
  %5094 = vmatprep.subr.mxu0 0.0
  %5095 = vmatpush1.msra.mxu0 %v5085
  %5096 = vmatprep.subr.mxu0 0.0
  %5097 = vmatpush1.msra.mxu0 %v5086
  %5098 = vmatprep.subr.mxu0 0.0
  %5099 = vmatpush1.msra.mxu0 0.0
  %5100 = vmatprep.subr.mxu0 0.0
  %5101 = vmatpush1.msra.mxu0 0.0
  %5102 = vmatprep.subr.mxu0 0.0
  %5103 = vmatpush1.msra.mxu0 0.0
  %5104 = vmatprep.subr.mxu0 0.0
  %5105 = vmatpush1.msra.mxu0 0.0
  %5106 = vmatprep.subr.mxu0 0.0
  %5107 = vmatpush1.msra.mxu0 0.0
  %5108 = vmatprep.subr.mxu0 0.0
  %5109 = vmatpush1.msra.mxu0 0.0
  %5110 = vmatprep.subr.mxu0 0.0
  %5111 = vmatpush1.msra.mxu0 0.0
  %5112 = vmatprep.subr.mxu0 0.0
  %5113 = vmatpush1.msra.mxu0 0.0
  %5114 = vmatprep.subr.mxu0 0.0
  %5115 = vmatpush1.msra.mxu0 0.0
  %5116 = vmatprep.subr.mxu0 0.0
  %5117 = vmatpush1.msra.mxu0 0.0
  %5118 = vmatprep.subr.mxu0 0.0
  %5119 = vmatpush1.msra.mxu0 0.0
  %5120 = vmatprep.subr.mxu0 0.0
  %5121 = vmatpush1.msra.mxu0 0.0
  %5122 = vmatprep.subr.mxu0 0.0
  %5123 = vmatpush1.msra.mxu0 0.0
  %5124 = vmatprep.subr.mxu0 0.0
  %5125 = vmatpush1.msra.mxu0 0.0
  %5126 = vmatprep.subr.mxu0 0.0
  %5127 = vmatpush1.msra.mxu0 0.0
  %5128 = vmatprep.subr.mxu0 0.0
  %5129 = vmatpush1.msra.mxu0 0.0
  %5130 = vmatprep.subr.mxu0 0.0
  %5131 = vmatpush1.msra.mxu0 0.0
  %5132 = vmatprep.subr.mxu0 0.0
  %5133 = vmatpush1.msra.mxu0 0.0
  %5134 = vmatprep.subr.mxu0 0.0
  %5135 = vmatpush1.msra.mxu0 0.0
  %5136 = vmatprep.subr.mxu0 0.0
  %5137 = vmatpush1.msra.mxu0 0.0
  %5138 = vmatprep.subr.mxu0 0.0
  %5139 = vmatpush1.msra.mxu0 0.0
  %5140 = vmatprep.subr.mxu0 0.0
  %5141 = vmatpush1.msra.mxu0 0.0
  %5142 = vmatprep.subr.mxu0 0.0
  %5143 = vmatpush1.msra.mxu0 0.0
  %5144 = vmatprep.subr.mxu0 0.0
  %5145 = vmatpush1.msra.mxu0 0.0
  %5146 = vmatprep.subr.mxu0 0.0
  %5147 = vmatpush1.msra.mxu0 0.0
  %5148 = vmatprep.subr.mxu0 0.0
  %5149 = vmatpush1.msra.mxu0 0.0
  %5150 = vmatprep.subr.mxu0 0.0
  %5151 = vmatpush1.msra.mxu0 0.0
  %5152 = vmatprep.subr.mxu0 0.0
  %5153 = vmatpush1.msra.mxu0 0.0
  %5154 = vmatprep.mubr.f32.mxu0 0.0
  %5155 = vmatmul.mubr.f32.gmra.mrb[0].mxu0 %v5088
  %v5156 = vpop.f32.mrb[0].mxu0
  %v5157 = vadd.f32 0.0, %v5156
  %v5158 = vpop.f32.mrb[0].mxu0
  %5159 = vdwg.mxu0
  %v5160 = vadd.f32 %v3946, %v5157
  %v5161 = vld [vmem:[%s16] sm:$0x1]
  %v5163 = vlaneseq
  %v5164 = vshrl.u32 %v5163, 7
  %v5165 = vsub.s32 0, %v5164
  %v5166 = vrot.slane %v5161, %v5165
  %v5168 = vadd.f32 %v5160, %v5166
  %v5169 = vmax.f32 %v5168, 0.0
  %v5170 = vld [vmem:[%s17] sm:$0xff]
  %v5171 = vld [vmem:[%s17 + $0x8] sm:$0xff]
  %v5172 = vld [vmem:[%s17 + $0x10] sm:$0xff]
  %v5173 = vld [vmem:[%s17 + $0x18] sm:$0xff]
  %v5174 = vld [vmem:[%s18] sm:$0x1]
  %v5176 = vlaneseq
  %v5177 = vshrl.u32 %v5176, 7
  %v5178 = vsub.s32 0, %v5177
  %v5179 = vrot.slane %v5174, %v5178
  %v5182 = vsel %vm1082, %v5169, 0
  %5184 = vmatprep.subr.mxu0 0.0
  %5185 = vmatpush1.msra.mxu0 %v5170
  %5186 = vmatprep.subr.mxu0 0.0
  %5187 = vmatpush1.msra.mxu0 %v5171
  %5188 = vmatprep.subr.mxu0 0.0
  %5189 = vmatpush1.msra.mxu0 %v5172
  %5190 = vmatprep.subr.mxu0 0.0
  %5191 = vmatpush1.msra.mxu0 %v5173
  %5192 = vmatprep.subr.mxu0 0.0
  %5193 = vmatpush1.msra.mxu0 0.0
  %5194 = vmatprep.subr.mxu0 0.0
  %5195 = vmatpush1.msra.mxu0 0.0
  %5196 = vmatprep.subr.mxu0 0.0
  %5197 = vmatpush1.msra.mxu0 0.0
  %5198 = vmatprep.subr.mxu0 0.0
  %5199 = vmatpush1.msra.mxu0 0.0
  %5200 = vmatprep.subr.mxu0 0.0
  %5201 = vmatpush1.msra.mxu0 0.0
  %5202 = vmatprep.subr.mxu0 0.0
  %5203 = vmatpush1.msra.mxu0 0.0
  %5204 = vmatprep.subr.mxu0 0.0
  %5205 = vmatpush1.msra.mxu0 0.0
  %5206 = vmatprep.subr.mxu0 0.0
  %5207 = vmatpush1.msra.mxu0 0.0
  %5208 = vmatprep.subr.mxu0 0.0
  %5209 = vmatpush1.msra.mxu0 0.0
  %5210 = vmatprep.subr.mxu0 0.0
  %5211 = vmatpush1.msra.mxu0 0.0
  %5212 = vmatprep.subr.mxu0 0.0
  %5213 = vmatpush1.msra.mxu0 0.0
  %5214 = vmatprep.subr.mxu0 0.0
  %5215 = vmatpush1.msra.mxu0 0.0
  %5216 = vmatprep.subr.mxu0 0.0
  %5217 = vmatpush1.msra.mxu0 0.0
  %5218 = vmatprep.subr.mxu0 0.0
  %5219 = vmatpush1.msra.mxu0 0.0
  %5220 = vmatprep.subr.mxu0 0.0
  %5221 = vmatpush1.msra.mxu0 0.0
  %5222 = vmatprep.subr.mxu0 0.0
  %5223 = vmatpush1.msra.mxu0 0.0
  %5224 = vmatprep.subr.mxu0 0.0
  %5225 = vmatpush1.msra.mxu0 0.0
  %5226 = vmatprep.subr.mxu0 0.0
  %5227 = vmatpush1.msra.mxu0 0.0
  %5228 = vmatprep.subr.mxu0 0.0
  %5229 = vmatpush1.msra.mxu0 0.0
  %5230 = vmatprep.subr.mxu0 0.0
  %5231 = vmatpush1.msra.mxu0 0.0
  %5232 = vmatprep.subr.mxu0 0.0
  %5233 = vmatpush1.msra.mxu0 0.0
  %5234 = vmatprep.subr.mxu0 0.0
  %5235 = vmatpush1.msra.mxu0 0.0
  %5236 = vmatprep.subr.mxu0 0.0
  %5237 = vmatpush1.msra.mxu0 0.0
  %5238 = vmatprep.subr.mxu0 0.0
  %5239 = vmatpush1.msra.mxu0 0.0
  %5240 = vmatprep.subr.mxu0 0.0
  %5241 = vmatpush1.msra.mxu0 0.0
  %5242 = vmatprep.subr.mxu0 0.0
  %5243 = vmatpush1.msra.mxu0 0.0
  %5244 = vmatprep.subr.mxu0 0.0
  %5245 = vmatpush1.msra.mxu0 0.0
  %5246 = vmatprep.subr.mxu0 0.0
  %5247 = vmatpush1.msra.mxu0 0.0
  %5248 = vmatprep.mubr.f32.mxu0 0.0
  %5249 = vmatmul.mubr.f32.gmra.mrb[0].mxu0 %v5182
  %v5250 = vpop.f32.mrb[0].mxu0
  %v5251 = vadd.f32 %v5179, %v5250
  %v5252 = vpop.f32.mrb[0].mxu0
  %5253 = vdwg.mxu0
  %v5254 = vmax.f32 %v5251, 0.0
  %v5255 = vld [vmem:[%s19] sm:$0xff]
  %v5256 = vld [vmem:[%s19 + $0x8] sm:$0xff]
  %v5257 = vld [vmem:[%s19 + $0x10] sm:$0xff]
  %v5258 = vld [vmem:[%s19 + $0x18] sm:$0xff]
  %v5259 = vld [vmem:[%s20] sm:$0x1]
  %v5261 = vlaneseq
  %v5262 = vshrl.u32 %v5261, 7
  %v5263 = vsub.s32 0, %v5262
  %v5264 = vrot.slane %v5259, %v5263
  %v5267 = vsel %vm1082, %v5254, 0
  %5269 = vmatprep.subr.mxu0 0.0
  %5270 = vmatpush1.msra.mxu0 %v5255
  %5271 = vmatprep.subr.mxu0 0.0
  %5272 = vmatpush1.msra.mxu0 %v5256
  %5273 = vmatprep.subr.mxu0 0.0
  %5274 = vmatpush1.msra.mxu0 %v5257
  %5275 = vmatprep.subr.mxu0 0.0
  %5276 = vmatpush1.msra.mxu0 %v5258
  %5277 = vmatprep.subr.mxu0 0.0
  %5278 = vmatpush1.msra.mxu0 0.0
  %5279 = vmatprep.subr.mxu0 0.0
  %5280 = vmatpush1.msra.mxu0 0.0
  %5281 = vmatprep.subr.mxu0 0.0
  %5282 = vmatpush1.msra.mxu0 0.0
  %5283 = vmatprep.subr.mxu0 0.0
  %5284 = vmatpush1.msra.mxu0 0.0
  %5285 = vmatprep.subr.mxu0 0.0
  %5286 = vmatpush1.msra.mxu0 0.0
  %5287 = vmatprep.subr.mxu0 0.0
  %5288 = vmatpush1.msra.mxu0 0.0
  %5289 = vmatprep.subr.mxu0 0.0
  %5290 = vmatpush1.msra.mxu0 0.0
  %5291 = vmatprep.subr.mxu0 0.0
  %5292 = vmatpush1.msra.mxu0 0.0
  %5293 = vmatprep.subr.mxu0 0.0
  %5294 = vmatpush1.msra.mxu0 0.0
  %5295 = vmatprep.subr.mxu0 0.0
  %5296 = vmatpush1.msra.mxu0 0.0
  %5297 = vmatprep.subr.mxu0 0.0
  %5298 = vmatpush1.msra.mxu0 0.0
  %5299 = vmatprep.subr.mxu0 0.0
  %5300 = vmatpush1.msra.mxu0 0.0
  %5301 = vmatprep.subr.mxu0 0.0
  %5302 = vmatpush1.msra.mxu0 0.0
  %5303 = vmatprep.subr.mxu0 0.0
  %5304 = vmatpush1.msra.mxu0 0.0
  %5305 = vmatprep.subr.mxu0 0.0
  %5306 = vmatpush1.msra.mxu0 0.0
  %5307 = vmatprep.subr.mxu0 0.0
  %5308 = vmatpush1.msra.mxu0 0.0
  %5309 = vmatprep.subr.mxu0 0.0
  %5310 = vmatpush1.msra.mxu0 0.0
  %5311 = vmatprep.subr.mxu0 0.0
  %5312 = vmatpush1.msra.mxu0 0.0
  %5313 = vmatprep.subr.mxu0 0.0
  %5314 = vmatpush1.msra.mxu0 0.0
  %5315 = vmatprep.subr.mxu0 0.0
  %5316 = vmatpush1.msra.mxu0 0.0
  %5317 = vmatprep.subr.mxu0 0.0
  %5318 = vmatpush1.msra.mxu0 0.0
  %5319 = vmatprep.subr.mxu0 0.0
  %5320 = vmatpush1.msra.mxu0 0.0
  %5321 = vmatprep.subr.mxu0 0.0
  %5322 = vmatpush1.msra.mxu0 0.0
  %5323 = vmatprep.subr.mxu0 0.0
  %5324 = vmatpush1.msra.mxu0 0.0
  %5325 = vmatprep.subr.mxu0 0.0
  %5326 = vmatpush1.msra.mxu0 0.0
  %5327 = vmatprep.subr.mxu0 0.0
  %5328 = vmatpush1.msra.mxu0 0.0
  %5329 = vmatprep.subr.mxu0 0.0
  %5330 = vmatpush1.msra.mxu0 0.0
  %5331 = vmatprep.subr.mxu0 0.0
  %5332 = vmatpush1.msra.mxu0 0.0
  %5333 = vmatprep.mubr.f32.mxu0 0.0
  %5334 = vmatmul.mubr.f32.gmra.mrb[0].mxu0 %v5267
  %v5335 = vpop.f32.mrb[0].mxu0
  %v5336 = vadd.f32 %v5264, %v5335
  %v5337 = vpop.f32.mrb[0].mxu0
  %5338 = vdwg.mxu0
  %v5339 = vmax.f32 %v5336, 0.0
  %v5340 = vld [vmem:[%s21] sm:$0xff]
  %v5341 = vld [vmem:[%s21 + $0x8] sm:$0xff]
  %v5342 = vld [vmem:[%s21 + $0x10] sm:$0xff]
  %v5343 = vld [vmem:[%s21 + $0x18] sm:$0xff]
  %v5344 = vld [vmem:[#allocation2] sm:$0x1]
  %v5346 = vlaneseq
  %v5347 = vshrl.u32 %v5346, 7
  %v5348 = vsub.s32 0, %v5347
  %v5349 = vrot.slane %v5344, %v5348
  %v5352 = vsel %vm1082, %v5339, 0
  %5354 = vmatprep.subr.mxu0 0.0
  %5355 = vmatpush1.msra.mxu0 %v5340
  %5356 = vmatprep.subr.mxu0 0.0
  %5357 = vmatpush1.msra.mxu0 %v5341
  %5358 = vmatprep.subr.mxu0 0.0
  %5359 = vmatpush1.msra.mxu0 %v5342
  %5360 = vmatprep.subr.mxu0 0.0
  %5361 = vmatpush1.msra.mxu0 %v5343
  %5362 = vmatprep.subr.mxu0 0.0
  %5363 = vmatpush1.msra.mxu0 0.0
  %5364 = vmatprep.subr.mxu0 0.0
  %5365 = vmatpush1.msra.mxu0 0.0
  %5366 = vmatprep.subr.mxu0 0.0
  %5367 = vmatpush1.msra.mxu0 0.0
  %5368 = vmatprep.subr.mxu0 0.0
  %5369 = vmatpush1.msra.mxu0 0.0
  %5370 = vmatprep.subr.mxu0 0.0
  %5371 = vmatpush1.msra.mxu0 0.0
  %5372 = vmatprep.subr.mxu0 0.0
  %5373 = vmatpush1.msra.mxu0 0.0
  %5374 = vmatprep.subr.mxu0 0.0
  %5375 = vmatpush1.msra.mxu0 0.0
  %5376 = vmatprep.subr.mxu0 0.0
  %5377 = vmatpush1.msra.mxu0 0.0
  %5378 = vmatprep.subr.mxu0 0.0
  %5379 = vmatpush1.msra.mxu0 0.0
  %5380 = vmatprep.subr.mxu0 0.0
  %5381 = vmatpush1.msra.mxu0 0.0
  %5382 = vmatprep.subr.mxu0 0.0
  %5383 = vmatpush1.msra.mxu0 0.0
  %5384 = vmatprep.subr.mxu0 0.0
  %5385 = vmatpush1.msra.mxu0 0.0
  %5386 = vmatprep.subr.mxu0 0.0
  %5387 = vmatpush1.msra.mxu0 0.0
  %5388 = vmatprep.subr.mxu0 0.0
  %5389 = vmatpush1.msra.mxu0 0.0
  %5390 = vmatprep.subr.mxu0 0.0
  %5391 = vmatpush1.msra.mxu0 0.0
  %5392 = vmatprep.subr.mxu0 0.0
  %5393 = vmatpush1.msra.mxu0 0.0
  %5394 = vmatprep.subr.mxu0 0.0
  %5395 = vmatpush1.msra.mxu0 0.0
  %5396 = vmatprep.subr.mxu0 0.0
  %5397 = vmatpush1.msra.mxu0 0.0
  %5398 = vmatprep.subr.mxu0 0.0
  %5399 = vmatpush1.msra.mxu0 0.0
  %5400 = vmatprep.subr.mxu0 0.0
  %5401 = vmatpush1.msra.mxu0 0.0
  %5402 = vmatprep.subr.mxu0 0.0
  %5403 = vmatpush1.msra.mxu0 0.0
  %5404 = vmatprep.subr.mxu0 0.0
  %5405 = vmatpush1.msra.mxu0 0.0
  %5406 = vmatprep.subr.mxu0 0.0
  %5407 = vmatpush1.msra.mxu0 0.0
  %5408 = vmatprep.subr.mxu0 0.0
  %5409 = vmatpush1.msra.mxu0 0.0
  %5410 = vmatprep.subr.mxu0 0.0
  %5411 = vmatpush1.msra.mxu0 0.0
  %5412 = vmatprep.subr.mxu0 0.0
  %5413 = vmatpush1.msra.mxu0 0.0
  %5414 = vmatprep.subr.mxu0 0.0
  %5415 = vmatpush1.msra.mxu0 0.0
  %5416 = vmatprep.subr.mxu0 0.0
  %5417 = vmatpush1.msra.mxu0 0.0
  %5418 = vmatprep.mubr.f32.mxu0 0.0
  %5419 = vmatmul.mubr.f32.gmra.mrb[0].mxu0 %v5352
  %v5420 = vpop.f32.mrb[0].mxu0
  %v5421 = vadd.f32 %v5349, %v5420
  %v5422 = vpop.f32.mrb[0].mxu0
  %5423 = vdwg.mxu0
  %vm5424 = vcmask 3072
  %5425 = vst.msk [vmem:[%s23] sm:$0xf] %vm5424, %v5421
  // Predicated region
  $region94: #{net_gin_forward.1} parent=0 // pred_check
    _
  $region95: #{net_gin_forward.1} parent=0 // pred_check_branch
    %5427 = sbr.rel (0) target = $region97
  $region96: #{net_gin_forward.1} parent=0 // pred_region
    _
  $region97: #{net_gin_forward.1} parent=0 // pred_fallthru
    _
  // Predicated region
  $region98: #{net_gin_forward.1} parent=0 // pred_check
    _
  $region99: #{net_gin_forward.1} parent=0 // pred_check_branch
    %5429 = sbr.rel (0) target = $region101
  $region100: #{net_gin_forward.1} parent=0 // pred_region
    _
  $region101: #{net_gin_forward.1} parent=0 // pred_fallthru
    _

</llo_original>
